<compile_context>
chip_gen: v7x
topology: tpu7x:2x2x1
jax: 0.10.0
libtpu: 0.0.40
codegen_flags: <defaults>
</compile_context>

<pallas_src>
import functools

import jax
import jax.numpy as jnp
import numpy as np
from jax.experimental import pallas as pl
from jax.experimental.pallas import tpu as pltpu

# Stand-in for nn.MaxPool2d's implicit -inf padding.  Safe as a finite value:
# SiLU output is always >= -0.2785, so the pad never wins a max.
_NEG = -1e30
_RPAD = 2   # row (leading-axis) pad: exactly the 5x5 pool radius (no alignment constraint)
_CPAD = 8   # column (sublane-axis) pad: pool radius rounded to the f32 sublane tile so
            # every centre store pbuf[:, _CPAD:_CPAD+W, :] stays aligned


def _silu(v):
    # v * sigmoid(v).  exp and the approximate reciprocal both ride the otherwise-idle
    # EUP slot instead of spending VPU cycles on an exact divide.
    return v * pl.reciprocal(1.0 + jnp.exp(-v), approx=True)


# ------------------------------ fused SPP kernel ---------------------------- #

def _spp_kernel(x_ref, w1_ref, b1_ref, w2_ref, b2_ref, o_ref,
                pbuf, cat_ref, *, hw, pool_counts):
    """One batch image per grid step; everything stays in VMEM.

    x_ref   : (1, H*W, c1)                 bf16  pixels x input channels
    w1_ref  : (c1, c_)                     bf16  cv1 weight, BN-folded, pre-transposed
    b1_ref  : (1, c_)                      f32   cv1 folded BN shift
    w2_ref  : (4*c_, c2)                   bf16  cv2 weight, BN-folded, pre-transposed
    b2_ref  : (1, c2)                      f32   cv2 folded BN shift
    o_ref   : (1, H*W, c2)                 f32
    pbuf    : (H+2*_RPAD, W+2*_CPAD, c_)   f32   padded image for the 5x5 pool cascade
    cat_ref : (H*W, 4*c_)                  bf16  in-VMEM concat fed to cv2 as ONE matmul
    """
    H, W = hw
    HW = H * W
    c_ = w1_ref.shape[1]
    Wp = W + 2 * _CPAD
    cdt = cat_ref.dtype                     # bf16 MXU compute dtype

    # ---- cv1: 1x1 conv == channel matmul (MXU) + folded BN + SiLU ----
    y = jnp.dot(x_ref[0], w1_ref[...], preferred_element_type=jnp.float32)
    y = _silu(y + b1_ref[...])                                  # (HW, c_) f32

    # Branch 0 of the concat is y itself (lane slice at a x128 offset).
    cat_ref[:, 0:c_] = y.astype(cdt)

    # ---- -inf border: fill ONLY the pad strips (centre is overwritten every stage).
    #      Row strips are leading-axis slices, column strips are 8-aligned bands. ----
    row_pad = jnp.full((_RPAD, Wp, c_), _NEG, jnp.float32)
    col_pad = jnp.full((H, _CPAD, c_), _NEG, jnp.float32)
    pbuf[0:_RPAD, :, :] = row_pad
    pbuf[_RPAD + H:_RPAD + H + _RPAD, :, :] = row_pad
    pbuf[_RPAD:_RPAD + H, 0:_CPAD, :] = col_pad
    pbuf[_RPAD:_RPAD + H, _CPAD + W:_CPAD + W + _CPAD, :] = col_pad

    # Stage y into the pool-buffer centre (leading offset free, sublane offset 8-aligned).
    pbuf[_RPAD:_RPAD + H, _CPAD:_CPAD + W, :] = y.reshape(H, W, c_)

    # ---- SPPF-style cascade of separable 5x5 stride-1 "same" max-pools ----
    # pool5 = one stage, pool9 = two stages, pool13 = three stages.
    c0 = _CPAD - 2                          # first column of the 5-wide W window
    total = sum(pool_counts)
    done = 0
    for bi, n_pool in enumerate(pool_counts):
        pm = None
        for _ in range(n_pool):
            # pass 1: max along W (VPU; shifted loads from the padded buffer)
            rm = pbuf[:, c0:c0 + W, :]
            for dw in range(1, 5):
                rm = jnp.maximum(rm, pbuf[:, c0 + dw:c0 + dw + W, :])
            # pass 2: max along H (leading-axis slices -> free addressing)
            pm = rm[0:H]
            for dh in range(1, 5):
                pm = jnp.maximum(pm, rm[dh:dh + H])
            done += 1
            if done < total:                # re-stage only if another 5x5 stage follows
                pbuf[_RPAD:_RPAD + H, _CPAD:_CPAD + W, :] = pm
        cat_ref[:, (bi + 1) * c_:(bi + 2) * c_] = pm.reshape(HW, c_).astype(cdt)

    # ---- cv2: ONE (HW, 4c_) @ (4c_, c2) MXU matmul + folded BN + SiLU ----
    out = jnp.dot(cat_ref[...], w2_ref[...], preferred_element_type=jnp.float32)
    o_ref[0] = _silu(out + b2_ref[...]).astype(o_ref.dtype)


# --------------------------------- wrapper ---------------------------------- #

def spp_forward(x_nchw, prep, pool_ks=(5, 9, 13)):
    """x_nchw: (b, c1, H, W) float32  ->  (b, c2, H, W) float32."""
    b, c1, H, W = x_nchw.shape
    w1, b1, w2, b2 = prep["w1"], prep["b1"], prep["w2"], prep["b2"]
    c_ = w1.shape[1]
    c2 = w2.shape[-1]
    HW = H * W
    n_branch = len(pool_ks) + 1

    # Fail loudly instead of mis-tiling.
    assert c1 % 128 == 0 and c_ % 128 == 0 and c2 % 128 == 0, "channels must be x128 (lane-dense)"
    assert W % 8 == 0, "W must be a multiple of 8 for layout-preserving (H,W,c)<->(HW,c) reshapes"
    assert min(pool_ks) >= 5 and all(k % 4 == 1 for k in pool_ks) \
        and list(pool_ks) == sorted(set(pool_ks)), \
        "pool sizes must be distinct, increasing and of the form 4n+1 (5x5 cascade)"
    assert w2.shape[0] == n_branch * c_
    pool_counts = tuple((k - p) // 4
                        for k, p in zip(pool_ks, (1,) + tuple(pool_ks[:-1])))

    # v5e's scoped-VMEM default is only 16 MiB: make sure the resident set fits; for
    # larger feature maps set pltpu.CompilerParams(vmem_limit_bytes=...) / row-tile.
    resident = ((H + 2 * _RPAD) * (W + 2 * _CPAD) * c_ * 4        # pool buffer (f32)
                + HW * n_branch * c_ * 2                          # concat (bf16)
                + 2 * HW * (c1 * 2 + c2 * 4)                      # double-buffered I/O blocks
                + 2 * (c1 * c_ + n_branch * c_ * c2))             # bf16 weights
    assert resident < 14 * 2 ** 20, "resident set exceeds the v5e scoped-VMEM default"

    # NCHW -> (batch, pixels, channels) in the MXU compute dtype.
    # TODO(synk): if neighbouring layers keep activations NHWC/bf16, this transpose+cast
    # (an extra HBM pass outside the kernel) disappears entirely.
    x_rows = x_nchw.transpose(0, 2, 3, 1).reshape(b, HW, c1).astype(w1.dtype)

    kernel = functools.partial(_spp_kernel, hw=(H, W), pool_counts=pool_counts)
    out_rows = pl.pallas_call(
        kernel,
        out_shape=jax.ShapeDtypeStruct((b, HW, c2), jnp.float32),
        grid=(b,),
        in_specs=[
            pl.BlockSpec((1, HW, c1), lambda i: (i, 0, 0)),       # one image per step
            pl.BlockSpec((c1, c_), lambda i: (0, 0)),             # grid-invariant weights
            pl.BlockSpec((1, c_), lambda i: (0, 0)),
            pl.BlockSpec((n_branch * c_, c2), lambda i: (0, 0)),
            pl.BlockSpec((1, c2), lambda i: (0, 0)),
        ],
        out_specs=pl.BlockSpec((1, HW, c2), lambda i: (i, 0, 0)),
        scratch_shapes=[
            pltpu.VMEM((H + 2 * _RPAD, W + 2 * _CPAD, c_), jnp.float32),  # padded pool buffer
            pltpu.VMEM((HW, n_branch * c_), w1.dtype),                    # in-VMEM concat (bf16)
        ],
        compiler_params=pltpu.CompilerParams(
            dimension_semantics=("parallel",)),    # megacore: shard batch across v7x cores
    )(x_rows, w1, b1, w2, b2)

    # (b, pixels, c2) -> NCHW
    return out_rows.reshape(b, H, W, c2).transpose(0, 3, 1, 2)


# ----------------------------- parameter handling --------------------------- #

def init_params(key, c1, c2, pool_ks=(5, 9, 13)):
    """Raw parameters in PyTorch layout: conv weights (Cout, Cin) + BN stats."""
    c_ = c1 // 2
    cin2 = c_ * (len(pool_ks) + 1)
    ks = jax.random.split(key, 8)

    def bn(kg, kb, km, n):
        return dict(
            gamma=1.0 + 0.1 * jax.random.normal(kg, (n,), jnp.float32),
            beta=0.1 * jax.random.normal(kb, (n,), jnp.float32),
            mean=0.1 * jax.random.normal(km, (n,), jnp.float32),
            var=jnp.ones((n,), jnp.float32),
            eps=1e-5,
        )

    return {
        "w1": jax.random.normal(ks[0], (c_, c1), jnp.float32) / np.sqrt(c1),
        "bn1": bn(ks[1], ks[2], ks[3], c_),
        "w2": jax.random.normal(ks[4], (c2, cin2), jnp.float32) / np.sqrt(cin2),
        "bn2": bn(ks[5], ks[6], ks[7], c2),
    }


def prepare_params(raw, compute_dtype=jnp.bfloat16):
    """Fold inference-mode BatchNorm into the conv weights, pre-transpose to (Cin, Cout)
    and pre-cast MXU operands to bf16 — all once, outside the kernel."""
    def fold(w, bn):  # w: (Cout, Cin) torch layout
        scale = bn["gamma"] / jnp.sqrt(bn["var"] + bn["eps"])
        shift = bn["beta"] - bn["mean"] * scale
        return w.T * scale[None, :], shift

    w1, b1 = fold(raw["w1"], raw["bn1"])              # (c1, c_),   (c_,)
    w2, b2 = fold(raw["w2"], raw["bn2"])              # (4*c_, c2), (c2,)
    return {
        "w1": w1.astype(compute_dtype),
        "b1": b1.reshape(1, -1).astype(jnp.float32),
        "w2": w2.astype(compute_dtype),
        "b2": b2.reshape(1, -1).astype(jnp.float32),
    }


# --------------------------- pure-JAX/XLA reference -------------------------- #

def reference_forward(x_nchw, prep, pool_ks=(5, 9, 13)):
    """Independent XLA implementation using the same folded/bf16 effective weights.
    Uses true -inf padding and the direct 5/9/13 pools (so it validates the cascade)."""
    b, c1, H, W = x_nchw.shape
    w1, b1, w2, b2 = prep["w1"], prep["b1"], prep["w2"], prep["b2"]
    c_ = w1.shape[1]
    c2 = w2.shape[-1]

    xr = x_nchw.transpose(0, 2, 3, 1).astype(w1.dtype)            # (b,H,W,c1)
    y = jnp.dot(xr.reshape(-1, c1), w1,
                preferred_element_type=jnp.float32) + b1[0]
    y = (y / (1.0 + jnp.exp(-y))).reshape(b, H, W, c_)            # exact SiLU

    branches = [y]
    for k in pool_ks:
        p = k // 2
        branches.append(jax.lax.reduce_window(
            y, -jnp.inf, jax.lax.max,
            window_dimensions=(1, k, k, 1), window_strides=(1, 1, 1, 1),
            padding=((0, 0), (p, p), (p, p), (0, 0))))
    cat = jnp.concatenate(branches, axis=-1)                      # (b,H,W,4c_)

    out = jnp.dot(cat.reshape(-1, cat.shape[-1]).astype(w2.dtype), w2,
                  preferred_element_type=jnp.float32) + b2[0]
    out = (out / (1.0 + jnp.exp(-out))).reshape(b, H, W, c2)
    return out.transpose(0, 3, 1, 2)


# ----------------------------------- main ------------------------------------ #

if __name__ == "__main__":
    key = jax.random.PRNGKey(0)
    kx, kp = jax.random.split(key)

    # SPP(c1=256, c2=256) on a (2, 256, 16, 16) feature map.
    # c_ = c1 // 2 = 128 keeps every channel/lane axis a multiple of 128.
    b, c1, c2, H, W = 2, 256, 256, 16, 16
    pool_ks = (5, 9, 13)

    x = jax.random.normal(kx, (b, c1, H, W), jnp.float32)
    prep = prepare_params(init_params(kp, c1, c2, pool_ks))

    fwd = jax.jit(functools.partial(spp_forward, pool_ks=pool_ks))
    out = jax.block_until_ready(fwd(x, prep))
    assert out.shape == (b, c2, H, W), out.shape

    ref = reference_forward(x, prep, pool_ks)
    # Tolerance covers the EUP approximate-reciprocal SiLU vs the exact divide
    # in the reference (plus bf16 rounding of the concat branches).
    np.testing.assert_allclose(np.asarray(out), np.asarray(ref),
                               rtol=2e-2, atol=2e-2)
    print("KERNEL_OK")
</pallas_src>

<mosaic_0001>
module attributes {stable_mosaic.version = 11 : i64} {
  func.func @_spp_kernel(%arg0: i32, %arg1: memref<1x256x256xbf16, #tpu.memory_space<vmem>>, %arg2: memref<256x128xbf16, #tpu.memory_space<vmem>>, %arg3: memref<1x128xf32, #tpu.memory_space<vmem>>, %arg4: memref<512x256xbf16, #tpu.memory_space<vmem>>, %arg5: memref<1x256xf32, #tpu.memory_space<vmem>>, %arg6: memref<1x256x256xf32, #tpu.memory_space<vmem>>, %arg7: memref<20x32x128xf32, #tpu.memory_space<vmem>>, %arg8: memref<256x512xbf16, #tpu.memory_space<vmem>>) attributes {dimension_semantics = [#tpu.dimension_semantics<parallel>], iteration_bounds = array<i64: 2>, scalar_prefetch = 0 : i64, scratch_operands = 2 : i64, tpu.core_type = #tpu.core_type<tc>, window_params = [{transform_indices = @transform_0, window_bounds = array<i64: 1, 256, 256>}, {pipeline_mode = #tpu.pipeline_mode<synchronous>, transform_indices = @transform_1, window_bounds = array<i64: 256, 128>}, {pipeline_mode = #tpu.pipeline_mode<synchronous>, transform_indices = @transform_2, window_bounds = array<i64: 1, 128>}, {pipeline_mode = #tpu.pipeline_mode<synchronous>, transform_indices = @transform_3, window_bounds = array<i64: 512, 256>}, {pipeline_mode = #tpu.pipeline_mode<synchronous>, transform_indices = @transform_4, window_bounds = array<i64: 1, 256>}, {transform_indices = @transform_5, window_bounds = array<i64: 1, 256, 256>}]} {
    %c0 = arith.constant 0 : index
    %c0_0 = arith.constant 0 : index
    %c0_1 = arith.constant 0 : index
    %0 = vector.load %arg1[%c0, %c0_0, %c0_1] : memref<1x256x256xbf16, #tpu.memory_space<vmem>>, vector<1x256x256xbf16>
    %1 = vector.shape_cast %0 : vector<1x256x256xbf16> to vector<256x256xbf16>
    %c0_2 = arith.constant 0 : index
    %c0_3 = arith.constant 0 : index
    %2 = vector.load %arg2[%c0_2, %c0_3] : memref<256x128xbf16, #tpu.memory_space<vmem>>, vector<256x128xbf16>
    %cst = arith.constant dense<0.000000e+00> : vector<256x128xf32>
    %3 = tpu.matmul %1, %2, %cst {dimension_numbers = #tpu.dot_dimension_numbers<[1], [0], [0], [1], [0, 0, 1, 1], [], []>} : vector<256x256xbf16>, vector<256x128xbf16>, vector<256x128xf32> -> vector<256x128xf32>
    %c0_4 = arith.constant 0 : index
    %c0_5 = arith.constant 0 : index
    %4 = vector.load %arg3[%c0_4, %c0_5] : memref<1x128xf32, #tpu.memory_space<vmem>>, vector<1x128xf32>
    %5 = vector.broadcast %4 : vector<1x128xf32> to vector<256x128xf32>
    %6 = arith.addf %3, %5 : vector<256x128xf32>
    %cst_6 = arith.constant 0.000000e+00 : f32
    %7 = vector.broadcast %cst_6 : f32 to vector<256x128xf32>
    %8 = arith.subf %7, %6 : vector<256x128xf32>
    %9 = math.exp %8 : vector<256x128xf32>
    %cst_7 = arith.constant 1.000000e+00 : f32
    %10 = vector.broadcast %cst_7 : f32 to vector<256x128xf32>
    %11 = arith.addf %10, %9 : vector<256x128xf32>
    %12 = tpu.reciprocal %11 {approx = true} : vector<256x128xf32> -> vector<256x128xf32>
    %13 = arith.mulf %6, %12 : vector<256x128xf32>
    %14 = arith.truncf %13 : vector<256x128xf32> to vector<256x128xbf16>
    %c0_8 = arith.constant 0 : index
    %c0_9 = arith.constant 0 : index
    %15 = vector.load %arg8[%c0_8, %c0_9] : memref<256x512xbf16, #tpu.memory_space<vmem>>, vector<256x128xbf16>
    tpu.vector_store %arg8[%c0_8, %c0_9], %14 {strides = array<i32>} : memref<256x512xbf16, #tpu.memory_space<vmem>>, vector<256x128xbf16>,
    %cst_10 = arith.constant -1.000000e+30 : f32
    %16 = vector.broadcast %cst_10 : f32 to vector<2x32x128xf32>
    %cst_11 = arith.constant -1.000000e+30 : f32
    %17 = vector.broadcast %cst_11 : f32 to vector<16x8x128xf32>
    %c0_12 = arith.constant 0 : index
    %c0_13 = arith.constant 0 : index
    %c0_14 = arith.constant 0 : index
    %18 = vector.load %arg7[%c0_12, %c0_13, %c0_14] : memref<20x32x128xf32, #tpu.memory_space<vmem>>, vector<2x32x128xf32>
    tpu.vector_store %arg7[%c0_12, %c0_13, %c0_14], %16 {strides = array<i32>} : memref<20x32x128xf32, #tpu.memory_space<vmem>>, vector<2x32x128xf32>,
    %c18 = arith.constant 18 : index
    %c0_15 = arith.constant 0 : index
    %c0_16 = arith.constant 0 : index
    %19 = vector.load %arg7[%c18, %c0_15, %c0_16] : memref<20x32x128xf32, #tpu.memory_space<vmem>>, vector<2x32x128xf32>
    tpu.vector_store %arg7[%c18, %c0_15, %c0_16], %16 {strides = array<i32>} : memref<20x32x128xf32, #tpu.memory_space<vmem>>, vector<2x32x128xf32>,
    %c2 = arith.constant 2 : index
    %c0_17 = arith.constant 0 : index
    %c0_18 = arith.constant 0 : index
    %20 = vector.load %arg7[%c2, %c0_17, %c0_18] : memref<20x32x128xf32, #tpu.memory_space<vmem>>, vector<16x8x128xf32>
    tpu.vector_store %arg7[%c2, %c0_17, %c0_18], %17 {strides = array<i32>} : memref<20x32x128xf32, #tpu.memory_space<vmem>>, vector<16x8x128xf32>,
    %c2_19 = arith.constant 2 : index
    %c24 = arith.constant 24 : index
    %c0_20 = arith.constant 0 : index
    %21 = vector.load %arg7[%c2_19, %c24, %c0_20] : memref<20x32x128xf32, #tpu.memory_space<vmem>>, vector<16x8x128xf32>
    tpu.vector_store %arg7[%c2_19, %c24, %c0_20], %17 {strides = array<i32>} : memref<20x32x128xf32, #tpu.memory_space<vmem>>, vector<16x8x128xf32>,
    %22 = vector.shape_cast %13 : vector<256x128xf32> to vector<16x16x128xf32>
    %c2_21 = arith.constant 2 : index
    %c8 = arith.constant 8 : index
    %c0_22 = arith.constant 0 : index
    %23 = vector.load %arg7[%c2_21, %c8, %c0_22] : memref<20x32x128xf32, #tpu.memory_space<vmem>>, vector<16x16x128xf32>
    tpu.vector_store %arg7[%c2_21, %c8, %c0_22], %22 {strides = array<i32>} : memref<20x32x128xf32, #tpu.memory_space<vmem>>, vector<16x16x128xf32>,
    %c0_23 = arith.constant 0 : index
    %c6 = arith.constant 6 : index
    %c0_24 = arith.constant 0 : index
    %24 = vector.load %arg7[%c0_23, %c6, %c0_24] : memref<20x32x128xf32, #tpu.memory_space<vmem>>, vector<20x16x128xf32>
    %c0_25 = arith.constant 0 : index
    %c7 = arith.constant 7 : index
    %c0_26 = arith.constant 0 : index
    %25 = vector.load %arg7[%c0_25, %c7, %c0_26] : memref<20x32x128xf32, #tpu.memory_space<vmem>>, vector<20x16x128xf32>
    %26 = arith.maximumf %24, %25 : vector<20x16x128xf32>
    %c0_27 = arith.constant 0 : index
    %c8_28 = arith.constant 8 : index
    %c0_29 = arith.constant 0 : index
    %27 = vector.load %arg7[%c0_27, %c8_28, %c0_29] : memref<20x32x128xf32, #tpu.memory_space<vmem>>, vector<20x16x128xf32>
    %28 = arith.maximumf %26, %27 : vector<20x16x128xf32>
    %c0_30 = arith.constant 0 : index
    %c9 = arith.constant 9 : index
    %c0_31 = arith.constant 0 : index
    %29 = vector.load %arg7[%c0_30, %c9, %c0_31] : memref<20x32x128xf32, #tpu.memory_space<vmem>>, vector<20x16x128xf32>
    %30 = arith.maximumf %28, %29 : vector<20x16x128xf32>
    %c0_32 = arith.constant 0 : index
    %c10 = arith.constant 10 : index
    %c0_33 = arith.constant 0 : index
    %31 = vector.load %arg7[%c0_32, %c10, %c0_33] : memref<20x32x128xf32, #tpu.memory_space<vmem>>, vector<20x16x128xf32>
    %32 = arith.maximumf %30, %31 : vector<20x16x128xf32>
    %33 = vector.extract_strided_slice %32 {offsets = [0, 0, 0], sizes = [16, 16, 128], strides = [1, 1, 1]} : vector<20x16x128xf32> to vector<16x16x128xf32>
    %34 = vector.extract_strided_slice %32 {offsets = [1, 0, 0], sizes = [16, 16, 128], strides = [1, 1, 1]} : vector<20x16x128xf32> to vector<16x16x128xf32>
    %35 = arith.maximumf %33, %34 : vector<16x16x128xf32>
    %36 = vector.extract_strided_slice %32 {offsets = [2, 0, 0], sizes = [16, 16, 128], strides = [1, 1, 1]} : vector<20x16x128xf32> to vector<16x16x128xf32>
    %37 = arith.maximumf %35, %36 : vector<16x16x128xf32>
    %38 = vector.extract_strided_slice %32 {offsets = [3, 0, 0], sizes = [16, 16, 128], strides = [1, 1, 1]} : vector<20x16x128xf32> to vector<16x16x128xf32>
    %39 = arith.maximumf %37, %38 : vector<16x16x128xf32>
    %40 = vector.extract_strided_slice %32 {offsets = [4, 0, 0], sizes = [16, 16, 128], strides = [1, 1, 1]} : vector<20x16x128xf32> to vector<16x16x128xf32>
    %41 = arith.maximumf %39, %40 : vector<16x16x128xf32>
    %c2_34 = arith.constant 2 : index
    %c8_35 = arith.constant 8 : index
    %c0_36 = arith.constant 0 : index
    %42 = vector.load %arg7[%c2_34, %c8_35, %c0_36] : memref<20x32x128xf32, #tpu.memory_space<vmem>>, vector<16x16x128xf32>
    tpu.vector_store %arg7[%c2_34, %c8_35, %c0_36], %41 {strides = array<i32>} : memref<20x32x128xf32, #tpu.memory_space<vmem>>, vector<16x16x128xf32>,
    %43 = vector.shape_cast %41 : vector<16x16x128xf32> to vector<256x128xf32>
    %44 = arith.truncf %43 : vector<256x128xf32> to vector<256x128xbf16>
    %c0_37 = arith.constant 0 : index
    %c128 = arith.constant 128 : index
    %45 = vector.load %arg8[%c0_37, %c128] : memref<256x512xbf16, #tpu.memory_space<vmem>>, vector<256x128xbf16>
    tpu.vector_store %arg8[%c0_37, %c128], %44 {strides = array<i32>} : memref<256x512xbf16, #tpu.memory_space<vmem>>, vector<256x128xbf16>,
    %c0_38 = arith.constant 0 : index
    %c6_39 = arith.constant 6 : index
    %c0_40 = arith.constant 0 : index
    %46 = vector.load %arg7[%c0_38, %c6_39, %c0_40] : memref<20x32x128xf32, #tpu.memory_space<vmem>>, vector<20x16x128xf32>
    %c0_41 = arith.constant 0 : index
    %c7_42 = arith.constant 7 : index
    %c0_43 = arith.constant 0 : index
    %47 = vector.load %arg7[%c0_41, %c7_42, %c0_43] : memref<20x32x128xf32, #tpu.memory_space<vmem>>, vector<20x16x128xf32>
    %48 = arith.maximumf %46, %47 : vector<20x16x128xf32>
    %c0_44 = arith.constant 0 : index
    %c8_45 = arith.constant 8 : index
    %c0_46 = arith.constant 0 : index
    %49 = vector.load %arg7[%c0_44, %c8_45, %c0_46] : memref<20x32x128xf32, #tpu.memory_space<vmem>>, vector<20x16x128xf32>
    %50 = arith.maximumf %48, %49 : vector<20x16x128xf32>
    %c0_47 = arith.constant 0 : index
    %c9_48 = arith.constant 9 : index
    %c0_49 = arith.constant 0 : index
    %51 = vector.load %arg7[%c0_47, %c9_48, %c0_49] : memref<20x32x128xf32, #tpu.memory_space<vmem>>, vector<20x16x128xf32>
    %52 = arith.maximumf %50, %51 : vector<20x16x128xf32>
    %c0_50 = arith.constant 0 : index
    %c10_51 = arith.constant 10 : index
    %c0_52 = arith.constant 0 : index
    %53 = vector.load %arg7[%c0_50, %c10_51, %c0_52] : memref<20x32x128xf32, #tpu.memory_space<vmem>>, vector<20x16x128xf32>
    %54 = arith.maximumf %52, %53 : vector<20x16x128xf32>
    %55 = vector.extract_strided_slice %54 {offsets = [0, 0, 0], sizes = [16, 16, 128], strides = [1, 1, 1]} : vector<20x16x128xf32> to vector<16x16x128xf32>
    %56 = vector.extract_strided_slice %54 {offsets = [1, 0, 0], sizes = [16, 16, 128], strides = [1, 1, 1]} : vector<20x16x128xf32> to vector<16x16x128xf32>
    %57 = arith.maximumf %55, %56 : vector<16x16x128xf32>
    %58 = vector.extract_strided_slice %54 {offsets = [2, 0, 0], sizes = [16, 16, 128], strides = [1, 1, 1]} : vector<20x16x128xf32> to vector<16x16x128xf32>
    %59 = arith.maximumf %57, %58 : vector<16x16x128xf32>
    %60 = vector.extract_strided_slice %54 {offsets = [3, 0, 0], sizes = [16, 16, 128], strides = [1, 1, 1]} : vector<20x16x128xf32> to vector<16x16x128xf32>
    %61 = arith.maximumf %59, %60 : vector<16x16x128xf32>
    %62 = vector.extract_strided_slice %54 {offsets = [4, 0, 0], sizes = [16, 16, 128], strides = [1, 1, 1]} : vector<20x16x128xf32> to vector<16x16x128xf32>
    %63 = arith.maximumf %61, %62 : vector<16x16x128xf32>
    %c2_53 = arith.constant 2 : index
    %c8_54 = arith.constant 8 : index
    %c0_55 = arith.constant 0 : index
    %64 = vector.load %arg7[%c2_53, %c8_54, %c0_55] : memref<20x32x128xf32, #tpu.memory_space<vmem>>, vector<16x16x128xf32>
    tpu.vector_store %arg7[%c2_53, %c8_54, %c0_55], %63 {strides = array<i32>} : memref<20x32x128xf32, #tpu.memory_space<vmem>>, vector<16x16x128xf32>,
    %65 = vector.shape_cast %63 : vector<16x16x128xf32> to vector<256x128xf32>
    %66 = arith.truncf %65 : vector<256x128xf32> to vector<256x128xbf16>
    %c0_56 = arith.constant 0 : index
    %c256 = arith.constant 256 : index
    %67 = vector.load %arg8[%c0_56, %c256] : memref<256x512xbf16, #tpu.memory_space<vmem>>, vector<256x128xbf16>
    tpu.vector_store %arg8[%c0_56, %c256], %66 {strides = array<i32>} : memref<256x512xbf16, #tpu.memory_space<vmem>>, vector<256x128xbf16>,
    %c0_57 = arith.constant 0 : index
    %c6_58 = arith.constant 6 : index
    %c0_59 = arith.constant 0 : index
    %68 = vector.load %arg7[%c0_57, %c6_58, %c0_59] : memref<20x32x128xf32, #tpu.memory_space<vmem>>, vector<20x16x128xf32>
    %c0_60 = arith.constant 0 : index
    %c7_61 = arith.constant 7 : index
    %c0_62 = arith.constant 0 : index
    %69 = vector.load %arg7[%c0_60, %c7_61, %c0_62] : memref<20x32x128xf32, #tpu.memory_space<vmem>>, vector<20x16x128xf32>
    %70 = arith.maximumf %68, %69 : vector<20x16x128xf32>
    %c0_63 = arith.constant 0 : index
    %c8_64 = arith.constant 8 : index
    %c0_65 = arith.constant 0 : index
    %71 = vector.load %arg7[%c0_63, %c8_64, %c0_65] : memref<20x32x128xf32, #tpu.memory_space<vmem>>, vector<20x16x128xf32>
    %72 = arith.maximumf %70, %71 : vector<20x16x128xf32>
    %c0_66 = arith.constant 0 : index
    %c9_67 = arith.constant 9 : index
    %c0_68 = arith.constant 0 : index
    %73 = vector.load %arg7[%c0_66, %c9_67, %c0_68] : memref<20x32x128xf32, #tpu.memory_space<vmem>>, vector<20x16x128xf32>
    %74 = arith.maximumf %72, %73 : vector<20x16x128xf32>
    %c0_69 = arith.constant 0 : index
    %c10_70 = arith.constant 10 : index
    %c0_71 = arith.constant 0 : index
    %75 = vector.load %arg7[%c0_69, %c10_70, %c0_71] : memref<20x32x128xf32, #tpu.memory_space<vmem>>, vector<20x16x128xf32>
    %76 = arith.maximumf %74, %75 : vector<20x16x128xf32>
    %77 = vector.extract_strided_slice %76 {offsets = [0, 0, 0], sizes = [16, 16, 128], strides = [1, 1, 1]} : vector<20x16x128xf32> to vector<16x16x128xf32>
    %78 = vector.extract_strided_slice %76 {offsets = [1, 0, 0], sizes = [16, 16, 128], strides = [1, 1, 1]} : vector<20x16x128xf32> to vector<16x16x128xf32>
    %79 = arith.maximumf %77, %78 : vector<16x16x128xf32>
    %80 = vector.extract_strided_slice %76 {offsets = [2, 0, 0], sizes = [16, 16, 128], strides = [1, 1, 1]} : vector<20x16x128xf32> to vector<16x16x128xf32>
    %81 = arith.maximumf %79, %80 : vector<16x16x128xf32>
    %82 = vector.extract_strided_slice %76 {offsets = [3, 0, 0], sizes = [16, 16, 128], strides = [1, 1, 1]} : vector<20x16x128xf32> to vector<16x16x128xf32>
    %83 = arith.maximumf %81, %82 : vector<16x16x128xf32>
    %84 = vector.extract_strided_slice %76 {offsets = [4, 0, 0], sizes = [16, 16, 128], strides = [1, 1, 1]} : vector<20x16x128xf32> to vector<16x16x128xf32>
    %85 = arith.maximumf %83, %84 : vector<16x16x128xf32>
    %86 = vector.shape_cast %85 : vector<16x16x128xf32> to vector<256x128xf32>
    %87 = arith.truncf %86 : vector<256x128xf32> to vector<256x128xbf16>
    %c0_72 = arith.constant 0 : index
    %c384 = arith.constant 384 : index
    %88 = vector.load %arg8[%c0_72, %c384] : memref<256x512xbf16, #tpu.memory_space<vmem>>, vector<256x128xbf16>
    tpu.vector_store %arg8[%c0_72, %c384], %87 {strides = array<i32>} : memref<256x512xbf16, #tpu.memory_space<vmem>>, vector<256x128xbf16>,
    %c0_73 = arith.constant 0 : index
    %c0_74 = arith.constant 0 : index
    %89 = vector.load %arg8[%c0_73, %c0_74] : memref<256x512xbf16, #tpu.memory_space<vmem>>, vector<256x512xbf16>
    %c0_75 = arith.constant 0 : index
    %c0_76 = arith.constant 0 : index
    %90 = vector.load %arg4[%c0_75, %c0_76] : memref<512x256xbf16, #tpu.memory_space<vmem>>, vector<512x256xbf16>
    %cst_77 = arith.constant dense<0.000000e+00> : vector<256x256xf32>
    %91 = tpu.matmul %89, %90, %cst_77 {dimension_numbers = #tpu.dot_dimension_numbers<[1], [0], [0], [1], [0, 0, 1, 1], [], []>} : vector<256x512xbf16>, vector<512x256xbf16>, vector<256x256xf32> -> vector<256x256xf32>
    %c0_78 = arith.constant 0 : index
    %c0_79 = arith.constant 0 : index
    %92 = vector.load %arg5[%c0_78, %c0_79] : memref<1x256xf32, #tpu.memory_space<vmem>>, vector<1x256xf32>
    %93 = vector.broadcast %92 : vector<1x256xf32> to vector<256x256xf32>
    %94 = arith.addf %91, %93 : vector<256x256xf32>
    %cst_80 = arith.constant 0.000000e+00 : f32
    %95 = vector.broadcast %cst_80 : f32 to vector<256x256xf32>
    %96 = arith.subf %95, %94 : vector<256x256xf32>
    %97 = math.exp %96 : vector<256x256xf32>
    %cst_81 = arith.constant 1.000000e+00 : f32
    %98 = vector.broadcast %cst_81 : f32 to vector<256x256xf32>
    %99 = arith.addf %98, %97 : vector<256x256xf32>
    %100 = tpu.reciprocal %99 {approx = true} : vector<256x256xf32> -> vector<256x256xf32>
    %101 = arith.mulf %94, %100 : vector<256x256xf32>
    %c0_82 = arith.constant 0 : index
    %c0_83 = arith.constant 0 : index
    %c0_84 = arith.constant 0 : index
    %102 = vector.load %arg6[%c0_82, %c0_83, %c0_84] : memref<1x256x256xf32, #tpu.memory_space<vmem>>, vector<1x256x256xf32>
    %103 = vector.shape_cast %102 : vector<1x256x256xf32> to vector<256x256xf32>
    %104 = vector.shape_cast %101 : vector<256x256xf32> to vector<1x256x256xf32>
    tpu.vector_store %arg6[%c0_82, %c0_83, %c0_84], %104 {strides = array<i32>} : memref<1x256x256xf32, #tpu.memory_space<vmem>>, vector<1x256x256xf32>,
    return
  }
  func.func @transform_0(%arg0: i32) -> (i32, i32, i32) {
    %c0_i32 = arith.constant 0 : i32
    %c0_i32_0 = arith.constant 0 : i32
    %c0_i32_1 = arith.constant 0 : i32
    return %arg0, %c0_i32, %c0_i32_0 : i32, i32, i32
  }
  func.func @transform_1(%arg0: i32) -> (i32, i32) {
    %c0_i32 = arith.constant 0 : i32
    %c0_i32_0 = arith.constant 0 : i32
    %c0_i32_1 = arith.constant 0 : i32
    return %c0_i32, %c0_i32_0 : i32, i32
  }
  func.func @transform_2(%arg0: i32) -> (i32, i32) {
    %c0_i32 = arith.constant 0 : i32
    %c0_i32_0 = arith.constant 0 : i32
    %c0_i32_1 = arith.constant 0 : i32
    return %c0_i32, %c0_i32_0 : i32, i32
  }
  func.func @transform_3(%arg0: i32) -> (i32, i32) {
    %c0_i32 = arith.constant 0 : i32
    %c0_i32_0 = arith.constant 0 : i32
    %c0_i32_1 = arith.constant 0 : i32
    return %c0_i32, %c0_i32_0 : i32, i32
  }
  func.func @transform_4(%arg0: i32) -> (i32, i32) {
    %c0_i32 = arith.constant 0 : i32
    %c0_i32_0 = arith.constant 0 : i32
    %c0_i32_1 = arith.constant 0 : i32
    return %c0_i32, %c0_i32_0 : i32, i32
  }
  func.func @transform_5(%arg0: i32) -> (i32, i32, i32) {
    %c0_i32 = arith.constant 0 : i32
    %c0_i32_0 = arith.constant 0 : i32
    %c0_i32_1 = arith.constant 0 : i32
    return %arg0, %c0_i32, %c0_i32_0 : i32, i32, i32
  }
}

</mosaic_0001>

<llo_original>
// kernel: spp_forward.1
$region0: #{spp_forward.1}
  #allocation0 [shape = 'u32[]', space=smem, size = 0x4, offset = 0x4, fixed_abs, tag = 'smem constant byte address 0x4 - core index']
  #allocation1 [shape = 'u32[144,128]{1,0:T(1,128)}', space=vmem, size = 0x12000, scoped, tag = 'internal scratch']
  #allocation2 [shape = 'f32[20,32,128]{2,1,0:T(8,128)}', space=vmem, size = 0x50000, scoped, tag = 'scratch operand']
  #allocation3 [shape = 'bf16[256,512]{1,0:T(16,128)(2,1)}', space=vmem, size = 0x40000, scoped, tag = 'scratch operand']
  %s0 = inlined_call_operand.vmem [shape: bf16[2,256,256], index: 0, kind: input, shape index: {}]
  %s1 = inlined_call_operand.vmem [shape: bf16[256,128], index: 1, kind: input, shape index: {}]
  %s2 = inlined_call_operand.vmem [shape: f32[1,128], index: 2, kind: input, shape index: {}]
  %s3 = inlined_call_operand.vmem [shape: bf16[512,256], index: 3, kind: input, shape index: {}]
  %s4 = inlined_call_operand.vmem [shape: f32[1,256], index: 4, kind: input, shape index: {}]
  %s5 = inlined_call_operand.hbm [shape: f32[2,256,256], index: 5, kind: output, shape index: {}]
  %s6 = sld [smem:[#allocation0]]
  $region53: #{spp_forward.1} parent=0
    _
  %s8 = ssub.s32 1, %s6
  %s9 = scalar_select 0, %s8, %s6
  $region1: #{spp_forward.1} parent=0
    #allocation4 [shape = 'u8[524288]{0}', space=vmem, size = 0x80000, scoped, tag = 'output window, operand 0']
    #allocation5 [shape = 's32[2]{0}', space=sflag, size = 0x8, scoped, tag = 'scoped memory for spp_forward.1']
    %10 = vsyncpa [#allocation5], 0
    %s11 = scalar_lea.sflag [#allocation5], 1
    %12 = vsyncpa %s11, 0
    loop: start=0, step=1, limit=4
    $region2: #{spp_forward.1} parent=1 // loop_pre_header
      _
    $region3: #{spp_forward.1} parent=1 // loop_header
      %s14 = sphi 0, %s18
      %p15 = scmp.ge.s32.totalorder %s14, 4
      %s24 = sphi 0, %s26
      %s27 = sphi 0, %s24
      %s28 = sphi 0, %s27
      %s44 = sphi 0, %s28
      %s48 = sphi 0, %s48
      %s50 = sphi 0, %s48
      %s51 = sphi 0, %s50
      %s65 = sphi 0, %s51
      %s69 = sphi 0, %s69
      %s71 = sphi 0, %s69
      %s72 = sphi 0, %s71
      %s86 = sphi 0, %s72
      %s90 = sphi 0, %s90
      %s92 = sphi 0, %s90
      %s93 = sphi 0, %s92
      %s107 = sphi 0, %s93
      %s111 = sphi 0, %s111
      %s113 = sphi 0, %s111
      %s114 = sphi 0, %s113
      %s128 = sphi 0, %s114
      %s134 = sphi 0, %s136
      %s137 = sphi 0, %s134
      %s138 = sphi 0, %s137
      %s154 = sphi 0, %s138
    $region4: #{spp_forward.1} parent=1 // loop_header_branch
      %17 = sbr.rel (%p15) target = $region8
    $region5: #{spp_forward.1} parent=1 // loop_body
      %s19 = ssub.s32 %s14, 1
      %s20 = ssub.s32 %s14, 2
      %s21 = sadd.s32 %s14, 1
      %s22 = ssub.s32 %s14, %s21
      %p23 = scmp.eq.s32.totalorder %s22, 0
      %s25 = sadd.s32 %s24, 1
      %s26 = scalar_select %p23, %s24, %s25
      %p29 = pneg %p23
      %p30 = scmp.eq.s32.totalorder %s14, 1
      %p31 = por %p29, %p30
      %p32 = scmp.ne.s32.totalorder %s24, %s27
      %p33 = scmp.eq.s32.totalorder %s14, 0
      %p34 = por %p32, %p33
      %p35 = scmp.ne.s32.totalorder %s24, %s27
      %p36 = scmp.eq.s32.totalorder %s19, 1
      %p37 = por %p35, %p36
      %p38 = scmp.ne.s32.totalorder %s27, %s28
      %p39 = scmp.eq.s32.totalorder %s19, 0
      %p40 = por %p38, %p39
      %p41 = scmp.ne.s32.totalorder %s27, %s28
      %p42 = scmp.eq.s32.totalorder %s20, 1
      %p43 = por %p41, %p42
      %p45 = scmp.ne.s32.totalorder %s28, %s44
      %p46 = scmp.eq.s32.totalorder %s20, 0
      %p47 = por %p45, %p46
      %s49 = sadd.s32 %s48, 1
      %p52 = scmp.eq.s32.totalorder %s14, 1
      %p53 = scmp.ne.s32.totalorder %s48, %s50
      %p54 = scmp.eq.s32.totalorder %s14, 0
      %p55 = por %p53, %p54
      %p56 = scmp.ne.s32.totalorder %s48, %s50
      %p57 = scmp.eq.s32.totalorder %s19, 1
      %p58 = por %p56, %p57
      %p59 = scmp.ne.s32.totalorder %s50, %s51
      %p60 = scmp.eq.s32.totalorder %s19, 0
      %p61 = por %p59, %p60
      %p62 = scmp.ne.s32.totalorder %s50, %s51
      %p63 = scmp.eq.s32.totalorder %s20, 1
      %p64 = por %p62, %p63
      %p66 = scmp.ne.s32.totalorder %s51, %s65
      %p67 = scmp.eq.s32.totalorder %s20, 0
      %p68 = por %p66, %p67
      %s70 = sadd.s32 %s69, 1
      %p73 = scmp.eq.s32.totalorder %s14, 1
      %p74 = scmp.ne.s32.totalorder %s69, %s71
      %p75 = scmp.eq.s32.totalorder %s14, 0
      %p76 = por %p74, %p75
      %p77 = scmp.ne.s32.totalorder %s69, %s71
      %p78 = scmp.eq.s32.totalorder %s19, 1
      %p79 = por %p77, %p78
      %p80 = scmp.ne.s32.totalorder %s71, %s72
      %p81 = scmp.eq.s32.totalorder %s19, 0
      %p82 = por %p80, %p81
      %p83 = scmp.ne.s32.totalorder %s71, %s72
      %p84 = scmp.eq.s32.totalorder %s20, 1
      %p85 = por %p83, %p84
      %p87 = scmp.ne.s32.totalorder %s72, %s86
      %p88 = scmp.eq.s32.totalorder %s20, 0
      %p89 = por %p87, %p88
      %s91 = sadd.s32 %s90, 1
      %p94 = scmp.eq.s32.totalorder %s14, 1
      %p95 = scmp.ne.s32.totalorder %s90, %s92
      %p96 = scmp.eq.s32.totalorder %s14, 0
      %p97 = por %p95, %p96
      %p98 = scmp.ne.s32.totalorder %s90, %s92
      %p99 = scmp.eq.s32.totalorder %s19, 1
      %p100 = por %p98, %p99
      %p101 = scmp.ne.s32.totalorder %s92, %s93
      %p102 = scmp.eq.s32.totalorder %s19, 0
      %p103 = por %p101, %p102
      %p104 = scmp.ne.s32.totalorder %s92, %s93
      %p105 = scmp.eq.s32.totalorder %s20, 1
      %p106 = por %p104, %p105
      %p108 = scmp.ne.s32.totalorder %s93, %s107
      %p109 = scmp.eq.s32.totalorder %s20, 0
      %p110 = por %p108, %p109
      %s112 = sadd.s32 %s111, 1
      %p115 = scmp.eq.s32.totalorder %s14, 1
      %p116 = scmp.ne.s32.totalorder %s111, %s113
      %p117 = scmp.eq.s32.totalorder %s14, 0
      %p118 = por %p116, %p117
      %p119 = scmp.ne.s32.totalorder %s111, %s113
      %p120 = scmp.eq.s32.totalorder %s19, 1
      %p121 = por %p119, %p120
      %p122 = scmp.ne.s32.totalorder %s113, %s114
      %p123 = scmp.eq.s32.totalorder %s19, 0
      %p124 = por %p122, %p123
      %p125 = scmp.ne.s32.totalorder %s113, %s114
      %p126 = scmp.eq.s32.totalorder %s20, 1
      %p127 = por %p125, %p126
      %p129 = scmp.ne.s32.totalorder %s114, %s128
      %p130 = scmp.eq.s32.totalorder %s20, 0
      %p131 = por %p129, %p130
      %s132 = ssub.s32 %s14, %s21
      %p133 = scmp.eq.s32.totalorder %s132, 0
      %s135 = sadd.s32 %s134, 1
      %s136 = scalar_select %p133, %s134, %s135
      %p139 = pneg %p133
      %p140 = scmp.eq.s32.totalorder %s14, 1
      %p141 = por %p139, %p140
      %p142 = scmp.ne.s32.totalorder %s134, %s137
      %p143 = scmp.eq.s32.totalorder %s14, 0
      %p144 = por %p142, %p143
      %p145 = scmp.ne.s32.totalorder %s134, %s137
      %p146 = scmp.eq.s32.totalorder %s19, 1
      %p147 = por %p145, %p146
      %p148 = scmp.ne.s32.totalorder %s137, %s138
      %p149 = scmp.eq.s32.totalorder %s19, 0
      %p150 = por %p148, %p149
      %p151 = scmp.ne.s32.totalorder %s137, %s138
      %p152 = scmp.eq.s32.totalorder %s20, 1
      %p153 = por %p151, %p152
      %p155 = scmp.ne.s32.totalorder %s138, %s154
      %p156 = scmp.eq.s32.totalorder %s20, 0
      %p157 = por %p155, %p156
      %p158 = scmp.le.s32.totalorder 1, %s14
      %p159 = scmp.lt.s32.totalorder %s14, 3
      %p160 = pnand %p158, %p159
      %p161 = pneg %p160
      // Predicated region
      $region9: #{spp_forward.1} parent=5 // pred_check
        _
      $region10: #{spp_forward.1} parent=5 // pred_check_branch
        %163 = sbr.rel (%p160) target = $region12
      $region11: #{spp_forward.1} parent=5 // pred_region
        %s164 = ssub.s32 %s14, 1
        // Predicated region
        $region13: #{spp_forward.1} parent=11 // pred_check
          %p165 = pneg %p61
        $region14: #{spp_forward.1} parent=11 // pred_check_branch
          %167 = sbr.rel (%p165) target = $region16
        $region15: #{spp_forward.1} parent=11 // pred_region
          _
        $region16: #{spp_forward.1} parent=11 // pred_fallthru
          _
        // Predicated region
        $region17: #{spp_forward.1} parent=11 // pred_check
          %p168 = pneg %p82
        $region18: #{spp_forward.1} parent=11 // pred_check_branch
          %170 = sbr.rel (%p168) target = $region20
        $region19: #{spp_forward.1} parent=11 // pred_region
          _
        $region20: #{spp_forward.1} parent=11 // pred_fallthru
          _
        // Predicated region
        $region21: #{spp_forward.1} parent=11 // pred_check
          %p171 = pneg %p103
        $region22: #{spp_forward.1} parent=11 // pred_check_branch
          %173 = sbr.rel (%p171) target = $region24
        $region23: #{spp_forward.1} parent=11 // pred_region
          _
        $region24: #{spp_forward.1} parent=11 // pred_fallthru
          _
        // Predicated region
        $region25: #{spp_forward.1} parent=11 // pred_check
          %p174 = pneg %p124
        $region26: #{spp_forward.1} parent=11 // pred_check_branch
          %176 = sbr.rel (%p174) target = $region28
        $region27: #{spp_forward.1} parent=11 // pred_region
          _
        $region28: #{spp_forward.1} parent=11 // pred_fallthru
          _
      $region12: #{spp_forward.1} parent=5 // pred_fallthru
        _
      %p177 = scmp.lt.s32.totalorder %s14, 2
      // Predicated region
      $region29: #{spp_forward.1} parent=5 // pred_check
        %p178 = pneg %p177
      $region30: #{spp_forward.1} parent=5 // pred_check_branch
        %180 = sbr.rel (%p178) target = $region32
      $region31: #{spp_forward.1} parent=5 // pred_region
        // Predicated region
        $region33: #{spp_forward.1} parent=31 // pred_check
          %p181 = pneg %p34
        $region34: #{spp_forward.1} parent=31 // pred_check_branch
          %183 = sbr.rel (%p181) target = $region36
        $region35: #{spp_forward.1} parent=31 // pred_region
          %p184 = scmp.lt.s32.totalorder %s14, 1
          %s185 = scalar_select %p184, %s14, 1
          %s186 = smul.addr %s185, 64
          %s187 = smul.addr %s186, 4
          %s188 = scalar_lea.vmem %s0, %s187
        $region36: #{spp_forward.1} parent=31 // pred_fallthru
          _
      $region32: #{spp_forward.1} parent=5 // pred_fallthru
        _
      %p189 = scmp.le.s32.totalorder 1, %s14
      %p190 = scmp.lt.s32.totalorder %s14, 3
      %p191 = pnand %p189, %p190
      %p192 = pneg %p191
      // Predicated region
      $region37: #{spp_forward.1} parent=5 // pred_check
        _
      $region38: #{spp_forward.1} parent=5 // pred_check_branch
        %194 = sbr.rel (%p191) target = $region40
      $region39: #{spp_forward.1} parent=5 // pred_region
        %s195 = ssub.s32 %s14, 1
        %p196 = scmp.lt.s32.totalorder %s19, 1
        %s197 = scalar_select %p196, %s19, 1
        %s198 = smul.addr %s197, 64
        %s199 = smul.addr %s198, 4
        %s200 = scalar_lea.vmem %s0, %s199
        %p201 = pneg %p40
        %p202 = pneg %p37
        %p203 = pneg %p61
        %p204 = pneg %p58
        %p205 = pneg %p82
        %p206 = pneg %p79
        %p207 = pneg %p103
        %p208 = pneg %p100
        %p209 = pneg %p124
        %p210 = pneg %p121
        %p211 = pneg %p150
        %p212 = pneg %p147
        %s213 = sand.u32 %s137, 1
        %s214 = scalar_lea.sflag [#allocation5], %s213
        %s215 = sand.u32 %s137, 1
        %s216 = smul.addr %s215, 512
        %s217 = scalar_lea.vmem [#allocation4], %s216
        %p218 = scmp.lt.s32.totalorder %s19, 1
        %s219 = scalar_select %p218, %s19, 1
        %s220 = smul.addr %s219, 64
        %s221 = smul.addr %s220, 4
        %s222 = scalar_lea.vmem %s0, %s221
        %v224 = vld [vmem:[%s222] sm:$0xff]
        %v225 = vld [vmem:[%s222 + $0x8] sm:$0xff]
        %v226 = vld [vmem:[%s222 + $0x10] sm:$0xff]
        %v227 = vld [vmem:[%s222 + $0x18] sm:$0xff]
        %v228 = vld [vmem:[%s222 + $0x20] sm:$0xff]
        %v229 = vld [vmem:[%s222 + $0x28] sm:$0xff]
        %v230 = vld [vmem:[%s222 + $0x30] sm:$0xff]
        %v231 = vld [vmem:[%s222 + $0x38] sm:$0xff]
        %v232 = vld [vmem:[%s222 + $0x40] sm:$0xff]
        %v233 = vld [vmem:[%s222 + $0x48] sm:$0xff]
        %v234 = vld [vmem:[%s222 + $0x50] sm:$0xff]
        %v235 = vld [vmem:[%s222 + $0x58] sm:$0xff]
        %v236 = vld [vmem:[%s222 + $0x60] sm:$0xff]
        %v237 = vld [vmem:[%s222 + $0x68] sm:$0xff]
        %v238 = vld [vmem:[%s222 + $0x70] sm:$0xff]
        %v239 = vld [vmem:[%s222 + $0x78] sm:$0xff]
        %v240 = vld [vmem:[%s222 + $0x80] sm:$0xff]
        %v241 = vld [vmem:[%s222 + $0x88] sm:$0xff]
        %v242 = vld [vmem:[%s222 + $0x90] sm:$0xff]
        %v243 = vld [vmem:[%s222 + $0x98] sm:$0xff]
        %v244 = vld [vmem:[%s222 + $0xa0] sm:$0xff]
        %v245 = vld [vmem:[%s222 + $0xa8] sm:$0xff]
        %v246 = vld [vmem:[%s222 + $0xb0] sm:$0xff]
        %v247 = vld [vmem:[%s222 + $0xb8] sm:$0xff]
        %v248 = vld [vmem:[%s222 + $0xc0] sm:$0xff]
        %v249 = vld [vmem:[%s222 + $0xc8] sm:$0xff]
        %v250 = vld [vmem:[%s222 + $0xd0] sm:$0xff]
        %v251 = vld [vmem:[%s222 + $0xd8] sm:$0xff]
        %v252 = vld [vmem:[%s222 + $0xe0] sm:$0xff]
        %v253 = vld [vmem:[%s222 + $0xe8] sm:$0xff]
        %v254 = vld [vmem:[%s222 + $0xf0] sm:$0xff]
        %v255 = vld [vmem:[%s222 + $0xf8] sm:$0xff]
        %v256 = vld [vmem:[%s1] sm:$0xf]
        %v257 = vld [vmem:[%s1 + $0x4] sm:$0xf]
        %v258 = vld [vmem:[%s1 + $0x8] sm:$0xf]
        %v259 = vld [vmem:[%s1 + $0xc] sm:$0xf]
        %v260 = vld [vmem:[%s1 + $0x10] sm:$0xf]
        %v261 = vld [vmem:[%s1 + $0x14] sm:$0xf]
        %v262 = vld [vmem:[%s1 + $0x18] sm:$0xf]
        %v263 = vld [vmem:[%s1 + $0x1c] sm:$0xf]
        %v264 = vld [vmem:[%s1 + $0x20] sm:$0xf]
        %v265 = vld [vmem:[%s1 + $0x24] sm:$0xf]
        %v266 = vld [vmem:[%s1 + $0x28] sm:$0xf]
        %v267 = vld [vmem:[%s1 + $0x2c] sm:$0xf]
        %v268 = vld [vmem:[%s1 + $0x30] sm:$0xf]
        %v269 = vld [vmem:[%s1 + $0x34] sm:$0xf]
        %v270 = vld [vmem:[%s1 + $0x38] sm:$0xf]
        %v271 = vld [vmem:[%s1 + $0x3c] sm:$0xf]
        %v272 = vld [vmem:[%s1 + $0x40] sm:$0xf]
        %v273 = vld [vmem:[%s1 + $0x44] sm:$0xf]
        %v274 = vld [vmem:[%s1 + $0x48] sm:$0xf]
        %v275 = vld [vmem:[%s1 + $0x4c] sm:$0xf]
        %v276 = vld [vmem:[%s1 + $0x50] sm:$0xf]
        %v277 = vld [vmem:[%s1 + $0x54] sm:$0xf]
        %v278 = vld [vmem:[%s1 + $0x58] sm:$0xf]
        %v279 = vld [vmem:[%s1 + $0x5c] sm:$0xf]
        %v280 = vld [vmem:[%s1 + $0x60] sm:$0xf]
        %v281 = vld [vmem:[%s1 + $0x64] sm:$0xf]
        %v282 = vld [vmem:[%s1 + $0x68] sm:$0xf]
        %v283 = vld [vmem:[%s1 + $0x6c] sm:$0xf]
        %v284 = vld [vmem:[%s1 + $0x70] sm:$0xf]
        %v285 = vld [vmem:[%s1 + $0x74] sm:$0xf]
        %v286 = vld [vmem:[%s1 + $0x78] sm:$0xf]
        %v287 = vld [vmem:[%s1 + $0x7c] sm:$0xf]
        %v288 = vld [vmem:[%s2] sm:$0x1]
        %v290 = vlaneseq
        %v291 = vshrl.u32 %v290, 7
        %v292 = vsub.s32 0, %v291
        %v293 = vrot.slane %v288, %v292
        %v327 = vunpack.c.l.b16 %v224
        %v328 = vunpack.c.h.b16 %v224
        %v329 = vunpack.c.l.b16 %v225
        %v330 = vunpack.c.h.b16 %v225
        %v331 = vunpack.c.l.b16 %v226
        %v332 = vunpack.c.h.b16 %v226
        %v333 = vunpack.c.l.b16 %v227
        %v334 = vunpack.c.h.b16 %v227
        %v335 = vunpack.c.l.b16 %v228
        %v336 = vunpack.c.h.b16 %v228
        %v337 = vunpack.c.l.b16 %v229
        %v338 = vunpack.c.h.b16 %v229
        %v339 = vunpack.c.l.b16 %v230
        %v340 = vunpack.c.h.b16 %v230
        %v341 = vunpack.c.l.b16 %v231
        %v342 = vunpack.c.h.b16 %v231
        %v343 = vunpack.c.l.b16 %v232
        %v344 = vunpack.c.h.b16 %v232
        %v345 = vunpack.c.l.b16 %v233
        %v346 = vunpack.c.h.b16 %v233
        %v347 = vunpack.c.l.b16 %v234
        %v348 = vunpack.c.h.b16 %v234
        %v349 = vunpack.c.l.b16 %v235
        %v350 = vunpack.c.h.b16 %v235
        %v351 = vunpack.c.l.b16 %v236
        %v352 = vunpack.c.h.b16 %v236
        %v353 = vunpack.c.l.b16 %v237
        %v354 = vunpack.c.h.b16 %v237
        %v355 = vunpack.c.l.b16 %v238
        %v356 = vunpack.c.h.b16 %v238
        %v357 = vunpack.c.l.b16 %v239
        %v358 = vunpack.c.h.b16 %v239
        %v359 = vunpack.c.l.b16 %v240
        %v360 = vunpack.c.h.b16 %v240
        %v361 = vunpack.c.l.b16 %v241
        %v362 = vunpack.c.h.b16 %v241
        %v363 = vunpack.c.l.b16 %v242
        %v364 = vunpack.c.h.b16 %v242
        %v365 = vunpack.c.l.b16 %v243
        %v366 = vunpack.c.h.b16 %v243
        %v367 = vunpack.c.l.b16 %v244
        %v368 = vunpack.c.h.b16 %v244
        %v369 = vunpack.c.l.b16 %v245
        %v370 = vunpack.c.h.b16 %v245
        %v371 = vunpack.c.l.b16 %v246
        %v372 = vunpack.c.h.b16 %v246
        %v373 = vunpack.c.l.b16 %v247
        %v374 = vunpack.c.h.b16 %v247
        %v375 = vunpack.c.l.b16 %v248
        %v376 = vunpack.c.h.b16 %v248
        %v377 = vunpack.c.l.b16 %v249
        %v378 = vunpack.c.h.b16 %v249
        %v379 = vunpack.c.l.b16 %v250
        %v380 = vunpack.c.h.b16 %v250
        %v381 = vunpack.c.l.b16 %v251
        %v382 = vunpack.c.h.b16 %v251
        %v383 = vunpack.c.l.b16 %v252
        %v384 = vunpack.c.h.b16 %v252
        %v385 = vunpack.c.l.b16 %v253
        %v386 = vunpack.c.h.b16 %v253
        %v387 = vunpack.c.l.b16 %v254
        %v388 = vunpack.c.h.b16 %v254
        %v389 = vunpack.c.l.b16 %v255
        %v390 = vunpack.c.h.b16 %v255
        %v391 = vpack.c.b16 %v329, %v327
        %v392 = vpack.c.b16 %v330, %v328
        %v393 = vpack.c.b16 %v333, %v331
        %v394 = vpack.c.b16 %v334, %v332
        %v395 = vpack.c.b16 %v337, %v335
        %v396 = vpack.c.b16 %v338, %v336
        %v397 = vpack.c.b16 %v341, %v339
        %v398 = vpack.c.b16 %v342, %v340
        %v399 = vpack.c.b16 %v345, %v343
        %v400 = vpack.c.b16 %v346, %v344
        %v401 = vpack.c.b16 %v349, %v347
        %v402 = vpack.c.b16 %v350, %v348
        %v403 = vpack.c.b16 %v353, %v351
        %v404 = vpack.c.b16 %v354, %v352
        %v405 = vpack.c.b16 %v357, %v355
        %v406 = vpack.c.b16 %v358, %v356
        %v407 = vpack.c.b16 %v361, %v359
        %v408 = vpack.c.b16 %v362, %v360
        %v409 = vpack.c.b16 %v365, %v363
        %v410 = vpack.c.b16 %v366, %v364
        %v411 = vpack.c.b16 %v369, %v367
        %v412 = vpack.c.b16 %v370, %v368
        %v413 = vpack.c.b16 %v373, %v371
        %v414 = vpack.c.b16 %v374, %v372
        %v415 = vpack.c.b16 %v377, %v375
        %v416 = vpack.c.b16 %v378, %v376
        %v417 = vpack.c.b16 %v381, %v379
        %v418 = vpack.c.b16 %v382, %v380
        %v419 = vpack.c.b16 %v385, %v383
        %v420 = vpack.c.b16 %v386, %v384
        %v421 = vpack.c.b16 %v389, %v387
        %v422 = vpack.c.b16 %v390, %v388
        %v487 = vunpack.c.l.b16 %v256
        %v488 = vunpack.c.l.b16 %v257
        %v489 = vunpack.c.l.b16 %v258
        %v490 = vunpack.c.l.b16 %v259
        %v491 = vunpack.c.l.b16 %v260
        %v492 = vunpack.c.l.b16 %v261
        %v493 = vunpack.c.l.b16 %v262
        %v494 = vunpack.c.l.b16 %v263
        %v495 = vunpack.c.l.b16 %v264
        %v496 = vunpack.c.l.b16 %v265
        %v497 = vunpack.c.l.b16 %v266
        %v498 = vunpack.c.l.b16 %v267
        %v499 = vunpack.c.l.b16 %v268
        %v500 = vunpack.c.l.b16 %v269
        %v501 = vunpack.c.l.b16 %v270
        %v502 = vunpack.c.l.b16 %v271
        %v503 = vunpack.c.l.b16 %v272
        %v504 = vunpack.c.l.b16 %v273
        %v505 = vunpack.c.l.b16 %v274
        %v506 = vunpack.c.l.b16 %v275
        %v507 = vunpack.c.l.b16 %v276
        %v508 = vunpack.c.l.b16 %v277
        %v509 = vunpack.c.l.b16 %v278
        %v510 = vunpack.c.l.b16 %v279
        %v511 = vunpack.c.l.b16 %v280
        %v512 = vunpack.c.l.b16 %v281
        %v513 = vunpack.c.l.b16 %v282
        %v514 = vunpack.c.l.b16 %v283
        %v515 = vunpack.c.l.b16 %v284
        %v516 = vunpack.c.l.b16 %v285
        %v517 = vunpack.c.l.b16 %v286
        %v518 = vunpack.c.l.b16 %v287
        %v519 = vpack.c.b16 %v488, %v487
        %v520 = vpack.c.b16 %v490, %v489
        %v521 = vpack.c.b16 %v492, %v491
        %v522 = vpack.c.b16 %v494, %v493
        %v523 = vpack.c.b16 %v496, %v495
        %v524 = vpack.c.b16 %v498, %v497
        %v525 = vpack.c.b16 %v500, %v499
        %v526 = vpack.c.b16 %v502, %v501
        %v527 = vpack.c.b16 %v504, %v503
        %v528 = vpack.c.b16 %v506, %v505
        %v529 = vpack.c.b16 %v508, %v507
        %v530 = vpack.c.b16 %v510, %v509
        %v531 = vpack.c.b16 %v512, %v511
        %v532 = vpack.c.b16 %v514, %v513
        %v533 = vpack.c.b16 %v516, %v515
        %v534 = vpack.c.b16 %v518, %v517
        %551 = vmatprep.subr.bf16.mxu0 0
        %552 = vmatpush1.bf16.msra.mxu0 %v519
        %553 = vmatprep.subr.bf16.mxu0 0
        %554 = vmatpush1.bf16.msra.mxu0 %v520
        %555 = vmatprep.subr.bf16.mxu0 0
        %556 = vmatpush1.bf16.msra.mxu0 %v521
        %557 = vmatprep.subr.bf16.mxu0 0
        %558 = vmatpush1.bf16.msra.mxu0 %v522
        %559 = vmatprep.subr.bf16.mxu0 0
        %560 = vmatpush1.bf16.msra.mxu0 %v523
        %561 = vmatprep.subr.bf16.mxu0 0
        %562 = vmatpush1.bf16.msra.mxu0 %v524
        %563 = vmatprep.subr.bf16.mxu0 0
        %564 = vmatpush1.bf16.msra.mxu0 %v525
        %565 = vmatprep.subr.bf16.mxu0 0
        %566 = vmatpush1.bf16.msra.mxu0 %v526
        %567 = vmatprep.subr.bf16.mxu0 0
        %568 = vmatpush1.bf16.msra.mxu0 %v527
        %569 = vmatprep.subr.bf16.mxu0 0
        %570 = vmatpush1.bf16.msra.mxu0 %v528
        %571 = vmatprep.subr.bf16.mxu0 0
        %572 = vmatpush1.bf16.msra.mxu0 %v529
        %573 = vmatprep.subr.bf16.mxu0 0
        %574 = vmatpush1.bf16.msra.mxu0 %v530
        %575 = vmatprep.subr.bf16.mxu0 0
        %576 = vmatpush1.bf16.msra.mxu0 %v531
        %577 = vmatprep.subr.bf16.mxu0 0
        %578 = vmatpush1.bf16.msra.mxu0 %v532
        %579 = vmatprep.subr.bf16.mxu0 0
        %580 = vmatpush1.bf16.msra.mxu0 %v533
        %581 = vmatprep.subr.bf16.mxu0 0
        %582 = vmatpush1.bf16.msra.mxu0 %v534
        %583 = vmatprep.mubr.bf16.mxu0 %v392
        %584 = vmatmul.mubr.bf16.gmra.mrb[0].mxu0 %v391
        %v585 = vpop.f32.mrb[0].mxu0
        %v586 = vadd.f32 %v293, %v585
        %v587 = vpop.f32.mrb[0].mxu0
        %v588 = vpop.f32.mrb[0].mxu0
        %v589 = vadd.f32 %v293, %v588
        %v590 = vpop.f32.mrb[0].mxu0
        %591 = vmatprep.mubr.bf16.mxu0 %v394
        %592 = vmatmul.mubr.bf16.gmra.mrb[0].mxu0 %v393
        %v593 = vpop.f32.mrb[0].mxu0
        %v594 = vadd.f32 %v293, %v593
        %v595 = vpop.f32.mrb[0].mxu0
        %v596 = vpop.f32.mrb[0].mxu0
        %v597 = vadd.f32 %v293, %v596
        %v598 = vpop.f32.mrb[0].mxu0
        %599 = vmatprep.mubr.bf16.mxu0 %v396
        %600 = vmatmul.mubr.bf16.gmra.mrb[0].mxu0 %v395
        %v601 = vpop.f32.mrb[0].mxu0
        %v602 = vadd.f32 %v293, %v601
        %v603 = vpop.f32.mrb[0].mxu0
        %v604 = vpop.f32.mrb[0].mxu0
        %v605 = vadd.f32 %v293, %v604
        %v606 = vpop.f32.mrb[0].mxu0
        %607 = vmatprep.mubr.bf16.mxu0 %v398
        %608 = vmatmul.mubr.bf16.gmra.mrb[0].mxu0 %v397
        %v609 = vpop.f32.mrb[0].mxu0
        %v610 = vadd.f32 %v293, %v609
        %v611 = vpop.f32.mrb[0].mxu0
        %v612 = vpop.f32.mrb[0].mxu0
        %v613 = vadd.f32 %v293, %v612
        %v614 = vpop.f32.mrb[0].mxu0
        %615 = vmatprep.mubr.bf16.mxu0 %v400
        %616 = vmatmul.mubr.bf16.gmra.mrb[0].mxu0 %v399
        %v617 = vpop.f32.mrb[0].mxu0
        %v618 = vadd.f32 %v293, %v617
        %v619 = vpop.f32.mrb[0].mxu0
        %v620 = vpop.f32.mrb[0].mxu0
        %v621 = vadd.f32 %v293, %v620
        %v622 = vpop.f32.mrb[0].mxu0
        %623 = vmatprep.mubr.bf16.mxu0 %v402
        %624 = vmatmul.mubr.bf16.gmra.mrb[0].mxu0 %v401
        %v625 = vpop.f32.mrb[0].mxu0
        %v626 = vadd.f32 %v293, %v625
        %v627 = vpop.f32.mrb[0].mxu0
        %v628 = vpop.f32.mrb[0].mxu0
        %v629 = vadd.f32 %v293, %v628
        %v630 = vpop.f32.mrb[0].mxu0
        %631 = vmatprep.mubr.bf16.mxu0 %v404
        %632 = vmatmul.mubr.bf16.gmra.mrb[0].mxu0 %v403
        %v633 = vpop.f32.mrb[0].mxu0
        %v634 = vadd.f32 %v293, %v633
        %v635 = vpop.f32.mrb[0].mxu0
        %v636 = vpop.f32.mrb[0].mxu0
        %v637 = vadd.f32 %v293, %v636
        %v638 = vpop.f32.mrb[0].mxu0
        %639 = vmatprep.mubr.bf16.mxu0 %v406
        %640 = vmatmul.mubr.bf16.gmra.mrb[0].mxu0 %v405
        %v641 = vpop.f32.mrb[0].mxu0
        %v642 = vadd.f32 %v293, %v641
        %v643 = vpop.f32.mrb[0].mxu0
        %v644 = vpop.f32.mrb[0].mxu0
        %v645 = vadd.f32 %v293, %v644
        %v646 = vpop.f32.mrb[0].mxu0
        %647 = vmatprep.mubr.bf16.mxu0 %v408
        %648 = vmatmul.mubr.bf16.gmra.mrb[0].mxu0 %v407
        %v649 = vpop.f32.mrb[0].mxu0
        %v650 = vadd.f32 %v293, %v649
        %v651 = vpop.f32.mrb[0].mxu0
        %v652 = vpop.f32.mrb[0].mxu0
        %v653 = vadd.f32 %v293, %v652
        %v654 = vpop.f32.mrb[0].mxu0
        %655 = vmatprep.mubr.bf16.mxu0 %v410
        %656 = vmatmul.mubr.bf16.gmra.mrb[0].mxu0 %v409
        %v657 = vpop.f32.mrb[0].mxu0
        %v658 = vadd.f32 %v293, %v657
        %v659 = vpop.f32.mrb[0].mxu0
        %v660 = vpop.f32.mrb[0].mxu0
        %v661 = vadd.f32 %v293, %v660
        %v662 = vpop.f32.mrb[0].mxu0
        %663 = vmatprep.mubr.bf16.mxu0 %v412
        %664 = vmatmul.mubr.bf16.gmra.mrb[0].mxu0 %v411
        %v665 = vpop.f32.mrb[0].mxu0
        %v666 = vadd.f32 %v293, %v665
        %v667 = vpop.f32.mrb[0].mxu0
        %v668 = vpop.f32.mrb[0].mxu0
        %v669 = vadd.f32 %v293, %v668
        %v670 = vpop.f32.mrb[0].mxu0
        %671 = vmatprep.mubr.bf16.mxu0 %v414
        %672 = vmatmul.mubr.bf16.gmra.mrb[0].mxu0 %v413
        %v673 = vpop.f32.mrb[0].mxu0
        %v674 = vadd.f32 %v293, %v673
        %v675 = vpop.f32.mrb[0].mxu0
        %v676 = vpop.f32.mrb[0].mxu0
        %v677 = vadd.f32 %v293, %v676
        %v678 = vpop.f32.mrb[0].mxu0
        %679 = vmatprep.mubr.bf16.mxu0 %v416
        %680 = vmatmul.mubr.bf16.gmra.mrb[0].mxu0 %v415
        %v681 = vpop.f32.mrb[0].mxu0
        %v682 = vadd.f32 %v293, %v681
        %v683 = vpop.f32.mrb[0].mxu0
        %v684 = vpop.f32.mrb[0].mxu0
        %v685 = vadd.f32 %v293, %v684
        %v686 = vpop.f32.mrb[0].mxu0
        %687 = vmatprep.mubr.bf16.mxu0 %v418
        %688 = vmatmul.mubr.bf16.gmra.mrb[0].mxu0 %v417
        %v689 = vpop.f32.mrb[0].mxu0
        %v690 = vadd.f32 %v293, %v689
        %v691 = vpop.f32.mrb[0].mxu0
        %v692 = vpop.f32.mrb[0].mxu0
        %v693 = vadd.f32 %v293, %v692
        %v694 = vpop.f32.mrb[0].mxu0
        %695 = vmatprep.mubr.bf16.mxu0 %v420
        %696 = vmatmul.mubr.bf16.gmra.mrb[0].mxu0 %v419
        %v697 = vpop.f32.mrb[0].mxu0
        %v698 = vadd.f32 %v293, %v697
        %v699 = vpop.f32.mrb[0].mxu0
        %v700 = vpop.f32.mrb[0].mxu0
        %v701 = vadd.f32 %v293, %v700
        %v702 = vpop.f32.mrb[0].mxu0
        %703 = vmatprep.mubr.bf16.mxu0 %v422
        %704 = vmatmul.mubr.bf16.gmra.mrb[0].mxu0 %v421
        %v705 = vpop.f32.mrb[0].mxu0
        %v706 = vadd.f32 %v293, %v705
        %v707 = vpop.f32.mrb[0].mxu0
        %v708 = vpop.f32.mrb[0].mxu0
        %v709 = vadd.f32 %v293, %v708
        %v710 = vpop.f32.mrb[0].mxu0
        %711 = vdwg.mxu0
        %v712 = vsub.f32 0.0, %v586
        %v713 = vsub.f32 0.0, %v589
        %v714 = vsub.f32 0.0, %v594
        %v715 = vsub.f32 0.0, %v597
        %v716 = vsub.f32 0.0, %v602
        %v717 = vsub.f32 0.0, %v605
        %v718 = vsub.f32 0.0, %v610
        %v719 = vsub.f32 0.0, %v613
        %v720 = vsub.f32 0.0, %v618
        %v721 = vsub.f32 0.0, %v621
        %v722 = vsub.f32 0.0, %v626
        %v723 = vsub.f32 0.0, %v629
        %v724 = vsub.f32 0.0, %v634
        %v725 = vsub.f32 0.0, %v637
        %v726 = vsub.f32 0.0, %v642
        %v727 = vsub.f32 0.0, %v645
        %v728 = vsub.f32 0.0, %v650
        %v729 = vsub.f32 0.0, %v653
        %v730 = vsub.f32 0.0, %v658
        %v731 = vsub.f32 0.0, %v661
        %v732 = vsub.f32 0.0, %v666
        %v733 = vsub.f32 0.0, %v669
        %v734 = vsub.f32 0.0, %v674
        %v735 = vsub.f32 0.0, %v677
        %v736 = vsub.f32 0.0, %v682
        %v737 = vsub.f32 0.0, %v685
        %v738 = vsub.f32 0.0, %v690
        %v739 = vsub.f32 0.0, %v693
        %v740 = vsub.f32 0.0, %v698
        %v741 = vsub.f32 0.0, %v701
        %v742 = vsub.f32 0.0, %v706
        %v743 = vsub.f32 0.0, %v709
        %v744 = vmul.f32 %v712, 1.442695
        %v745 = vpow.pop %v744
        %v746 = vmul.f32 %v713, 1.442695
        %v747 = vpow.pop %v746
        %v748 = vmul.f32 %v714, 1.442695
        %v749 = vpow.pop %v748
        %v750 = vmul.f32 %v715, 1.442695
        %v751 = vpow.pop %v750
        %v752 = vmul.f32 %v716, 1.442695
        %v753 = vpow.pop %v752
        %v754 = vmul.f32 %v717, 1.442695
        %v755 = vpow.pop %v754
        %v756 = vmul.f32 %v718, 1.442695
        %v757 = vpow.pop %v756
        %v758 = vmul.f32 %v719, 1.442695
        %v759 = vpow.pop %v758
        %v760 = vmul.f32 %v720, 1.442695
        %v761 = vpow.pop %v760
        %v762 = vmul.f32 %v721, 1.442695
        %v763 = vpow.pop %v762
        %v764 = vmul.f32 %v722, 1.442695
        %v765 = vpow.pop %v764
        %v766 = vmul.f32 %v723, 1.442695
        %v767 = vpow.pop %v766
        %v768 = vmul.f32 %v724, 1.442695
        %v769 = vpow.pop %v768
        %v770 = vmul.f32 %v725, 1.442695
        %v771 = vpow.pop %v770
        %v772 = vmul.f32 %v726, 1.442695
        %v773 = vpow.pop %v772
        %v774 = vmul.f32 %v727, 1.442695
        %v775 = vpow.pop %v774
        %v776 = vmul.f32 %v728, 1.442695
        %v777 = vpow.pop %v776
        %v778 = vmul.f32 %v729, 1.442695
        %v779 = vpow.pop %v778
        %v780 = vmul.f32 %v730, 1.442695
        %v781 = vpow.pop %v780
        %v782 = vmul.f32 %v731, 1.442695
        %v783 = vpow.pop %v782
        %v784 = vmul.f32 %v732, 1.442695
        %v785 = vpow.pop %v784
        %v786 = vmul.f32 %v733, 1.442695
        %v787 = vpow.pop %v786
        %v788 = vmul.f32 %v734, 1.442695
        %v789 = vpow.pop %v788
        %v790 = vmul.f32 %v735, 1.442695
        %v791 = vpow.pop %v790
        %v792 = vmul.f32 %v736, 1.442695
        %v793 = vpow.pop %v792
        %v794 = vmul.f32 %v737, 1.442695
        %v795 = vpow.pop %v794
        %v796 = vmul.f32 %v738, 1.442695
        %v797 = vpow.pop %v796
        %v798 = vmul.f32 %v739, 1.442695
        %v799 = vpow.pop %v798
        %v800 = vmul.f32 %v740, 1.442695
        %v801 = vpow.pop %v800
        %v802 = vmul.f32 %v741, 1.442695
        %v803 = vpow.pop %v802
        %v804 = vmul.f32 %v742, 1.442695
        %v805 = vpow.pop %v804
        %v806 = vmul.f32 %v743, 1.442695
        %v807 = vpow.pop %v806
        %v808 = vadd.f32 %v745, 1.0
        %v809 = vadd.f32 %v747, 1.0
        %v810 = vadd.f32 %v749, 1.0
        %v811 = vadd.f32 %v751, 1.0
        %v812 = vadd.f32 %v753, 1.0
        %v813 = vadd.f32 %v755, 1.0
        %v814 = vadd.f32 %v757, 1.0
        %v815 = vadd.f32 %v759, 1.0
        %v816 = vadd.f32 %v761, 1.0
        %v817 = vadd.f32 %v763, 1.0
        %v818 = vadd.f32 %v765, 1.0
        %v819 = vadd.f32 %v767, 1.0
        %v820 = vadd.f32 %v769, 1.0
        %v821 = vadd.f32 %v771, 1.0
        %v822 = vadd.f32 %v773, 1.0
        %v823 = vadd.f32 %v775, 1.0
        %v824 = vadd.f32 %v777, 1.0
        %v825 = vadd.f32 %v779, 1.0
        %v826 = vadd.f32 %v781, 1.0
        %v827 = vadd.f32 %v783, 1.0
        %v828 = vadd.f32 %v785, 1.0
        %v829 = vadd.f32 %v787, 1.0
        %v830 = vadd.f32 %v789, 1.0
        %v831 = vadd.f32 %v791, 1.0
        %v832 = vadd.f32 %v793, 1.0
        %v833 = vadd.f32 %v795, 1.0
        %v834 = vadd.f32 %v797, 1.0
        %v835 = vadd.f32 %v799, 1.0
        %v836 = vadd.f32 %v801, 1.0
        %v837 = vadd.f32 %v803, 1.0
        %v838 = vadd.f32 %v805, 1.0
        %v839 = vadd.f32 %v807, 1.0
        %v840 = vrcp.pop %v808
        %v841 = vrcp.pop %v809
        %v842 = vrcp.pop %v810
        %v843 = vrcp.pop %v811
        %v844 = vrcp.pop %v812
        %v845 = vrcp.pop %v813
        %v846 = vrcp.pop %v814
        %v847 = vrcp.pop %v815
        %v848 = vrcp.pop %v816
        %v849 = vrcp.pop %v817
        %v850 = vrcp.pop %v818
        %v851 = vrcp.pop %v819
        %v852 = vrcp.pop %v820
        %v853 = vrcp.pop %v821
        %v854 = vrcp.pop %v822
        %v855 = vrcp.pop %v823
        %v856 = vrcp.pop %v824
        %v857 = vrcp.pop %v825
        %v858 = vrcp.pop %v826
        %v859 = vrcp.pop %v827
        %v860 = vrcp.pop %v828
        %v861 = vrcp.pop %v829
        %v862 = vrcp.pop %v830
        %v863 = vrcp.pop %v831
        %v864 = vrcp.pop %v832
        %v865 = vrcp.pop %v833
        %v866 = vrcp.pop %v834
        %v867 = vrcp.pop %v835
        %v868 = vrcp.pop %v836
        %v869 = vrcp.pop %v837
        %v870 = vrcp.pop %v838
        %v871 = vrcp.pop %v839
        %v872 = vmul.f32 %v586, %v840
        %v873 = vmul.f32 %v589, %v841
        %v874 = vmul.f32 %v594, %v842
        %v875 = vmul.f32 %v597, %v843
        %v876 = vmul.f32 %v602, %v844
        %v877 = vmul.f32 %v605, %v845
        %v878 = vmul.f32 %v610, %v846
        %v879 = vmul.f32 %v613, %v847
        %v880 = vmul.f32 %v618, %v848
        %v881 = vmul.f32 %v621, %v849
        %v882 = vmul.f32 %v626, %v850
        %v883 = vmul.f32 %v629, %v851
        %v884 = vmul.f32 %v634, %v852
        %v885 = vmul.f32 %v637, %v853
        %v886 = vmul.f32 %v642, %v854
        %v887 = vmul.f32 %v645, %v855
        %v888 = vmul.f32 %v650, %v856
        %v889 = vmul.f32 %v653, %v857
        %v890 = vmul.f32 %v658, %v858
        %v891 = vmul.f32 %v661, %v859
        %v892 = vmul.f32 %v666, %v860
        %v893 = vmul.f32 %v669, %v861
        %v894 = vmul.f32 %v674, %v862
        %v895 = vmul.f32 %v677, %v863
        %v896 = vmul.f32 %v682, %v864
        %v897 = vmul.f32 %v685, %v865
        %v898 = vmul.f32 %v690, %v866
        %v899 = vmul.f32 %v693, %v867
        %v900 = vmul.f32 %v698, %v868
        %v901 = vmul.f32 %v701, %v869
        %v902 = vmul.f32 %v706, %v870
        %v903 = vmul.f32 %v709, %v871
        %v904 = vpack.c.bf16 %v873, %v872
        %v905 = vpack.c.bf16 %v875, %v874
        %v906 = vpack.c.bf16 %v877, %v876
        %v907 = vpack.c.bf16 %v879, %v878
        %v908 = vpack.c.bf16 %v881, %v880
        %v909 = vpack.c.bf16 %v883, %v882
        %v910 = vpack.c.bf16 %v885, %v884
        %v911 = vpack.c.bf16 %v887, %v886
        %v912 = vpack.c.bf16 %v889, %v888
        %v913 = vpack.c.bf16 %v891, %v890
        %v914 = vpack.c.bf16 %v893, %v892
        %v915 = vpack.c.bf16 %v895, %v894
        %v916 = vpack.c.bf16 %v897, %v896
        %v917 = vpack.c.bf16 %v899, %v898
        %v918 = vpack.c.bf16 %v901, %v900
        %v919 = vpack.c.bf16 %v903, %v902
        %920 = vst [vmem:[#allocation3] sm:$0xff] %v904
        %921 = vst [vmem:[#allocation3 + $0x20] sm:$0xff] %v905
        %922 = vst [vmem:[#allocation3 + $0x40] sm:$0xff] %v906
        %923 = vst [vmem:[#allocation3 + $0x60] sm:$0xff] %v907
        %924 = vst [vmem:[#allocation3 + $0x80] sm:$0xff] %v908
        %925 = vst [vmem:[#allocation3 + $0xa0] sm:$0xff] %v909
        %926 = vst [vmem:[#allocation3 + $0xc0] sm:$0xff] %v910
        %927 = vst [vmem:[#allocation3 + $0xe0] sm:$0xff] %v911
        %928 = vst [vmem:[#allocation3 + $0x100] sm:$0xff] %v912
        %929 = vst [vmem:[#allocation3 + $0x120] sm:$0xff] %v913
        %930 = vst [vmem:[#allocation3 + $0x140] sm:$0xff] %v914
        %931 = vst [vmem:[#allocation3 + $0x160] sm:$0xff] %v915
        %932 = vst [vmem:[#allocation3 + $0x180] sm:$0xff] %v916
        %933 = vst [vmem:[#allocation3 + $0x1a0] sm:$0xff] %v917
        %934 = vst [vmem:[#allocation3 + $0x1c0] sm:$0xff] %v918
        %935 = vst [vmem:[#allocation3 + $0x1e0] sm:$0xff] %v919
        %936 = vst [vmem:[#allocation2] sm:$0xff] -1e+30
        %937 = vst [vmem:[#allocation2 + $0x8] sm:$0xff] -1e+30
        %938 = vst [vmem:[#allocation2 + $0x10] sm:$0xff] -1e+30
        %939 = vst [vmem:[#allocation2 + $0x18] sm:$0xff] -1e+30
        %940 = vst [vmem:[#allocation2 + $0x20] sm:$0xff] -1e+30
        %941 = vst [vmem:[#allocation2 + $0x28] sm:$0xff] -1e+30
        %942 = vst [vmem:[#allocation2 + $0x30] sm:$0xff] -1e+30
        %943 = vst [vmem:[#allocation2 + $0x38] sm:$0xff] -1e+30
        %s944 = scalar_lea.vmem [#allocation2], 576
        %945 = vst [vmem:[%s944] sm:$0xff] -1e+30
        %946 = vst [vmem:[%s944 + $0x8] sm:$0xff] -1e+30
        %947 = vst [vmem:[%s944 + $0x10] sm:$0xff] -1e+30
        %948 = vst [vmem:[%s944 + $0x18] sm:$0xff] -1e+30
        %949 = vst [vmem:[%s944 + $0x20] sm:$0xff] -1e+30
        %950 = vst [vmem:[%s944 + $0x28] sm:$0xff] -1e+30
        %951 = vst [vmem:[%s944 + $0x30] sm:$0xff] -1e+30
        %952 = vst [vmem:[%s944 + $0x38] sm:$0xff] -1e+30
        %s953 = scalar_lea.vmem [#allocation2], 64
        %954 = vst [vmem:[%s953] sm:$0xff] -1e+30
        %955 = vst [vmem:[%s953 + $0x20] sm:$0xff] -1e+30
        %956 = vst [vmem:[%s953 + $0x40] sm:$0xff] -1e+30
        %957 = vst [vmem:[%s953 + $0x60] sm:$0xff] -1e+30
        %958 = vst [vmem:[%s953 + $0x80] sm:$0xff] -1e+30
        %959 = vst [vmem:[%s953 + $0xa0] sm:$0xff] -1e+30
        %960 = vst [vmem:[%s953 + $0xc0] sm:$0xff] -1e+30
        %961 = vst [vmem:[%s953 + $0xe0] sm:$0xff] -1e+30
        %962 = vst [vmem:[%s953 + $0x100] sm:$0xff] -1e+30
        %963 = vst [vmem:[%s953 + $0x120] sm:$0xff] -1e+30
        %964 = vst [vmem:[%s953 + $0x140] sm:$0xff] -1e+30
        %965 = vst [vmem:[%s953 + $0x160] sm:$0xff] -1e+30
        %966 = vst [vmem:[%s953 + $0x180] sm:$0xff] -1e+30
        %967 = vst [vmem:[%s953 + $0x1a0] sm:$0xff] -1e+30
        %968 = vst [vmem:[%s953 + $0x1c0] sm:$0xff] -1e+30
        %969 = vst [vmem:[%s953 + $0x1e0] sm:$0xff] -1e+30
        %970 = vst [vmem:[%s953 + $0x18] sm:$0xff] -1e+30
        %971 = vst [vmem:[%s953 + $0x38] sm:$0xff] -1e+30
        %972 = vst [vmem:[%s953 + $0x58] sm:$0xff] -1e+30
        %973 = vst [vmem:[%s953 + $0x78] sm:$0xff] -1e+30
        %974 = vst [vmem:[%s953 + $0x98] sm:$0xff] -1e+30
        %975 = vst [vmem:[%s953 + $0xb8] sm:$0xff] -1e+30
        %976 = vst [vmem:[%s953 + $0xd8] sm:$0xff] -1e+30
        %977 = vst [vmem:[%s953 + $0xf8] sm:$0xff] -1e+30
        %978 = vst [vmem:[%s953 + $0x118] sm:$0xff] -1e+30
        %979 = vst [vmem:[%s953 + $0x138] sm:$0xff] -1e+30
        %980 = vst [vmem:[%s953 + $0x158] sm:$0xff] -1e+30
        %981 = vst [vmem:[%s953 + $0x178] sm:$0xff] -1e+30
        %982 = vst [vmem:[%s953 + $0x198] sm:$0xff] -1e+30
        %983 = vst [vmem:[%s953 + $0x1b8] sm:$0xff] -1e+30
        %984 = vst [vmem:[%s953 + $0x1d8] sm:$0xff] -1e+30
        %985 = vst [vmem:[%s953 + $0x1f8] sm:$0xff] -1e+30
        %986 = vst [vmem:[%s953 + $0x8] sm:$0xff] %v872
        %987 = vst [vmem:[%s953 + $0x10] sm:$0xff] %v873
        %988 = vst [vmem:[%s953 + $0x28] sm:$0xff] %v874
        %989 = vst [vmem:[%s953 + $0x30] sm:$0xff] %v875
        %990 = vst [vmem:[%s953 + $0x48] sm:$0xff] %v876
        %991 = vst [vmem:[%s953 + $0x50] sm:$0xff] %v877
        %992 = vst [vmem:[%s953 + $0x68] sm:$0xff] %v878
        %993 = vst [vmem:[%s953 + $0x70] sm:$0xff] %v879
        %994 = vst [vmem:[%s953 + $0x88] sm:$0xff] %v880
        %995 = vst [vmem:[%s953 + $0x90] sm:$0xff] %v881
        %996 = vst [vmem:[%s953 + $0xa8] sm:$0xff] %v882
        %997 = vst [vmem:[%s953 + $0xb0] sm:$0xff] %v883
        %998 = vst [vmem:[%s953 + $0xc8] sm:$0xff] %v884
        %999 = vst [vmem:[%s953 + $0xd0] sm:$0xff] %v885
        %1000 = vst [vmem:[%s953 + $0xe8] sm:$0xff] %v886
        %1001 = vst [vmem:[%s953 + $0xf0] sm:$0xff] %v887
        %1002 = vst [vmem:[%s953 + $0x108] sm:$0xff] %v888
        %1003 = vst [vmem:[%s953 + $0x110] sm:$0xff] %v889
        %1004 = vst [vmem:[%s953 + $0x128] sm:$0xff] %v890
        %1005 = vst [vmem:[%s953 + $0x130] sm:$0xff] %v891
        %1006 = vst [vmem:[%s953 + $0x148] sm:$0xff] %v892
        %1007 = vst [vmem:[%s953 + $0x150] sm:$0xff] %v893
        %1008 = vst [vmem:[%s953 + $0x168] sm:$0xff] %v894
        %1009 = vst [vmem:[%s953 + $0x170] sm:$0xff] %v895
        %1010 = vst [vmem:[%s953 + $0x188] sm:$0xff] %v896
        %1011 = vst [vmem:[%s953 + $0x190] sm:$0xff] %v897
        %1012 = vst [vmem:[%s953 + $0x1a8] sm:$0xff] %v898
        %1013 = vst [vmem:[%s953 + $0x1b0] sm:$0xff] %v899
        %1014 = vst [vmem:[%s953 + $0x1c8] sm:$0xff] %v900
        %1015 = vst [vmem:[%s953 + $0x1d0] sm:$0xff] %v901
        %1016 = vst [vmem:[%s953 + $0x1e8] sm:$0xff] %v902
        %1017 = vst [vmem:[%s953 + $0x1f0] sm:$0xff] %v903
        %v1018 = vld [vmem:[#allocation2 + $0x6] sm:$0xff]
        %v1019 = vld [vmem:[#allocation2 + $0xe] sm:$0xff]
        %v1020 = vld [vmem:[#allocation2 + $0x26] sm:$0xff]
        %v1021 = vld [vmem:[#allocation2 + $0x2e] sm:$0xff]
        %v1022 = vld [vmem:[#allocation2 + $0x46] sm:$0xff]
        %v1023 = vld [vmem:[#allocation2 + $0x4e] sm:$0xff]
        %v1024 = vld [vmem:[#allocation2 + $0x66] sm:$0xff]
        %v1025 = vld [vmem:[#allocation2 + $0x6e] sm:$0xff]
        %v1026 = vld [vmem:[#allocation2 + $0x86] sm:$0xff]
        %v1027 = vld [vmem:[#allocation2 + $0x8e] sm:$0xff]
        %v1028 = vld [vmem:[#allocation2 + $0xa6] sm:$0xff]
        %v1029 = vld [vmem:[#allocation2 + $0xae] sm:$0xff]
        %v1030 = vld [vmem:[#allocation2 + $0xc6] sm:$0xff]
        %v1031 = vld [vmem:[#allocation2 + $0xce] sm:$0xff]
        %v1032 = vld [vmem:[#allocation2 + $0xe6] sm:$0xff]
        %v1033 = vld [vmem:[#allocation2 + $0xee] sm:$0xff]
        %v1034 = vld [vmem:[#allocation2 + $0x106] sm:$0xff]
        %v1035 = vld [vmem:[#allocation2 + $0x10e] sm:$0xff]
        %v1036 = vld [vmem:[#allocation2 + $0x126] sm:$0xff]
        %v1037 = vld [vmem:[#allocation2 + $0x12e] sm:$0xff]
        %v1038 = vld [vmem:[#allocation2 + $0x146] sm:$0xff]
        %v1039 = vld [vmem:[#allocation2 + $0x14e] sm:$0xff]
        %v1040 = vld [vmem:[#allocation2 + $0x166] sm:$0xff]
        %v1041 = vld [vmem:[#allocation2 + $0x16e] sm:$0xff]
        %v1042 = vld [vmem:[#allocation2 + $0x186] sm:$0xff]
        %v1043 = vld [vmem:[#allocation2 + $0x18e] sm:$0xff]
        %v1044 = vld [vmem:[#allocation2 + $0x1a6] sm:$0xff]
        %v1045 = vld [vmem:[#allocation2 + $0x1ae] sm:$0xff]
        %v1046 = vld [vmem:[#allocation2 + $0x1c6] sm:$0xff]
        %v1047 = vld [vmem:[#allocation2 + $0x1ce] sm:$0xff]
        %v1048 = vld [vmem:[#allocation2 + $0x1e6] sm:$0xff]
        %v1049 = vld [vmem:[#allocation2 + $0x1ee] sm:$0xff]
        %v1050 = vld [vmem:[#allocation2 + $0x206] sm:$0xff]
        %v1051 = vld [vmem:[#allocation2 + $0x20e] sm:$0xff]
        %v1052 = vld [vmem:[#allocation2 + $0x226] sm:$0xff]
        %v1053 = vld [vmem:[#allocation2 + $0x22e] sm:$0xff]
        %v1054 = vld [vmem:[#allocation2 + $0x246] sm:$0xff]
        %v1055 = vld [vmem:[#allocation2 + $0x24e] sm:$0xff]
        %v1056 = vld [vmem:[#allocation2 + $0x266] sm:$0xff]
        %v1057 = vld [vmem:[#allocation2 + $0x26e] sm:$0xff]
        %v1058 = vld [vmem:[#allocation2 + $0x7] sm:$0xff]
        %v1059 = vld [vmem:[#allocation2 + $0xf] sm:$0xff]
        %v1060 = vld [vmem:[#allocation2 + $0x27] sm:$0xff]
        %v1061 = vld [vmem:[#allocation2 + $0x2f] sm:$0xff]
        %v1062 = vld [vmem:[#allocation2 + $0x47] sm:$0xff]
        %v1063 = vld [vmem:[#allocation2 + $0x4f] sm:$0xff]
        %v1064 = vld [vmem:[#allocation2 + $0x67] sm:$0xff]
        %v1065 = vld [vmem:[#allocation2 + $0x6f] sm:$0xff]
        %v1066 = vld [vmem:[#allocation2 + $0x87] sm:$0xff]
        %v1067 = vld [vmem:[#allocation2 + $0x8f] sm:$0xff]
        %v1068 = vld [vmem:[#allocation2 + $0xa7] sm:$0xff]
        %v1069 = vld [vmem:[#allocation2 + $0xaf] sm:$0xff]
        %v1070 = vld [vmem:[#allocation2 + $0xc7] sm:$0xff]
        %v1071 = vld [vmem:[#allocation2 + $0xcf] sm:$0xff]
        %v1072 = vld [vmem:[#allocation2 + $0xe7] sm:$0xff]
        %v1073 = vld [vmem:[#allocation2 + $0xef] sm:$0xff]
        %v1074 = vld [vmem:[#allocation2 + $0x107] sm:$0xff]
        %v1075 = vld [vmem:[#allocation2 + $0x10f] sm:$0xff]
        %v1076 = vld [vmem:[#allocation2 + $0x127] sm:$0xff]
        %v1077 = vld [vmem:[#allocation2 + $0x12f] sm:$0xff]
        %v1078 = vld [vmem:[#allocation2 + $0x147] sm:$0xff]
        %v1079 = vld [vmem:[#allocation2 + $0x14f] sm:$0xff]
        %v1080 = vld [vmem:[#allocation2 + $0x167] sm:$0xff]
        %v1081 = vld [vmem:[#allocation2 + $0x16f] sm:$0xff]
        %v1082 = vld [vmem:[#allocation2 + $0x187] sm:$0xff]
        %v1083 = vld [vmem:[#allocation2 + $0x18f] sm:$0xff]
        %v1084 = vld [vmem:[#allocation2 + $0x1a7] sm:$0xff]
        %v1085 = vld [vmem:[#allocation2 + $0x1af] sm:$0xff]
        %v1086 = vld [vmem:[#allocation2 + $0x1c7] sm:$0xff]
        %v1087 = vld [vmem:[#allocation2 + $0x1cf] sm:$0xff]
        %v1088 = vld [vmem:[#allocation2 + $0x1e7] sm:$0xff]
        %v1089 = vld [vmem:[#allocation2 + $0x1ef] sm:$0xff]
        %v1090 = vld [vmem:[#allocation2 + $0x207] sm:$0xff]
        %v1091 = vld [vmem:[#allocation2 + $0x20f] sm:$0xff]
        %v1092 = vld [vmem:[#allocation2 + $0x227] sm:$0xff]
        %v1093 = vld [vmem:[#allocation2 + $0x22f] sm:$0xff]
        %v1094 = vld [vmem:[#allocation2 + $0x247] sm:$0xff]
        %v1095 = vld [vmem:[#allocation2 + $0x24f] sm:$0xff]
        %v1096 = vld [vmem:[#allocation2 + $0x267] sm:$0xff]
        %v1097 = vld [vmem:[#allocation2 + $0x26f] sm:$0xff]
        %v1098 = vmax.f32 %v1018, %v1058
        %v1099 = vmax.f32 %v1019, %v1059
        %v1100 = vmax.f32 %v1020, %v1060
        %v1101 = vmax.f32 %v1021, %v1061
        %v1102 = vmax.f32 %v1022, %v1062
        %v1103 = vmax.f32 %v1023, %v1063
        %v1104 = vmax.f32 %v1024, %v1064
        %v1105 = vmax.f32 %v1025, %v1065
        %v1106 = vmax.f32 %v1026, %v1066
        %v1107 = vmax.f32 %v1027, %v1067
        %v1108 = vmax.f32 %v1028, %v1068
        %v1109 = vmax.f32 %v1029, %v1069
        %v1110 = vmax.f32 %v1030, %v1070
        %v1111 = vmax.f32 %v1031, %v1071
        %v1112 = vmax.f32 %v1032, %v1072
        %v1113 = vmax.f32 %v1033, %v1073
        %v1114 = vmax.f32 %v1034, %v1074
        %v1115 = vmax.f32 %v1035, %v1075
        %v1116 = vmax.f32 %v1036, %v1076
        %v1117 = vmax.f32 %v1037, %v1077
        %v1118 = vmax.f32 %v1038, %v1078
        %v1119 = vmax.f32 %v1039, %v1079
        %v1120 = vmax.f32 %v1040, %v1080
        %v1121 = vmax.f32 %v1041, %v1081
        %v1122 = vmax.f32 %v1042, %v1082
        %v1123 = vmax.f32 %v1043, %v1083
        %v1124 = vmax.f32 %v1044, %v1084
        %v1125 = vmax.f32 %v1045, %v1085
        %v1126 = vmax.f32 %v1046, %v1086
        %v1127 = vmax.f32 %v1047, %v1087
        %v1128 = vmax.f32 %v1048, %v1088
        %v1129 = vmax.f32 %v1049, %v1089
        %v1130 = vmax.f32 %v1050, %v1090
        %v1131 = vmax.f32 %v1051, %v1091
        %v1132 = vmax.f32 %v1052, %v1092
        %v1133 = vmax.f32 %v1053, %v1093
        %v1134 = vmax.f32 %v1054, %v1094
        %v1135 = vmax.f32 %v1055, %v1095
        %v1136 = vmax.f32 %v1056, %v1096
        %v1137 = vmax.f32 %v1057, %v1097
        %v1138 = vld [vmem:[#allocation2 + $0x8] sm:$0xff]
        %v1139 = vld [vmem:[#allocation2 + $0x10] sm:$0xff]
        %v1140 = vld [vmem:[#allocation2 + $0x28] sm:$0xff]
        %v1141 = vld [vmem:[#allocation2 + $0x30] sm:$0xff]
        %v1142 = vld [vmem:[#allocation2 + $0x48] sm:$0xff]
        %v1143 = vld [vmem:[#allocation2 + $0x50] sm:$0xff]
        %v1144 = vld [vmem:[#allocation2 + $0x68] sm:$0xff]
        %v1145 = vld [vmem:[#allocation2 + $0x70] sm:$0xff]
        %v1146 = vld [vmem:[#allocation2 + $0x88] sm:$0xff]
        %v1147 = vld [vmem:[#allocation2 + $0x90] sm:$0xff]
        %v1148 = vld [vmem:[#allocation2 + $0xa8] sm:$0xff]
        %v1149 = vld [vmem:[#allocation2 + $0xb0] sm:$0xff]
        %v1150 = vld [vmem:[#allocation2 + $0xc8] sm:$0xff]
        %v1151 = vld [vmem:[#allocation2 + $0xd0] sm:$0xff]
        %v1152 = vld [vmem:[#allocation2 + $0xe8] sm:$0xff]
        %v1153 = vld [vmem:[#allocation2 + $0xf0] sm:$0xff]
        %v1154 = vld [vmem:[#allocation2 + $0x108] sm:$0xff]
        %v1155 = vld [vmem:[#allocation2 + $0x110] sm:$0xff]
        %v1156 = vld [vmem:[#allocation2 + $0x128] sm:$0xff]
        %v1157 = vld [vmem:[#allocation2 + $0x130] sm:$0xff]
        %v1158 = vld [vmem:[#allocation2 + $0x148] sm:$0xff]
        %v1159 = vld [vmem:[#allocation2 + $0x150] sm:$0xff]
        %v1160 = vld [vmem:[#allocation2 + $0x168] sm:$0xff]
        %v1161 = vld [vmem:[#allocation2 + $0x170] sm:$0xff]
        %v1162 = vld [vmem:[#allocation2 + $0x188] sm:$0xff]
        %v1163 = vld [vmem:[#allocation2 + $0x190] sm:$0xff]
        %v1164 = vld [vmem:[#allocation2 + $0x1a8] sm:$0xff]
        %v1165 = vld [vmem:[#allocation2 + $0x1b0] sm:$0xff]
        %v1166 = vld [vmem:[#allocation2 + $0x1c8] sm:$0xff]
        %v1167 = vld [vmem:[#allocation2 + $0x1d0] sm:$0xff]
        %v1168 = vld [vmem:[#allocation2 + $0x1e8] sm:$0xff]
        %v1169 = vld [vmem:[#allocation2 + $0x1f0] sm:$0xff]
        %v1170 = vld [vmem:[#allocation2 + $0x208] sm:$0xff]
        %v1171 = vld [vmem:[#allocation2 + $0x210] sm:$0xff]
        %v1172 = vld [vmem:[#allocation2 + $0x228] sm:$0xff]
        %v1173 = vld [vmem:[#allocation2 + $0x230] sm:$0xff]
        %v1174 = vld [vmem:[#allocation2 + $0x248] sm:$0xff]
        %v1175 = vld [vmem:[#allocation2 + $0x250] sm:$0xff]
        %v1176 = vld [vmem:[#allocation2 + $0x268] sm:$0xff]
        %v1177 = vld [vmem:[#allocation2 + $0x270] sm:$0xff]
        %v1178 = vmax.f32 %v1098, %v1138
        %v1179 = vmax.f32 %v1099, %v1139
        %v1180 = vmax.f32 %v1100, %v1140
        %v1181 = vmax.f32 %v1101, %v1141
        %v1182 = vmax.f32 %v1102, %v1142
        %v1183 = vmax.f32 %v1103, %v1143
        %v1184 = vmax.f32 %v1104, %v1144
        %v1185 = vmax.f32 %v1105, %v1145
        %v1186 = vmax.f32 %v1106, %v1146
        %v1187 = vmax.f32 %v1107, %v1147
        %v1188 = vmax.f32 %v1108, %v1148
        %v1189 = vmax.f32 %v1109, %v1149
        %v1190 = vmax.f32 %v1110, %v1150
        %v1191 = vmax.f32 %v1111, %v1151
        %v1192 = vmax.f32 %v1112, %v1152
        %v1193 = vmax.f32 %v1113, %v1153
        %v1194 = vmax.f32 %v1114, %v1154
        %v1195 = vmax.f32 %v1115, %v1155
        %v1196 = vmax.f32 %v1116, %v1156
        %v1197 = vmax.f32 %v1117, %v1157
        %v1198 = vmax.f32 %v1118, %v1158
        %v1199 = vmax.f32 %v1119, %v1159
        %v1200 = vmax.f32 %v1120, %v1160
        %v1201 = vmax.f32 %v1121, %v1161
        %v1202 = vmax.f32 %v1122, %v1162
        %v1203 = vmax.f32 %v1123, %v1163
        %v1204 = vmax.f32 %v1124, %v1164
        %v1205 = vmax.f32 %v1125, %v1165
        %v1206 = vmax.f32 %v1126, %v1166
        %v1207 = vmax.f32 %v1127, %v1167
        %v1208 = vmax.f32 %v1128, %v1168
        %v1209 = vmax.f32 %v1129, %v1169
        %v1210 = vmax.f32 %v1130, %v1170
        %v1211 = vmax.f32 %v1131, %v1171
        %v1212 = vmax.f32 %v1132, %v1172
        %v1213 = vmax.f32 %v1133, %v1173
        %v1214 = vmax.f32 %v1134, %v1174
        %v1215 = vmax.f32 %v1135, %v1175
        %v1216 = vmax.f32 %v1136, %v1176
        %v1217 = vmax.f32 %v1137, %v1177
        %v1218 = vld [vmem:[#allocation2 + $0x9] sm:$0xff]
        %v1219 = vld [vmem:[#allocation2 + $0x11] sm:$0xff]
        %v1220 = vld [vmem:[#allocation2 + $0x29] sm:$0xff]
        %v1221 = vld [vmem:[#allocation2 + $0x31] sm:$0xff]
        %v1222 = vld [vmem:[#allocation2 + $0x49] sm:$0xff]
        %v1223 = vld [vmem:[#allocation2 + $0x51] sm:$0xff]
        %v1224 = vld [vmem:[#allocation2 + $0x69] sm:$0xff]
        %v1225 = vld [vmem:[#allocation2 + $0x71] sm:$0xff]
        %v1226 = vld [vmem:[#allocation2 + $0x89] sm:$0xff]
        %v1227 = vld [vmem:[#allocation2 + $0x91] sm:$0xff]
        %v1228 = vld [vmem:[#allocation2 + $0xa9] sm:$0xff]
        %v1229 = vld [vmem:[#allocation2 + $0xb1] sm:$0xff]
        %v1230 = vld [vmem:[#allocation2 + $0xc9] sm:$0xff]
        %v1231 = vld [vmem:[#allocation2 + $0xd1] sm:$0xff]
        %v1232 = vld [vmem:[#allocation2 + $0xe9] sm:$0xff]
        %v1233 = vld [vmem:[#allocation2 + $0xf1] sm:$0xff]
        %v1234 = vld [vmem:[#allocation2 + $0x109] sm:$0xff]
        %v1235 = vld [vmem:[#allocation2 + $0x111] sm:$0xff]
        %v1236 = vld [vmem:[#allocation2 + $0x129] sm:$0xff]
        %v1237 = vld [vmem:[#allocation2 + $0x131] sm:$0xff]
        %v1238 = vld [vmem:[#allocation2 + $0x149] sm:$0xff]
        %v1239 = vld [vmem:[#allocation2 + $0x151] sm:$0xff]
        %v1240 = vld [vmem:[#allocation2 + $0x169] sm:$0xff]
        %v1241 = vld [vmem:[#allocation2 + $0x171] sm:$0xff]
        %v1242 = vld [vmem:[#allocation2 + $0x189] sm:$0xff]
        %v1243 = vld [vmem:[#allocation2 + $0x191] sm:$0xff]
        %v1244 = vld [vmem:[#allocation2 + $0x1a9] sm:$0xff]
        %v1245 = vld [vmem:[#allocation2 + $0x1b1] sm:$0xff]
        %v1246 = vld [vmem:[#allocation2 + $0x1c9] sm:$0xff]
        %v1247 = vld [vmem:[#allocation2 + $0x1d1] sm:$0xff]
        %v1248 = vld [vmem:[#allocation2 + $0x1e9] sm:$0xff]
        %v1249 = vld [vmem:[#allocation2 + $0x1f1] sm:$0xff]
        %v1250 = vld [vmem:[#allocation2 + $0x209] sm:$0xff]
        %v1251 = vld [vmem:[#allocation2 + $0x211] sm:$0xff]
        %v1252 = vld [vmem:[#allocation2 + $0x229] sm:$0xff]
        %v1253 = vld [vmem:[#allocation2 + $0x231] sm:$0xff]
        %v1254 = vld [vmem:[#allocation2 + $0x249] sm:$0xff]
        %v1255 = vld [vmem:[#allocation2 + $0x251] sm:$0xff]
        %v1256 = vld [vmem:[#allocation2 + $0x269] sm:$0xff]
        %v1257 = vld [vmem:[#allocation2 + $0x271] sm:$0xff]
        %v1258 = vmax.f32 %v1178, %v1218
        %v1259 = vmax.f32 %v1179, %v1219
        %v1260 = vmax.f32 %v1180, %v1220
        %v1261 = vmax.f32 %v1181, %v1221
        %v1262 = vmax.f32 %v1182, %v1222
        %v1263 = vmax.f32 %v1183, %v1223
        %v1264 = vmax.f32 %v1184, %v1224
        %v1265 = vmax.f32 %v1185, %v1225
        %v1266 = vmax.f32 %v1186, %v1226
        %v1267 = vmax.f32 %v1187, %v1227
        %v1268 = vmax.f32 %v1188, %v1228
        %v1269 = vmax.f32 %v1189, %v1229
        %v1270 = vmax.f32 %v1190, %v1230
        %v1271 = vmax.f32 %v1191, %v1231
        %v1272 = vmax.f32 %v1192, %v1232
        %v1273 = vmax.f32 %v1193, %v1233
        %v1274 = vmax.f32 %v1194, %v1234
        %v1275 = vmax.f32 %v1195, %v1235
        %v1276 = vmax.f32 %v1196, %v1236
        %v1277 = vmax.f32 %v1197, %v1237
        %v1278 = vmax.f32 %v1198, %v1238
        %v1279 = vmax.f32 %v1199, %v1239
        %v1280 = vmax.f32 %v1200, %v1240
        %v1281 = vmax.f32 %v1201, %v1241
        %v1282 = vmax.f32 %v1202, %v1242
        %v1283 = vmax.f32 %v1203, %v1243
        %v1284 = vmax.f32 %v1204, %v1244
        %v1285 = vmax.f32 %v1205, %v1245
        %v1286 = vmax.f32 %v1206, %v1246
        %v1287 = vmax.f32 %v1207, %v1247
        %v1288 = vmax.f32 %v1208, %v1248
        %v1289 = vmax.f32 %v1209, %v1249
        %v1290 = vmax.f32 %v1210, %v1250
        %v1291 = vmax.f32 %v1211, %v1251
        %v1292 = vmax.f32 %v1212, %v1252
        %v1293 = vmax.f32 %v1213, %v1253
        %v1294 = vmax.f32 %v1214, %v1254
        %v1295 = vmax.f32 %v1215, %v1255
        %v1296 = vmax.f32 %v1216, %v1256
        %v1297 = vmax.f32 %v1217, %v1257
        %v1298 = vld [vmem:[#allocation2 + $0xa] sm:$0xff]
        %v1299 = vld [vmem:[#allocation2 + $0x12] sm:$0xff]
        %v1300 = vld [vmem:[#allocation2 + $0x2a] sm:$0xff]
        %v1301 = vld [vmem:[#allocation2 + $0x32] sm:$0xff]
        %v1302 = vld [vmem:[#allocation2 + $0x4a] sm:$0xff]
        %v1303 = vld [vmem:[#allocation2 + $0x52] sm:$0xff]
        %v1304 = vld [vmem:[#allocation2 + $0x6a] sm:$0xff]
        %v1305 = vld [vmem:[#allocation2 + $0x72] sm:$0xff]
        %v1306 = vld [vmem:[#allocation2 + $0x8a] sm:$0xff]
        %v1307 = vld [vmem:[#allocation2 + $0x92] sm:$0xff]
        %v1308 = vld [vmem:[#allocation2 + $0xaa] sm:$0xff]
        %v1309 = vld [vmem:[#allocation2 + $0xb2] sm:$0xff]
        %v1310 = vld [vmem:[#allocation2 + $0xca] sm:$0xff]
        %v1311 = vld [vmem:[#allocation2 + $0xd2] sm:$0xff]
        %v1312 = vld [vmem:[#allocation2 + $0xea] sm:$0xff]
        %v1313 = vld [vmem:[#allocation2 + $0xf2] sm:$0xff]
        %v1314 = vld [vmem:[#allocation2 + $0x10a] sm:$0xff]
        %v1315 = vld [vmem:[#allocation2 + $0x112] sm:$0xff]
        %v1316 = vld [vmem:[#allocation2 + $0x12a] sm:$0xff]
        %v1317 = vld [vmem:[#allocation2 + $0x132] sm:$0xff]
        %v1318 = vld [vmem:[#allocation2 + $0x14a] sm:$0xff]
        %v1319 = vld [vmem:[#allocation2 + $0x152] sm:$0xff]
        %v1320 = vld [vmem:[#allocation2 + $0x16a] sm:$0xff]
        %v1321 = vld [vmem:[#allocation2 + $0x172] sm:$0xff]
        %v1322 = vld [vmem:[#allocation2 + $0x18a] sm:$0xff]
        %v1323 = vld [vmem:[#allocation2 + $0x192] sm:$0xff]
        %v1324 = vld [vmem:[#allocation2 + $0x1aa] sm:$0xff]
        %v1325 = vld [vmem:[#allocation2 + $0x1b2] sm:$0xff]
        %v1326 = vld [vmem:[#allocation2 + $0x1ca] sm:$0xff]
        %v1327 = vld [vmem:[#allocation2 + $0x1d2] sm:$0xff]
        %v1328 = vld [vmem:[#allocation2 + $0x1ea] sm:$0xff]
        %v1329 = vld [vmem:[#allocation2 + $0x1f2] sm:$0xff]
        %v1330 = vld [vmem:[#allocation2 + $0x20a] sm:$0xff]
        %v1331 = vld [vmem:[#allocation2 + $0x212] sm:$0xff]
        %v1332 = vld [vmem:[#allocation2 + $0x22a] sm:$0xff]
        %v1333 = vld [vmem:[#allocation2 + $0x232] sm:$0xff]
        %v1334 = vld [vmem:[#allocation2 + $0x24a] sm:$0xff]
        %v1335 = vld [vmem:[#allocation2 + $0x252] sm:$0xff]
        %v1336 = vld [vmem:[#allocation2 + $0x26a] sm:$0xff]
        %v1337 = vld [vmem:[#allocation2 + $0x272] sm:$0xff]
        %v1338 = vmax.f32 %v1258, %v1298
        %v1339 = vmax.f32 %v1259, %v1299
        %v1340 = vmax.f32 %v1260, %v1300
        %v1341 = vmax.f32 %v1261, %v1301
        %v1342 = vmax.f32 %v1262, %v1302
        %v1343 = vmax.f32 %v1263, %v1303
        %v1344 = vmax.f32 %v1264, %v1304
        %v1345 = vmax.f32 %v1265, %v1305
        %v1346 = vmax.f32 %v1266, %v1306
        %v1347 = vmax.f32 %v1267, %v1307
        %v1348 = vmax.f32 %v1268, %v1308
        %v1349 = vmax.f32 %v1269, %v1309
        %v1350 = vmax.f32 %v1270, %v1310
        %v1351 = vmax.f32 %v1271, %v1311
        %v1352 = vmax.f32 %v1272, %v1312
        %v1353 = vmax.f32 %v1273, %v1313
        %v1354 = vmax.f32 %v1274, %v1314
        %v1355 = vmax.f32 %v1275, %v1315
        %v1356 = vmax.f32 %v1276, %v1316
        %v1357 = vmax.f32 %v1277, %v1317
        %v1358 = vmax.f32 %v1278, %v1318
        %v1359 = vmax.f32 %v1279, %v1319
        %v1360 = vmax.f32 %v1280, %v1320
        %v1361 = vmax.f32 %v1281, %v1321
        %v1362 = vmax.f32 %v1282, %v1322
        %v1363 = vmax.f32 %v1283, %v1323
        %v1364 = vmax.f32 %v1284, %v1324
        %v1365 = vmax.f32 %v1285, %v1325
        %v1366 = vmax.f32 %v1286, %v1326
        %v1367 = vmax.f32 %v1287, %v1327
        %v1368 = vmax.f32 %v1288, %v1328
        %v1369 = vmax.f32 %v1289, %v1329
        %v1370 = vmax.f32 %v1290, %v1330
        %v1371 = vmax.f32 %v1291, %v1331
        %v1372 = vmax.f32 %v1292, %v1332
        %v1373 = vmax.f32 %v1293, %v1333
        %v1374 = vmax.f32 %v1294, %v1334
        %v1375 = vmax.f32 %v1295, %v1335
        %v1376 = vmax.f32 %v1296, %v1336
        %v1377 = vmax.f32 %v1297, %v1337
        %v1378 = vmax.f32 %v1338, %v1340
        %v1379 = vmax.f32 %v1339, %v1341
        %v1380 = vmax.f32 %v1340, %v1342
        %v1381 = vmax.f32 %v1341, %v1343
        %v1382 = vmax.f32 %v1342, %v1344
        %v1383 = vmax.f32 %v1343, %v1345
        %v1384 = vmax.f32 %v1344, %v1346
        %v1385 = vmax.f32 %v1345, %v1347
        %v1386 = vmax.f32 %v1346, %v1348
        %v1387 = vmax.f32 %v1347, %v1349
        %v1388 = vmax.f32 %v1348, %v1350
        %v1389 = vmax.f32 %v1349, %v1351
        %v1390 = vmax.f32 %v1350, %v1352
        %v1391 = vmax.f32 %v1351, %v1353
        %v1392 = vmax.f32 %v1352, %v1354
        %v1393 = vmax.f32 %v1353, %v1355
        %v1394 = vmax.f32 %v1354, %v1356
        %v1395 = vmax.f32 %v1355, %v1357
        %v1396 = vmax.f32 %v1356, %v1358
        %v1397 = vmax.f32 %v1357, %v1359
        %v1398 = vmax.f32 %v1358, %v1360
        %v1399 = vmax.f32 %v1359, %v1361
        %v1400 = vmax.f32 %v1360, %v1362
        %v1401 = vmax.f32 %v1361, %v1363
        %v1402 = vmax.f32 %v1362, %v1364
        %v1403 = vmax.f32 %v1363, %v1365
        %v1404 = vmax.f32 %v1364, %v1366
        %v1405 = vmax.f32 %v1365, %v1367
        %v1406 = vmax.f32 %v1366, %v1368
        %v1407 = vmax.f32 %v1367, %v1369
        %v1408 = vmax.f32 %v1368, %v1370
        %v1409 = vmax.f32 %v1369, %v1371
        %v1410 = vmax.f32 %v1378, %v1342
        %v1411 = vmax.f32 %v1379, %v1343
        %v1412 = vmax.f32 %v1380, %v1344
        %v1413 = vmax.f32 %v1381, %v1345
        %v1414 = vmax.f32 %v1382, %v1346
        %v1415 = vmax.f32 %v1383, %v1347
        %v1416 = vmax.f32 %v1384, %v1348
        %v1417 = vmax.f32 %v1385, %v1349
        %v1418 = vmax.f32 %v1386, %v1350
        %v1419 = vmax.f32 %v1387, %v1351
        %v1420 = vmax.f32 %v1388, %v1352
        %v1421 = vmax.f32 %v1389, %v1353
        %v1422 = vmax.f32 %v1390, %v1354
        %v1423 = vmax.f32 %v1391, %v1355
        %v1424 = vmax.f32 %v1392, %v1356
        %v1425 = vmax.f32 %v1393, %v1357
        %v1426 = vmax.f32 %v1394, %v1358
        %v1427 = vmax.f32 %v1395, %v1359
        %v1428 = vmax.f32 %v1396, %v1360
        %v1429 = vmax.f32 %v1397, %v1361
        %v1430 = vmax.f32 %v1398, %v1362
        %v1431 = vmax.f32 %v1399, %v1363
        %v1432 = vmax.f32 %v1400, %v1364
        %v1433 = vmax.f32 %v1401, %v1365
        %v1434 = vmax.f32 %v1402, %v1366
        %v1435 = vmax.f32 %v1403, %v1367
        %v1436 = vmax.f32 %v1404, %v1368
        %v1437 = vmax.f32 %v1405, %v1369
        %v1438 = vmax.f32 %v1406, %v1370
        %v1439 = vmax.f32 %v1407, %v1371
        %v1440 = vmax.f32 %v1408, %v1372
        %v1441 = vmax.f32 %v1409, %v1373
        %v1442 = vmax.f32 %v1410, %v1344
        %v1443 = vmax.f32 %v1411, %v1345
        %v1444 = vmax.f32 %v1412, %v1346
        %v1445 = vmax.f32 %v1413, %v1347
        %v1446 = vmax.f32 %v1414, %v1348
        %v1447 = vmax.f32 %v1415, %v1349
        %v1448 = vmax.f32 %v1416, %v1350
        %v1449 = vmax.f32 %v1417, %v1351
        %v1450 = vmax.f32 %v1418, %v1352
        %v1451 = vmax.f32 %v1419, %v1353
        %v1452 = vmax.f32 %v1420, %v1354
        %v1453 = vmax.f32 %v1421, %v1355
        %v1454 = vmax.f32 %v1422, %v1356
        %v1455 = vmax.f32 %v1423, %v1357
        %v1456 = vmax.f32 %v1424, %v1358
        %v1457 = vmax.f32 %v1425, %v1359
        %v1458 = vmax.f32 %v1426, %v1360
        %v1459 = vmax.f32 %v1427, %v1361
        %v1460 = vmax.f32 %v1428, %v1362
        %v1461 = vmax.f32 %v1429, %v1363
        %v1462 = vmax.f32 %v1430, %v1364
        %v1463 = vmax.f32 %v1431, %v1365
        %v1464 = vmax.f32 %v1432, %v1366
        %v1465 = vmax.f32 %v1433, %v1367
        %v1466 = vmax.f32 %v1434, %v1368
        %v1467 = vmax.f32 %v1435, %v1369
        %v1468 = vmax.f32 %v1436, %v1370
        %v1469 = vmax.f32 %v1437, %v1371
        %v1470 = vmax.f32 %v1438, %v1372
        %v1471 = vmax.f32 %v1439, %v1373
        %v1472 = vmax.f32 %v1440, %v1374
        %v1473 = vmax.f32 %v1441, %v1375
        %v1474 = vmax.f32 %v1442, %v1346
        %v1475 = vmax.f32 %v1443, %v1347
        %v1476 = vmax.f32 %v1444, %v1348
        %v1477 = vmax.f32 %v1445, %v1349
        %v1478 = vmax.f32 %v1446, %v1350
        %v1479 = vmax.f32 %v1447, %v1351
        %v1480 = vmax.f32 %v1448, %v1352
        %v1481 = vmax.f32 %v1449, %v1353
        %v1482 = vmax.f32 %v1450, %v1354
        %v1483 = vmax.f32 %v1451, %v1355
        %v1484 = vmax.f32 %v1452, %v1356
        %v1485 = vmax.f32 %v1453, %v1357
        %v1486 = vmax.f32 %v1454, %v1358
        %v1487 = vmax.f32 %v1455, %v1359
        %v1488 = vmax.f32 %v1456, %v1360
        %v1489 = vmax.f32 %v1457, %v1361
        %v1490 = vmax.f32 %v1458, %v1362
        %v1491 = vmax.f32 %v1459, %v1363
        %v1492 = vmax.f32 %v1460, %v1364
        %v1493 = vmax.f32 %v1461, %v1365
        %v1494 = vmax.f32 %v1462, %v1366
        %v1495 = vmax.f32 %v1463, %v1367
        %v1496 = vmax.f32 %v1464, %v1368
        %v1497 = vmax.f32 %v1465, %v1369
        %v1498 = vmax.f32 %v1466, %v1370
        %v1499 = vmax.f32 %v1467, %v1371
        %v1500 = vmax.f32 %v1468, %v1372
        %v1501 = vmax.f32 %v1469, %v1373
        %v1502 = vmax.f32 %v1470, %v1374
        %v1503 = vmax.f32 %v1471, %v1375
        %v1504 = vmax.f32 %v1472, %v1376
        %v1505 = vmax.f32 %v1473, %v1377
        %1506 = vst [vmem:[%s953 + $0x8] sm:$0xff] %v1474
        %1507 = vst [vmem:[%s953 + $0x10] sm:$0xff] %v1475
        %1508 = vst [vmem:[%s953 + $0x28] sm:$0xff] %v1476
        %1509 = vst [vmem:[%s953 + $0x30] sm:$0xff] %v1477
        %1510 = vst [vmem:[%s953 + $0x48] sm:$0xff] %v1478
        %1511 = vst [vmem:[%s953 + $0x50] sm:$0xff] %v1479
        %1512 = vst [vmem:[%s953 + $0x68] sm:$0xff] %v1480
        %1513 = vst [vmem:[%s953 + $0x70] sm:$0xff] %v1481
        %1514 = vst [vmem:[%s953 + $0x88] sm:$0xff] %v1482
        %1515 = vst [vmem:[%s953 + $0x90] sm:$0xff] %v1483
        %1516 = vst [vmem:[%s953 + $0xa8] sm:$0xff] %v1484
        %1517 = vst [vmem:[%s953 + $0xb0] sm:$0xff] %v1485
        %1518 = vst [vmem:[%s953 + $0xc8] sm:$0xff] %v1486
        %1519 = vst [vmem:[%s953 + $0xd0] sm:$0xff] %v1487
        %1520 = vst [vmem:[%s953 + $0xe8] sm:$0xff] %v1488
        %1521 = vst [vmem:[%s953 + $0xf0] sm:$0xff] %v1489
        %1522 = vst [vmem:[%s953 + $0x108] sm:$0xff] %v1490
        %1523 = vst [vmem:[%s953 + $0x110] sm:$0xff] %v1491
        %1524 = vst [vmem:[%s953 + $0x128] sm:$0xff] %v1492
        %1525 = vst [vmem:[%s953 + $0x130] sm:$0xff] %v1493
        %1526 = vst [vmem:[%s953 + $0x148] sm:$0xff] %v1494
        %1527 = vst [vmem:[%s953 + $0x150] sm:$0xff] %v1495
        %1528 = vst [vmem:[%s953 + $0x168] sm:$0xff] %v1496
        %1529 = vst [vmem:[%s953 + $0x170] sm:$0xff] %v1497
        %1530 = vst [vmem:[%s953 + $0x188] sm:$0xff] %v1498
        %1531 = vst [vmem:[%s953 + $0x190] sm:$0xff] %v1499
        %1532 = vst [vmem:[%s953 + $0x1a8] sm:$0xff] %v1500
        %1533 = vst [vmem:[%s953 + $0x1b0] sm:$0xff] %v1501
        %1534 = vst [vmem:[%s953 + $0x1c8] sm:$0xff] %v1502
        %1535 = vst [vmem:[%s953 + $0x1d0] sm:$0xff] %v1503
        %1536 = vst [vmem:[%s953 + $0x1e8] sm:$0xff] %v1504
        %1537 = vst [vmem:[%s953 + $0x1f0] sm:$0xff] %v1505
        %v1538 = vpack.c.bf16 %v1475, %v1474
        %v1539 = vpack.c.bf16 %v1477, %v1476
        %v1540 = vpack.c.bf16 %v1479, %v1478
        %v1541 = vpack.c.bf16 %v1481, %v1480
        %v1542 = vpack.c.bf16 %v1483, %v1482
        %v1543 = vpack.c.bf16 %v1485, %v1484
        %v1544 = vpack.c.bf16 %v1487, %v1486
        %v1545 = vpack.c.bf16 %v1489, %v1488
        %v1546 = vpack.c.bf16 %v1491, %v1490
        %v1547 = vpack.c.bf16 %v1493, %v1492
        %v1548 = vpack.c.bf16 %v1495, %v1494
        %v1549 = vpack.c.bf16 %v1497, %v1496
        %v1550 = vpack.c.bf16 %v1499, %v1498
        %v1551 = vpack.c.bf16 %v1501, %v1500
        %v1552 = vpack.c.bf16 %v1503, %v1502
        %v1553 = vpack.c.bf16 %v1505, %v1504
        %1554 = vst [vmem:[#allocation3 + $0x8] sm:$0xff] %v1538
        %1555 = vst [vmem:[#allocation3 + $0x28] sm:$0xff] %v1539
        %1556 = vst [vmem:[#allocation3 + $0x48] sm:$0xff] %v1540
        %1557 = vst [vmem:[#allocation3 + $0x68] sm:$0xff] %v1541
        %1558 = vst [vmem:[#allocation3 + $0x88] sm:$0xff] %v1542
        %1559 = vst [vmem:[#allocation3 + $0xa8] sm:$0xff] %v1543
        %1560 = vst [vmem:[#allocation3 + $0xc8] sm:$0xff] %v1544
        %1561 = vst [vmem:[#allocation3 + $0xe8] sm:$0xff] %v1545
        %1562 = vst [vmem:[#allocation3 + $0x108] sm:$0xff] %v1546
        %1563 = vst [vmem:[#allocation3 + $0x128] sm:$0xff] %v1547
        %1564 = vst [vmem:[#allocation3 + $0x148] sm:$0xff] %v1548
        %1565 = vst [vmem:[#allocation3 + $0x168] sm:$0xff] %v1549
        %1566 = vst [vmem:[#allocation3 + $0x188] sm:$0xff] %v1550
        %1567 = vst [vmem:[#allocation3 + $0x1a8] sm:$0xff] %v1551
        %1568 = vst [vmem:[#allocation3 + $0x1c8] sm:$0xff] %v1552
        %1569 = vst [vmem:[#allocation3 + $0x1e8] sm:$0xff] %v1553
        %v1570 = vld [vmem:[#allocation2 + $0x6] sm:$0xff]
        %v1571 = vld [vmem:[#allocation2 + $0xe] sm:$0xff]
        %v1572 = vld [vmem:[#allocation2 + $0x26] sm:$0xff]
        %v1573 = vld [vmem:[#allocation2 + $0x2e] sm:$0xff]
        %v1574 = vld [vmem:[#allocation2 + $0x46] sm:$0xff]
        %v1575 = vld [vmem:[#allocation2 + $0x4e] sm:$0xff]
        %v1576 = vld [vmem:[#allocation2 + $0x66] sm:$0xff]
        %v1577 = vld [vmem:[#allocation2 + $0x6e] sm:$0xff]
        %v1578 = vld [vmem:[#allocation2 + $0x86] sm:$0xff]
        %v1579 = vld [vmem:[#allocation2 + $0x8e] sm:$0xff]
        %v1580 = vld [vmem:[#allocation2 + $0xa6] sm:$0xff]
        %v1581 = vld [vmem:[#allocation2 + $0xae] sm:$0xff]
        %v1582 = vld [vmem:[#allocation2 + $0xc6] sm:$0xff]
        %v1583 = vld [vmem:[#allocation2 + $0xce] sm:$0xff]
        %v1584 = vld [vmem:[#allocation2 + $0xe6] sm:$0xff]
        %v1585 = vld [vmem:[#allocation2 + $0xee] sm:$0xff]
        %v1586 = vld [vmem:[#allocation2 + $0x106] sm:$0xff]
        %v1587 = vld [vmem:[#allocation2 + $0x10e] sm:$0xff]
        %v1588 = vld [vmem:[#allocation2 + $0x126] sm:$0xff]
        %v1589 = vld [vmem:[#allocation2 + $0x12e] sm:$0xff]
        %v1590 = vld [vmem:[#allocation2 + $0x146] sm:$0xff]
        %v1591 = vld [vmem:[#allocation2 + $0x14e] sm:$0xff]
        %v1592 = vld [vmem:[#allocation2 + $0x166] sm:$0xff]
        %v1593 = vld [vmem:[#allocation2 + $0x16e] sm:$0xff]
        %v1594 = vld [vmem:[#allocation2 + $0x186] sm:$0xff]
        %v1595 = vld [vmem:[#allocation2 + $0x18e] sm:$0xff]
        %v1596 = vld [vmem:[#allocation2 + $0x1a6] sm:$0xff]
        %v1597 = vld [vmem:[#allocation2 + $0x1ae] sm:$0xff]
        %v1598 = vld [vmem:[#allocation2 + $0x1c6] sm:$0xff]
        %v1599 = vld [vmem:[#allocation2 + $0x1ce] sm:$0xff]
        %v1600 = vld [vmem:[#allocation2 + $0x1e6] sm:$0xff]
        %v1601 = vld [vmem:[#allocation2 + $0x1ee] sm:$0xff]
        %v1602 = vld [vmem:[#allocation2 + $0x206] sm:$0xff]
        %v1603 = vld [vmem:[#allocation2 + $0x20e] sm:$0xff]
        %v1604 = vld [vmem:[#allocation2 + $0x226] sm:$0xff]
        %v1605 = vld [vmem:[#allocation2 + $0x22e] sm:$0xff]
        %v1606 = vld [vmem:[#allocation2 + $0x246] sm:$0xff]
        %v1607 = vld [vmem:[#allocation2 + $0x24e] sm:$0xff]
        %v1608 = vld [vmem:[#allocation2 + $0x266] sm:$0xff]
        %v1609 = vld [vmem:[#allocation2 + $0x26e] sm:$0xff]
        %v1610 = vld [vmem:[#allocation2 + $0x7] sm:$0xff]
        %v1611 = vld [vmem:[#allocation2 + $0xf] sm:$0xff]
        %v1612 = vld [vmem:[#allocation2 + $0x27] sm:$0xff]
        %v1613 = vld [vmem:[#allocation2 + $0x2f] sm:$0xff]
        %v1614 = vld [vmem:[#allocation2 + $0x47] sm:$0xff]
        %v1615 = vld [vmem:[#allocation2 + $0x4f] sm:$0xff]
        %v1616 = vld [vmem:[#allocation2 + $0x67] sm:$0xff]
        %v1617 = vld [vmem:[#allocation2 + $0x6f] sm:$0xff]
        %v1618 = vld [vmem:[#allocation2 + $0x87] sm:$0xff]
        %v1619 = vld [vmem:[#allocation2 + $0x8f] sm:$0xff]
        %v1620 = vld [vmem:[#allocation2 + $0xa7] sm:$0xff]
        %v1621 = vld [vmem:[#allocation2 + $0xaf] sm:$0xff]
        %v1622 = vld [vmem:[#allocation2 + $0xc7] sm:$0xff]
        %v1623 = vld [vmem:[#allocation2 + $0xcf] sm:$0xff]
        %v1624 = vld [vmem:[#allocation2 + $0xe7] sm:$0xff]
        %v1625 = vld [vmem:[#allocation2 + $0xef] sm:$0xff]
        %v1626 = vld [vmem:[#allocation2 + $0x107] sm:$0xff]
        %v1627 = vld [vmem:[#allocation2 + $0x10f] sm:$0xff]
        %v1628 = vld [vmem:[#allocation2 + $0x127] sm:$0xff]
        %v1629 = vld [vmem:[#allocation2 + $0x12f] sm:$0xff]
        %v1630 = vld [vmem:[#allocation2 + $0x147] sm:$0xff]
        %v1631 = vld [vmem:[#allocation2 + $0x14f] sm:$0xff]
        %v1632 = vld [vmem:[#allocation2 + $0x167] sm:$0xff]
        %v1633 = vld [vmem:[#allocation2 + $0x16f] sm:$0xff]
        %v1634 = vld [vmem:[#allocation2 + $0x187] sm:$0xff]
        %v1635 = vld [vmem:[#allocation2 + $0x18f] sm:$0xff]
        %v1636 = vld [vmem:[#allocation2 + $0x1a7] sm:$0xff]
        %v1637 = vld [vmem:[#allocation2 + $0x1af] sm:$0xff]
        %v1638 = vld [vmem:[#allocation2 + $0x1c7] sm:$0xff]
        %v1639 = vld [vmem:[#allocation2 + $0x1cf] sm:$0xff]
        %v1640 = vld [vmem:[#allocation2 + $0x1e7] sm:$0xff]
        %v1641 = vld [vmem:[#allocation2 + $0x1ef] sm:$0xff]
        %v1642 = vld [vmem:[#allocation2 + $0x207] sm:$0xff]
        %v1643 = vld [vmem:[#allocation2 + $0x20f] sm:$0xff]
        %v1644 = vld [vmem:[#allocation2 + $0x227] sm:$0xff]
        %v1645 = vld [vmem:[#allocation2 + $0x22f] sm:$0xff]
        %v1646 = vld [vmem:[#allocation2 + $0x247] sm:$0xff]
        %v1647 = vld [vmem:[#allocation2 + $0x24f] sm:$0xff]
        %v1648 = vld [vmem:[#allocation2 + $0x267] sm:$0xff]
        %v1649 = vld [vmem:[#allocation2 + $0x26f] sm:$0xff]
        %v1650 = vmax.f32 %v1570, %v1610
        %v1651 = vmax.f32 %v1571, %v1611
        %v1652 = vmax.f32 %v1572, %v1612
        %v1653 = vmax.f32 %v1573, %v1613
        %v1654 = vmax.f32 %v1574, %v1614
        %v1655 = vmax.f32 %v1575, %v1615
        %v1656 = vmax.f32 %v1576, %v1616
        %v1657 = vmax.f32 %v1577, %v1617
        %v1658 = vmax.f32 %v1578, %v1618
        %v1659 = vmax.f32 %v1579, %v1619
        %v1660 = vmax.f32 %v1580, %v1620
        %v1661 = vmax.f32 %v1581, %v1621
        %v1662 = vmax.f32 %v1582, %v1622
        %v1663 = vmax.f32 %v1583, %v1623
        %v1664 = vmax.f32 %v1584, %v1624
        %v1665 = vmax.f32 %v1585, %v1625
        %v1666 = vmax.f32 %v1586, %v1626
        %v1667 = vmax.f32 %v1587, %v1627
        %v1668 = vmax.f32 %v1588, %v1628
        %v1669 = vmax.f32 %v1589, %v1629
        %v1670 = vmax.f32 %v1590, %v1630
        %v1671 = vmax.f32 %v1591, %v1631
        %v1672 = vmax.f32 %v1592, %v1632
        %v1673 = vmax.f32 %v1593, %v1633
        %v1674 = vmax.f32 %v1594, %v1634
        %v1675 = vmax.f32 %v1595, %v1635
        %v1676 = vmax.f32 %v1596, %v1636
        %v1677 = vmax.f32 %v1597, %v1637
        %v1678 = vmax.f32 %v1598, %v1638
        %v1679 = vmax.f32 %v1599, %v1639
        %v1680 = vmax.f32 %v1600, %v1640
        %v1681 = vmax.f32 %v1601, %v1641
        %v1682 = vmax.f32 %v1602, %v1642
        %v1683 = vmax.f32 %v1603, %v1643
        %v1684 = vmax.f32 %v1604, %v1644
        %v1685 = vmax.f32 %v1605, %v1645
        %v1686 = vmax.f32 %v1606, %v1646
        %v1687 = vmax.f32 %v1607, %v1647
        %v1688 = vmax.f32 %v1608, %v1648
        %v1689 = vmax.f32 %v1609, %v1649
        %v1690 = vld [vmem:[#allocation2 + $0x8] sm:$0xff]
        %v1691 = vld [vmem:[#allocation2 + $0x10] sm:$0xff]
        %v1692 = vld [vmem:[#allocation2 + $0x28] sm:$0xff]
        %v1693 = vld [vmem:[#allocation2 + $0x30] sm:$0xff]
        %v1694 = vld [vmem:[#allocation2 + $0x48] sm:$0xff]
        %v1695 = vld [vmem:[#allocation2 + $0x50] sm:$0xff]
        %v1696 = vld [vmem:[#allocation2 + $0x68] sm:$0xff]
        %v1697 = vld [vmem:[#allocation2 + $0x70] sm:$0xff]
        %v1698 = vld [vmem:[#allocation2 + $0x88] sm:$0xff]
        %v1699 = vld [vmem:[#allocation2 + $0x90] sm:$0xff]
        %v1700 = vld [vmem:[#allocation2 + $0xa8] sm:$0xff]
        %v1701 = vld [vmem:[#allocation2 + $0xb0] sm:$0xff]
        %v1702 = vld [vmem:[#allocation2 + $0xc8] sm:$0xff]
        %v1703 = vld [vmem:[#allocation2 + $0xd0] sm:$0xff]
        %v1704 = vld [vmem:[#allocation2 + $0xe8] sm:$0xff]
        %v1705 = vld [vmem:[#allocation2 + $0xf0] sm:$0xff]
        %v1706 = vld [vmem:[#allocation2 + $0x108] sm:$0xff]
        %v1707 = vld [vmem:[#allocation2 + $0x110] sm:$0xff]
        %v1708 = vld [vmem:[#allocation2 + $0x128] sm:$0xff]
        %v1709 = vld [vmem:[#allocation2 + $0x130] sm:$0xff]
        %v1710 = vld [vmem:[#allocation2 + $0x148] sm:$0xff]
        %v1711 = vld [vmem:[#allocation2 + $0x150] sm:$0xff]
        %v1712 = vld [vmem:[#allocation2 + $0x168] sm:$0xff]
        %v1713 = vld [vmem:[#allocation2 + $0x170] sm:$0xff]
        %v1714 = vld [vmem:[#allocation2 + $0x188] sm:$0xff]
        %v1715 = vld [vmem:[#allocation2 + $0x190] sm:$0xff]
        %v1716 = vld [vmem:[#allocation2 + $0x1a8] sm:$0xff]
        %v1717 = vld [vmem:[#allocation2 + $0x1b0] sm:$0xff]
        %v1718 = vld [vmem:[#allocation2 + $0x1c8] sm:$0xff]
        %v1719 = vld [vmem:[#allocation2 + $0x1d0] sm:$0xff]
        %v1720 = vld [vmem:[#allocation2 + $0x1e8] sm:$0xff]
        %v1721 = vld [vmem:[#allocation2 + $0x1f0] sm:$0xff]
        %v1722 = vld [vmem:[#allocation2 + $0x208] sm:$0xff]
        %v1723 = vld [vmem:[#allocation2 + $0x210] sm:$0xff]
        %v1724 = vld [vmem:[#allocation2 + $0x228] sm:$0xff]
        %v1725 = vld [vmem:[#allocation2 + $0x230] sm:$0xff]
        %v1726 = vld [vmem:[#allocation2 + $0x248] sm:$0xff]
        %v1727 = vld [vmem:[#allocation2 + $0x250] sm:$0xff]
        %v1728 = vld [vmem:[#allocation2 + $0x268] sm:$0xff]
        %v1729 = vld [vmem:[#allocation2 + $0x270] sm:$0xff]
        %v1730 = vmax.f32 %v1650, %v1690
        %v1731 = vmax.f32 %v1651, %v1691
        %v1732 = vmax.f32 %v1652, %v1692
        %v1733 = vmax.f32 %v1653, %v1693
        %v1734 = vmax.f32 %v1654, %v1694
        %v1735 = vmax.f32 %v1655, %v1695
        %v1736 = vmax.f32 %v1656, %v1696
        %v1737 = vmax.f32 %v1657, %v1697
        %v1738 = vmax.f32 %v1658, %v1698
        %v1739 = vmax.f32 %v1659, %v1699
        %v1740 = vmax.f32 %v1660, %v1700
        %v1741 = vmax.f32 %v1661, %v1701
        %v1742 = vmax.f32 %v1662, %v1702
        %v1743 = vmax.f32 %v1663, %v1703
        %v1744 = vmax.f32 %v1664, %v1704
        %v1745 = vmax.f32 %v1665, %v1705
        %v1746 = vmax.f32 %v1666, %v1706
        %v1747 = vmax.f32 %v1667, %v1707
        %v1748 = vmax.f32 %v1668, %v1708
        %v1749 = vmax.f32 %v1669, %v1709
        %v1750 = vmax.f32 %v1670, %v1710
        %v1751 = vmax.f32 %v1671, %v1711
        %v1752 = vmax.f32 %v1672, %v1712
        %v1753 = vmax.f32 %v1673, %v1713
        %v1754 = vmax.f32 %v1674, %v1714
        %v1755 = vmax.f32 %v1675, %v1715
        %v1756 = vmax.f32 %v1676, %v1716
        %v1757 = vmax.f32 %v1677, %v1717
        %v1758 = vmax.f32 %v1678, %v1718
        %v1759 = vmax.f32 %v1679, %v1719
        %v1760 = vmax.f32 %v1680, %v1720
        %v1761 = vmax.f32 %v1681, %v1721
        %v1762 = vmax.f32 %v1682, %v1722
        %v1763 = vmax.f32 %v1683, %v1723
        %v1764 = vmax.f32 %v1684, %v1724
        %v1765 = vmax.f32 %v1685, %v1725
        %v1766 = vmax.f32 %v1686, %v1726
        %v1767 = vmax.f32 %v1687, %v1727
        %v1768 = vmax.f32 %v1688, %v1728
        %v1769 = vmax.f32 %v1689, %v1729
        %v1770 = vld [vmem:[#allocation2 + $0x9] sm:$0xff]
        %v1771 = vld [vmem:[#allocation2 + $0x11] sm:$0xff]
        %v1772 = vld [vmem:[#allocation2 + $0x29] sm:$0xff]
        %v1773 = vld [vmem:[#allocation2 + $0x31] sm:$0xff]
        %v1774 = vld [vmem:[#allocation2 + $0x49] sm:$0xff]
        %v1775 = vld [vmem:[#allocation2 + $0x51] sm:$0xff]
        %v1776 = vld [vmem:[#allocation2 + $0x69] sm:$0xff]
        %v1777 = vld [vmem:[#allocation2 + $0x71] sm:$0xff]
        %v1778 = vld [vmem:[#allocation2 + $0x89] sm:$0xff]
        %v1779 = vld [vmem:[#allocation2 + $0x91] sm:$0xff]
        %v1780 = vld [vmem:[#allocation2 + $0xa9] sm:$0xff]
        %v1781 = vld [vmem:[#allocation2 + $0xb1] sm:$0xff]
        %v1782 = vld [vmem:[#allocation2 + $0xc9] sm:$0xff]
        %v1783 = vld [vmem:[#allocation2 + $0xd1] sm:$0xff]
        %v1784 = vld [vmem:[#allocation2 + $0xe9] sm:$0xff]
        %v1785 = vld [vmem:[#allocation2 + $0xf1] sm:$0xff]
        %v1786 = vld [vmem:[#allocation2 + $0x109] sm:$0xff]
        %v1787 = vld [vmem:[#allocation2 + $0x111] sm:$0xff]
        %v1788 = vld [vmem:[#allocation2 + $0x129] sm:$0xff]
        %v1789 = vld [vmem:[#allocation2 + $0x131] sm:$0xff]
        %v1790 = vld [vmem:[#allocation2 + $0x149] sm:$0xff]
        %v1791 = vld [vmem:[#allocation2 + $0x151] sm:$0xff]
        %v1792 = vld [vmem:[#allocation2 + $0x169] sm:$0xff]
        %v1793 = vld [vmem:[#allocation2 + $0x171] sm:$0xff]
        %v1794 = vld [vmem:[#allocation2 + $0x189] sm:$0xff]
        %v1795 = vld [vmem:[#allocation2 + $0x191] sm:$0xff]
        %v1796 = vld [vmem:[#allocation2 + $0x1a9] sm:$0xff]
        %v1797 = vld [vmem:[#allocation2 + $0x1b1] sm:$0xff]
        %v1798 = vld [vmem:[#allocation2 + $0x1c9] sm:$0xff]
        %v1799 = vld [vmem:[#allocation2 + $0x1d1] sm:$0xff]
        %v1800 = vld [vmem:[#allocation2 + $0x1e9] sm:$0xff]
        %v1801 = vld [vmem:[#allocation2 + $0x1f1] sm:$0xff]
        %v1802 = vld [vmem:[#allocation2 + $0x209] sm:$0xff]
        %v1803 = vld [vmem:[#allocation2 + $0x211] sm:$0xff]
        %v1804 = vld [vmem:[#allocation2 + $0x229] sm:$0xff]
        %v1805 = vld [vmem:[#allocation2 + $0x231] sm:$0xff]
        %v1806 = vld [vmem:[#allocation2 + $0x249] sm:$0xff]
        %v1807 = vld [vmem:[#allocation2 + $0x251] sm:$0xff]
        %v1808 = vld [vmem:[#allocation2 + $0x269] sm:$0xff]
        %v1809 = vld [vmem:[#allocation2 + $0x271] sm:$0xff]
        %v1810 = vmax.f32 %v1730, %v1770
        %v1811 = vmax.f32 %v1731, %v1771
        %v1812 = vmax.f32 %v1732, %v1772
        %v1813 = vmax.f32 %v1733, %v1773
        %v1814 = vmax.f32 %v1734, %v1774
        %v1815 = vmax.f32 %v1735, %v1775
        %v1816 = vmax.f32 %v1736, %v1776
        %v1817 = vmax.f32 %v1737, %v1777
        %v1818 = vmax.f32 %v1738, %v1778
        %v1819 = vmax.f32 %v1739, %v1779
        %v1820 = vmax.f32 %v1740, %v1780
        %v1821 = vmax.f32 %v1741, %v1781
        %v1822 = vmax.f32 %v1742, %v1782
        %v1823 = vmax.f32 %v1743, %v1783
        %v1824 = vmax.f32 %v1744, %v1784
        %v1825 = vmax.f32 %v1745, %v1785
        %v1826 = vmax.f32 %v1746, %v1786
        %v1827 = vmax.f32 %v1747, %v1787
        %v1828 = vmax.f32 %v1748, %v1788
        %v1829 = vmax.f32 %v1749, %v1789
        %v1830 = vmax.f32 %v1750, %v1790
        %v1831 = vmax.f32 %v1751, %v1791
        %v1832 = vmax.f32 %v1752, %v1792
        %v1833 = vmax.f32 %v1753, %v1793
        %v1834 = vmax.f32 %v1754, %v1794
        %v1835 = vmax.f32 %v1755, %v1795
        %v1836 = vmax.f32 %v1756, %v1796
        %v1837 = vmax.f32 %v1757, %v1797
        %v1838 = vmax.f32 %v1758, %v1798
        %v1839 = vmax.f32 %v1759, %v1799
        %v1840 = vmax.f32 %v1760, %v1800
        %v1841 = vmax.f32 %v1761, %v1801
        %v1842 = vmax.f32 %v1762, %v1802
        %v1843 = vmax.f32 %v1763, %v1803
        %v1844 = vmax.f32 %v1764, %v1804
        %v1845 = vmax.f32 %v1765, %v1805
        %v1846 = vmax.f32 %v1766, %v1806
        %v1847 = vmax.f32 %v1767, %v1807
        %v1848 = vmax.f32 %v1768, %v1808
        %v1849 = vmax.f32 %v1769, %v1809
        %v1850 = vld [vmem:[#allocation2 + $0xa] sm:$0xff]
        %v1851 = vld [vmem:[#allocation2 + $0x12] sm:$0xff]
        %v1852 = vld [vmem:[#allocation2 + $0x2a] sm:$0xff]
        %v1853 = vld [vmem:[#allocation2 + $0x32] sm:$0xff]
        %v1854 = vld [vmem:[#allocation2 + $0x4a] sm:$0xff]
        %v1855 = vld [vmem:[#allocation2 + $0x52] sm:$0xff]
        %v1856 = vld [vmem:[#allocation2 + $0x6a] sm:$0xff]
        %v1857 = vld [vmem:[#allocation2 + $0x72] sm:$0xff]
        %v1858 = vld [vmem:[#allocation2 + $0x8a] sm:$0xff]
        %v1859 = vld [vmem:[#allocation2 + $0x92] sm:$0xff]
        %v1860 = vld [vmem:[#allocation2 + $0xaa] sm:$0xff]
        %v1861 = vld [vmem:[#allocation2 + $0xb2] sm:$0xff]
        %v1862 = vld [vmem:[#allocation2 + $0xca] sm:$0xff]
        %v1863 = vld [vmem:[#allocation2 + $0xd2] sm:$0xff]
        %v1864 = vld [vmem:[#allocation2 + $0xea] sm:$0xff]
        %v1865 = vld [vmem:[#allocation2 + $0xf2] sm:$0xff]
        %v1866 = vld [vmem:[#allocation2 + $0x10a] sm:$0xff]
        %v1867 = vld [vmem:[#allocation2 + $0x112] sm:$0xff]
        %v1868 = vld [vmem:[#allocation2 + $0x12a] sm:$0xff]
        %v1869 = vld [vmem:[#allocation2 + $0x132] sm:$0xff]
        %v1870 = vld [vmem:[#allocation2 + $0x14a] sm:$0xff]
        %v1871 = vld [vmem:[#allocation2 + $0x152] sm:$0xff]
        %v1872 = vld [vmem:[#allocation2 + $0x16a] sm:$0xff]
        %v1873 = vld [vmem:[#allocation2 + $0x172] sm:$0xff]
        %v1874 = vld [vmem:[#allocation2 + $0x18a] sm:$0xff]
        %v1875 = vld [vmem:[#allocation2 + $0x192] sm:$0xff]
        %v1876 = vld [vmem:[#allocation2 + $0x1aa] sm:$0xff]
        %v1877 = vld [vmem:[#allocation2 + $0x1b2] sm:$0xff]
        %v1878 = vld [vmem:[#allocation2 + $0x1ca] sm:$0xff]
        %v1879 = vld [vmem:[#allocation2 + $0x1d2] sm:$0xff]
        %v1880 = vld [vmem:[#allocation2 + $0x1ea] sm:$0xff]
        %v1881 = vld [vmem:[#allocation2 + $0x1f2] sm:$0xff]
        %v1882 = vld [vmem:[#allocation2 + $0x20a] sm:$0xff]
        %v1883 = vld [vmem:[#allocation2 + $0x212] sm:$0xff]
        %v1884 = vld [vmem:[#allocation2 + $0x22a] sm:$0xff]
        %v1885 = vld [vmem:[#allocation2 + $0x232] sm:$0xff]
        %v1886 = vld [vmem:[#allocation2 + $0x24a] sm:$0xff]
        %v1887 = vld [vmem:[#allocation2 + $0x252] sm:$0xff]
        %v1888 = vld [vmem:[#allocation2 + $0x26a] sm:$0xff]
        %v1889 = vld [vmem:[#allocation2 + $0x272] sm:$0xff]
        %v1890 = vmax.f32 %v1810, %v1850
        %v1891 = vmax.f32 %v1811, %v1851
        %v1892 = vmax.f32 %v1812, %v1852
        %v1893 = vmax.f32 %v1813, %v1853
        %v1894 = vmax.f32 %v1814, %v1854
        %v1895 = vmax.f32 %v1815, %v1855
        %v1896 = vmax.f32 %v1816, %v1856
        %v1897 = vmax.f32 %v1817, %v1857
        %v1898 = vmax.f32 %v1818, %v1858
        %v1899 = vmax.f32 %v1819, %v1859
        %v1900 = vmax.f32 %v1820, %v1860
        %v1901 = vmax.f32 %v1821, %v1861
        %v1902 = vmax.f32 %v1822, %v1862
        %v1903 = vmax.f32 %v1823, %v1863
        %v1904 = vmax.f32 %v1824, %v1864
        %v1905 = vmax.f32 %v1825, %v1865
        %v1906 = vmax.f32 %v1826, %v1866
        %v1907 = vmax.f32 %v1827, %v1867
        %v1908 = vmax.f32 %v1828, %v1868
        %v1909 = vmax.f32 %v1829, %v1869
        %v1910 = vmax.f32 %v1830, %v1870
        %v1911 = vmax.f32 %v1831, %v1871
        %v1912 = vmax.f32 %v1832, %v1872
        %v1913 = vmax.f32 %v1833, %v1873
        %v1914 = vmax.f32 %v1834, %v1874
        %v1915 = vmax.f32 %v1835, %v1875
        %v1916 = vmax.f32 %v1836, %v1876
        %v1917 = vmax.f32 %v1837, %v1877
        %v1918 = vmax.f32 %v1838, %v1878
        %v1919 = vmax.f32 %v1839, %v1879
        %v1920 = vmax.f32 %v1840, %v1880
        %v1921 = vmax.f32 %v1841, %v1881
        %v1922 = vmax.f32 %v1842, %v1882
        %v1923 = vmax.f32 %v1843, %v1883
        %v1924 = vmax.f32 %v1844, %v1884
        %v1925 = vmax.f32 %v1845, %v1885
        %v1926 = vmax.f32 %v1846, %v1886
        %v1927 = vmax.f32 %v1847, %v1887
        %v1928 = vmax.f32 %v1848, %v1888
        %v1929 = vmax.f32 %v1849, %v1889
        %v1930 = vmax.f32 %v1890, %v1892
        %v1931 = vmax.f32 %v1891, %v1893
        %v1932 = vmax.f32 %v1892, %v1894
        %v1933 = vmax.f32 %v1893, %v1895
        %v1934 = vmax.f32 %v1894, %v1896
        %v1935 = vmax.f32 %v1895, %v1897
        %v1936 = vmax.f32 %v1896, %v1898
        %v1937 = vmax.f32 %v1897, %v1899
        %v1938 = vmax.f32 %v1898, %v1900
        %v1939 = vmax.f32 %v1899, %v1901
        %v1940 = vmax.f32 %v1900, %v1902
        %v1941 = vmax.f32 %v1901, %v1903
        %v1942 = vmax.f32 %v1902, %v1904
        %v1943 = vmax.f32 %v1903, %v1905
        %v1944 = vmax.f32 %v1904, %v1906
        %v1945 = vmax.f32 %v1905, %v1907
        %v1946 = vmax.f32 %v1906, %v1908
        %v1947 = vmax.f32 %v1907, %v1909
        %v1948 = vmax.f32 %v1908, %v1910
        %v1949 = vmax.f32 %v1909, %v1911
        %v1950 = vmax.f32 %v1910, %v1912
        %v1951 = vmax.f32 %v1911, %v1913
        %v1952 = vmax.f32 %v1912, %v1914
        %v1953 = vmax.f32 %v1913, %v1915
        %v1954 = vmax.f32 %v1914, %v1916
        %v1955 = vmax.f32 %v1915, %v1917
        %v1956 = vmax.f32 %v1916, %v1918
        %v1957 = vmax.f32 %v1917, %v1919
        %v1958 = vmax.f32 %v1918, %v1920
        %v1959 = vmax.f32 %v1919, %v1921
        %v1960 = vmax.f32 %v1920, %v1922
        %v1961 = vmax.f32 %v1921, %v1923
        %v1962 = vmax.f32 %v1930, %v1894
        %v1963 = vmax.f32 %v1931, %v1895
        %v1964 = vmax.f32 %v1932, %v1896
        %v1965 = vmax.f32 %v1933, %v1897
        %v1966 = vmax.f32 %v1934, %v1898
        %v1967 = vmax.f32 %v1935, %v1899
        %v1968 = vmax.f32 %v1936, %v1900
        %v1969 = vmax.f32 %v1937, %v1901
        %v1970 = vmax.f32 %v1938, %v1902
        %v1971 = vmax.f32 %v1939, %v1903
        %v1972 = vmax.f32 %v1940, %v1904
        %v1973 = vmax.f32 %v1941, %v1905
        %v1974 = vmax.f32 %v1942, %v1906
        %v1975 = vmax.f32 %v1943, %v1907
        %v1976 = vmax.f32 %v1944, %v1908
        %v1977 = vmax.f32 %v1945, %v1909
        %v1978 = vmax.f32 %v1946, %v1910
        %v1979 = vmax.f32 %v1947, %v1911
        %v1980 = vmax.f32 %v1948, %v1912
        %v1981 = vmax.f32 %v1949, %v1913
        %v1982 = vmax.f32 %v1950, %v1914
        %v1983 = vmax.f32 %v1951, %v1915
        %v1984 = vmax.f32 %v1952, %v1916
        %v1985 = vmax.f32 %v1953, %v1917
        %v1986 = vmax.f32 %v1954, %v1918
        %v1987 = vmax.f32 %v1955, %v1919
        %v1988 = vmax.f32 %v1956, %v1920
        %v1989 = vmax.f32 %v1957, %v1921
        %v1990 = vmax.f32 %v1958, %v1922
        %v1991 = vmax.f32 %v1959, %v1923
        %v1992 = vmax.f32 %v1960, %v1924
        %v1993 = vmax.f32 %v1961, %v1925
        %v1994 = vmax.f32 %v1962, %v1896
        %v1995 = vmax.f32 %v1963, %v1897
        %v1996 = vmax.f32 %v1964, %v1898
        %v1997 = vmax.f32 %v1965, %v1899
        %v1998 = vmax.f32 %v1966, %v1900
        %v1999 = vmax.f32 %v1967, %v1901
        %v2000 = vmax.f32 %v1968, %v1902
        %v2001 = vmax.f32 %v1969, %v1903
        %v2002 = vmax.f32 %v1970, %v1904
        %v2003 = vmax.f32 %v1971, %v1905
        %v2004 = vmax.f32 %v1972, %v1906
        %v2005 = vmax.f32 %v1973, %v1907
        %v2006 = vmax.f32 %v1974, %v1908
        %v2007 = vmax.f32 %v1975, %v1909
        %v2008 = vmax.f32 %v1976, %v1910
        %v2009 = vmax.f32 %v1977, %v1911
        %v2010 = vmax.f32 %v1978, %v1912
        %v2011 = vmax.f32 %v1979, %v1913
        %v2012 = vmax.f32 %v1980, %v1914
        %v2013 = vmax.f32 %v1981, %v1915
        %v2014 = vmax.f32 %v1982, %v1916
        %v2015 = vmax.f32 %v1983, %v1917
        %v2016 = vmax.f32 %v1984, %v1918
        %v2017 = vmax.f32 %v1985, %v1919
        %v2018 = vmax.f32 %v1986, %v1920
        %v2019 = vmax.f32 %v1987, %v1921
        %v2020 = vmax.f32 %v1988, %v1922
        %v2021 = vmax.f32 %v1989, %v1923
        %v2022 = vmax.f32 %v1990, %v1924
        %v2023 = vmax.f32 %v1991, %v1925
        %v2024 = vmax.f32 %v1992, %v1926
        %v2025 = vmax.f32 %v1993, %v1927
        %v2026 = vmax.f32 %v1994, %v1898
        %v2027 = vmax.f32 %v1995, %v1899
        %v2028 = vmax.f32 %v1996, %v1900
        %v2029 = vmax.f32 %v1997, %v1901
        %v2030 = vmax.f32 %v1998, %v1902
        %v2031 = vmax.f32 %v1999, %v1903
        %v2032 = vmax.f32 %v2000, %v1904
        %v2033 = vmax.f32 %v2001, %v1905
        %v2034 = vmax.f32 %v2002, %v1906
        %v2035 = vmax.f32 %v2003, %v1907
        %v2036 = vmax.f32 %v2004, %v1908
        %v2037 = vmax.f32 %v2005, %v1909
        %v2038 = vmax.f32 %v2006, %v1910
        %v2039 = vmax.f32 %v2007, %v1911
        %v2040 = vmax.f32 %v2008, %v1912
        %v2041 = vmax.f32 %v2009, %v1913
        %v2042 = vmax.f32 %v2010, %v1914
        %v2043 = vmax.f32 %v2011, %v1915
        %v2044 = vmax.f32 %v2012, %v1916
        %v2045 = vmax.f32 %v2013, %v1917
        %v2046 = vmax.f32 %v2014, %v1918
        %v2047 = vmax.f32 %v2015, %v1919
        %v2048 = vmax.f32 %v2016, %v1920
        %v2049 = vmax.f32 %v2017, %v1921
        %v2050 = vmax.f32 %v2018, %v1922
        %v2051 = vmax.f32 %v2019, %v1923
        %v2052 = vmax.f32 %v2020, %v1924
        %v2053 = vmax.f32 %v2021, %v1925
        %v2054 = vmax.f32 %v2022, %v1926
        %v2055 = vmax.f32 %v2023, %v1927
        %v2056 = vmax.f32 %v2024, %v1928
        %v2057 = vmax.f32 %v2025, %v1929
        %2058 = vst [vmem:[%s953 + $0x8] sm:$0xff] %v2026
        %2059 = vst [vmem:[%s953 + $0x10] sm:$0xff] %v2027
        %2060 = vst [vmem:[%s953 + $0x28] sm:$0xff] %v2028
        %2061 = vst [vmem:[%s953 + $0x30] sm:$0xff] %v2029
        %2062 = vst [vmem:[%s953 + $0x48] sm:$0xff] %v2030
        %2063 = vst [vmem:[%s953 + $0x50] sm:$0xff] %v2031
        %2064 = vst [vmem:[%s953 + $0x68] sm:$0xff] %v2032
        %2065 = vst [vmem:[%s953 + $0x70] sm:$0xff] %v2033
        %2066 = vst [vmem:[%s953 + $0x88] sm:$0xff] %v2034
        %2067 = vst [vmem:[%s953 + $0x90] sm:$0xff] %v2035
        %2068 = vst [vmem:[%s953 + $0xa8] sm:$0xff] %v2036
        %2069 = vst [vmem:[%s953 + $0xb0] sm:$0xff] %v2037
        %2070 = vst [vmem:[%s953 + $0xc8] sm:$0xff] %v2038
        %2071 = vst [vmem:[%s953 + $0xd0] sm:$0xff] %v2039
        %2072 = vst [vmem:[%s953 + $0xe8] sm:$0xff] %v2040
        %2073 = vst [vmem:[%s953 + $0xf0] sm:$0xff] %v2041
        %2074 = vst [vmem:[%s953 + $0x108] sm:$0xff] %v2042
        %2075 = vst [vmem:[%s953 + $0x110] sm:$0xff] %v2043
        %2076 = vst [vmem:[%s953 + $0x128] sm:$0xff] %v2044
        %2077 = vst [vmem:[%s953 + $0x130] sm:$0xff] %v2045
        %2078 = vst [vmem:[%s953 + $0x148] sm:$0xff] %v2046
        %2079 = vst [vmem:[%s953 + $0x150] sm:$0xff] %v2047
        %2080 = vst [vmem:[%s953 + $0x168] sm:$0xff] %v2048
        %2081 = vst [vmem:[%s953 + $0x170] sm:$0xff] %v2049
        %2082 = vst [vmem:[%s953 + $0x188] sm:$0xff] %v2050
        %2083 = vst [vmem:[%s953 + $0x190] sm:$0xff] %v2051
        %2084 = vst [vmem:[%s953 + $0x1a8] sm:$0xff] %v2052
        %2085 = vst [vmem:[%s953 + $0x1b0] sm:$0xff] %v2053
        %2086 = vst [vmem:[%s953 + $0x1c8] sm:$0xff] %v2054
        %2087 = vst [vmem:[%s953 + $0x1d0] sm:$0xff] %v2055
        %2088 = vst [vmem:[%s953 + $0x1e8] sm:$0xff] %v2056
        %2089 = vst [vmem:[%s953 + $0x1f0] sm:$0xff] %v2057
        %v2090 = vpack.c.bf16 %v2027, %v2026
        %v2091 = vpack.c.bf16 %v2029, %v2028
        %v2092 = vpack.c.bf16 %v2031, %v2030
        %v2093 = vpack.c.bf16 %v2033, %v2032
        %v2094 = vpack.c.bf16 %v2035, %v2034
        %v2095 = vpack.c.bf16 %v2037, %v2036
        %v2096 = vpack.c.bf16 %v2039, %v2038
        %v2097 = vpack.c.bf16 %v2041, %v2040
        %v2098 = vpack.c.bf16 %v2043, %v2042
        %v2099 = vpack.c.bf16 %v2045, %v2044
        %v2100 = vpack.c.bf16 %v2047, %v2046
        %v2101 = vpack.c.bf16 %v2049, %v2048
        %v2102 = vpack.c.bf16 %v2051, %v2050
        %v2103 = vpack.c.bf16 %v2053, %v2052
        %v2104 = vpack.c.bf16 %v2055, %v2054
        %v2105 = vpack.c.bf16 %v2057, %v2056
        %2106 = vst [vmem:[#allocation3 + $0x10] sm:$0xff] %v2090
        %2107 = vst [vmem:[#allocation3 + $0x30] sm:$0xff] %v2091
        %2108 = vst [vmem:[#allocation3 + $0x50] sm:$0xff] %v2092
        %2109 = vst [vmem:[#allocation3 + $0x70] sm:$0xff] %v2093
        %2110 = vst [vmem:[#allocation3 + $0x90] sm:$0xff] %v2094
        %2111 = vst [vmem:[#allocation3 + $0xb0] sm:$0xff] %v2095
        %2112 = vst [vmem:[#allocation3 + $0xd0] sm:$0xff] %v2096
        %2113 = vst [vmem:[#allocation3 + $0xf0] sm:$0xff] %v2097
        %2114 = vst [vmem:[#allocation3 + $0x110] sm:$0xff] %v2098
        %2115 = vst [vmem:[#allocation3 + $0x130] sm:$0xff] %v2099
        %2116 = vst [vmem:[#allocation3 + $0x150] sm:$0xff] %v2100
        %2117 = vst [vmem:[#allocation3 + $0x170] sm:$0xff] %v2101
        %2118 = vst [vmem:[#allocation3 + $0x190] sm:$0xff] %v2102
        %2119 = vst [vmem:[#allocation3 + $0x1b0] sm:$0xff] %v2103
        %2120 = vst [vmem:[#allocation3 + $0x1d0] sm:$0xff] %v2104
        %2121 = vst [vmem:[#allocation3 + $0x1f0] sm:$0xff] %v2105
        %v2122 = vld [vmem:[#allocation2 + $0x6] sm:$0xff]
        %v2123 = vld [vmem:[#allocation2 + $0xe] sm:$0xff]
        %v2124 = vld [vmem:[#allocation2 + $0x26] sm:$0xff]
        %v2125 = vld [vmem:[#allocation2 + $0x2e] sm:$0xff]
        %v2126 = vld [vmem:[#allocation2 + $0x46] sm:$0xff]
        %v2127 = vld [vmem:[#allocation2 + $0x4e] sm:$0xff]
        %v2128 = vld [vmem:[#allocation2 + $0x66] sm:$0xff]
        %v2129 = vld [vmem:[#allocation2 + $0x6e] sm:$0xff]
        %v2130 = vld [vmem:[#allocation2 + $0x86] sm:$0xff]
        %v2131 = vld [vmem:[#allocation2 + $0x8e] sm:$0xff]
        %v2132 = vld [vmem:[#allocation2 + $0xa6] sm:$0xff]
        %v2133 = vld [vmem:[#allocation2 + $0xae] sm:$0xff]
        %v2134 = vld [vmem:[#allocation2 + $0xc6] sm:$0xff]
        %v2135 = vld [vmem:[#allocation2 + $0xce] sm:$0xff]
        %v2136 = vld [vmem:[#allocation2 + $0xe6] sm:$0xff]
        %v2137 = vld [vmem:[#allocation2 + $0xee] sm:$0xff]
        %v2138 = vld [vmem:[#allocation2 + $0x106] sm:$0xff]
        %v2139 = vld [vmem:[#allocation2 + $0x10e] sm:$0xff]
        %v2140 = vld [vmem:[#allocation2 + $0x126] sm:$0xff]
        %v2141 = vld [vmem:[#allocation2 + $0x12e] sm:$0xff]
        %v2142 = vld [vmem:[#allocation2 + $0x146] sm:$0xff]
        %v2143 = vld [vmem:[#allocation2 + $0x14e] sm:$0xff]
        %v2144 = vld [vmem:[#allocation2 + $0x166] sm:$0xff]
        %v2145 = vld [vmem:[#allocation2 + $0x16e] sm:$0xff]
        %v2146 = vld [vmem:[#allocation2 + $0x186] sm:$0xff]
        %v2147 = vld [vmem:[#allocation2 + $0x18e] sm:$0xff]
        %v2148 = vld [vmem:[#allocation2 + $0x1a6] sm:$0xff]
        %v2149 = vld [vmem:[#allocation2 + $0x1ae] sm:$0xff]
        %v2150 = vld [vmem:[#allocation2 + $0x1c6] sm:$0xff]
        %v2151 = vld [vmem:[#allocation2 + $0x1ce] sm:$0xff]
        %v2152 = vld [vmem:[#allocation2 + $0x1e6] sm:$0xff]
        %v2153 = vld [vmem:[#allocation2 + $0x1ee] sm:$0xff]
        %v2154 = vld [vmem:[#allocation2 + $0x206] sm:$0xff]
        %v2155 = vld [vmem:[#allocation2 + $0x20e] sm:$0xff]
        %v2156 = vld [vmem:[#allocation2 + $0x226] sm:$0xff]
        %v2157 = vld [vmem:[#allocation2 + $0x22e] sm:$0xff]
        %v2158 = vld [vmem:[#allocation2 + $0x246] sm:$0xff]
        %v2159 = vld [vmem:[#allocation2 + $0x24e] sm:$0xff]
        %v2160 = vld [vmem:[#allocation2 + $0x266] sm:$0xff]
        %v2161 = vld [vmem:[#allocation2 + $0x26e] sm:$0xff]
        %v2162 = vld [vmem:[#allocation2 + $0x7] sm:$0xff]
        %v2163 = vld [vmem:[#allocation2 + $0xf] sm:$0xff]
        %v2164 = vld [vmem:[#allocation2 + $0x27] sm:$0xff]
        %v2165 = vld [vmem:[#allocation2 + $0x2f] sm:$0xff]
        %v2166 = vld [vmem:[#allocation2 + $0x47] sm:$0xff]
        %v2167 = vld [vmem:[#allocation2 + $0x4f] sm:$0xff]
        %v2168 = vld [vmem:[#allocation2 + $0x67] sm:$0xff]
        %v2169 = vld [vmem:[#allocation2 + $0x6f] sm:$0xff]
        %v2170 = vld [vmem:[#allocation2 + $0x87] sm:$0xff]
        %v2171 = vld [vmem:[#allocation2 + $0x8f] sm:$0xff]
        %v2172 = vld [vmem:[#allocation2 + $0xa7] sm:$0xff]
        %v2173 = vld [vmem:[#allocation2 + $0xaf] sm:$0xff]
        %v2174 = vld [vmem:[#allocation2 + $0xc7] sm:$0xff]
        %v2175 = vld [vmem:[#allocation2 + $0xcf] sm:$0xff]
        %v2176 = vld [vmem:[#allocation2 + $0xe7] sm:$0xff]
        %v2177 = vld [vmem:[#allocation2 + $0xef] sm:$0xff]
        %v2178 = vld [vmem:[#allocation2 + $0x107] sm:$0xff]
        %v2179 = vld [vmem:[#allocation2 + $0x10f] sm:$0xff]
        %v2180 = vld [vmem:[#allocation2 + $0x127] sm:$0xff]
        %v2181 = vld [vmem:[#allocation2 + $0x12f] sm:$0xff]
        %v2182 = vld [vmem:[#allocation2 + $0x147] sm:$0xff]
        %v2183 = vld [vmem:[#allocation2 + $0x14f] sm:$0xff]
        %v2184 = vld [vmem:[#allocation2 + $0x167] sm:$0xff]
        %v2185 = vld [vmem:[#allocation2 + $0x16f] sm:$0xff]
        %v2186 = vld [vmem:[#allocation2 + $0x187] sm:$0xff]
        %v2187 = vld [vmem:[#allocation2 + $0x18f] sm:$0xff]
        %v2188 = vld [vmem:[#allocation2 + $0x1a7] sm:$0xff]
        %v2189 = vld [vmem:[#allocation2 + $0x1af] sm:$0xff]
        %v2190 = vld [vmem:[#allocation2 + $0x1c7] sm:$0xff]
        %v2191 = vld [vmem:[#allocation2 + $0x1cf] sm:$0xff]
        %v2192 = vld [vmem:[#allocation2 + $0x1e7] sm:$0xff]
        %v2193 = vld [vmem:[#allocation2 + $0x1ef] sm:$0xff]
        %v2194 = vld [vmem:[#allocation2 + $0x207] sm:$0xff]
        %v2195 = vld [vmem:[#allocation2 + $0x20f] sm:$0xff]
        %v2196 = vld [vmem:[#allocation2 + $0x227] sm:$0xff]
        %v2197 = vld [vmem:[#allocation2 + $0x22f] sm:$0xff]
        %v2198 = vld [vmem:[#allocation2 + $0x247] sm:$0xff]
        %v2199 = vld [vmem:[#allocation2 + $0x24f] sm:$0xff]
        %v2200 = vld [vmem:[#allocation2 + $0x267] sm:$0xff]
        %v2201 = vld [vmem:[#allocation2 + $0x26f] sm:$0xff]
        %v2202 = vmax.f32 %v2122, %v2162
        %v2203 = vmax.f32 %v2123, %v2163
        %v2204 = vmax.f32 %v2124, %v2164
        %v2205 = vmax.f32 %v2125, %v2165
        %v2206 = vmax.f32 %v2126, %v2166
        %v2207 = vmax.f32 %v2127, %v2167
        %v2208 = vmax.f32 %v2128, %v2168
        %v2209 = vmax.f32 %v2129, %v2169
        %v2210 = vmax.f32 %v2130, %v2170
        %v2211 = vmax.f32 %v2131, %v2171
        %v2212 = vmax.f32 %v2132, %v2172
        %v2213 = vmax.f32 %v2133, %v2173
        %v2214 = vmax.f32 %v2134, %v2174
        %v2215 = vmax.f32 %v2135, %v2175
        %v2216 = vmax.f32 %v2136, %v2176
        %v2217 = vmax.f32 %v2137, %v2177
        %v2218 = vmax.f32 %v2138, %v2178
        %v2219 = vmax.f32 %v2139, %v2179
        %v2220 = vmax.f32 %v2140, %v2180
        %v2221 = vmax.f32 %v2141, %v2181
        %v2222 = vmax.f32 %v2142, %v2182
        %v2223 = vmax.f32 %v2143, %v2183
        %v2224 = vmax.f32 %v2144, %v2184
        %v2225 = vmax.f32 %v2145, %v2185
        %v2226 = vmax.f32 %v2146, %v2186
        %v2227 = vmax.f32 %v2147, %v2187
        %v2228 = vmax.f32 %v2148, %v2188
        %v2229 = vmax.f32 %v2149, %v2189
        %v2230 = vmax.f32 %v2150, %v2190
        %v2231 = vmax.f32 %v2151, %v2191
        %v2232 = vmax.f32 %v2152, %v2192
        %v2233 = vmax.f32 %v2153, %v2193
        %v2234 = vmax.f32 %v2154, %v2194
        %v2235 = vmax.f32 %v2155, %v2195
        %v2236 = vmax.f32 %v2156, %v2196
        %v2237 = vmax.f32 %v2157, %v2197
        %v2238 = vmax.f32 %v2158, %v2198
        %v2239 = vmax.f32 %v2159, %v2199
        %v2240 = vmax.f32 %v2160, %v2200
        %v2241 = vmax.f32 %v2161, %v2201
        %v2242 = vld [vmem:[#allocation2 + $0x8] sm:$0xff]
        %v2243 = vld [vmem:[#allocation2 + $0x10] sm:$0xff]
        %v2244 = vld [vmem:[#allocation2 + $0x28] sm:$0xff]
        %v2245 = vld [vmem:[#allocation2 + $0x30] sm:$0xff]
        %v2246 = vld [vmem:[#allocation2 + $0x48] sm:$0xff]
        %v2247 = vld [vmem:[#allocation2 + $0x50] sm:$0xff]
        %v2248 = vld [vmem:[#allocation2 + $0x68] sm:$0xff]
        %v2249 = vld [vmem:[#allocation2 + $0x70] sm:$0xff]
        %v2250 = vld [vmem:[#allocation2 + $0x88] sm:$0xff]
        %v2251 = vld [vmem:[#allocation2 + $0x90] sm:$0xff]
        %v2252 = vld [vmem:[#allocation2 + $0xa8] sm:$0xff]
        %v2253 = vld [vmem:[#allocation2 + $0xb0] sm:$0xff]
        %v2254 = vld [vmem:[#allocation2 + $0xc8] sm:$0xff]
        %v2255 = vld [vmem:[#allocation2 + $0xd0] sm:$0xff]
        %v2256 = vld [vmem:[#allocation2 + $0xe8] sm:$0xff]
        %v2257 = vld [vmem:[#allocation2 + $0xf0] sm:$0xff]
        %v2258 = vld [vmem:[#allocation2 + $0x108] sm:$0xff]
        %v2259 = vld [vmem:[#allocation2 + $0x110] sm:$0xff]
        %v2260 = vld [vmem:[#allocation2 + $0x128] sm:$0xff]
        %v2261 = vld [vmem:[#allocation2 + $0x130] sm:$0xff]
        %v2262 = vld [vmem:[#allocation2 + $0x148] sm:$0xff]
        %v2263 = vld [vmem:[#allocation2 + $0x150] sm:$0xff]
        %v2264 = vld [vmem:[#allocation2 + $0x168] sm:$0xff]
        %v2265 = vld [vmem:[#allocation2 + $0x170] sm:$0xff]
        %v2266 = vld [vmem:[#allocation2 + $0x188] sm:$0xff]
        %v2267 = vld [vmem:[#allocation2 + $0x190] sm:$0xff]
        %v2268 = vld [vmem:[#allocation2 + $0x1a8] sm:$0xff]
        %v2269 = vld [vmem:[#allocation2 + $0x1b0] sm:$0xff]
        %v2270 = vld [vmem:[#allocation2 + $0x1c8] sm:$0xff]
        %v2271 = vld [vmem:[#allocation2 + $0x1d0] sm:$0xff]
        %v2272 = vld [vmem:[#allocation2 + $0x1e8] sm:$0xff]
        %v2273 = vld [vmem:[#allocation2 + $0x1f0] sm:$0xff]
        %v2274 = vld [vmem:[#allocation2 + $0x208] sm:$0xff]
        %v2275 = vld [vmem:[#allocation2 + $0x210] sm:$0xff]
        %v2276 = vld [vmem:[#allocation2 + $0x228] sm:$0xff]
        %v2277 = vld [vmem:[#allocation2 + $0x230] sm:$0xff]
        %v2278 = vld [vmem:[#allocation2 + $0x248] sm:$0xff]
        %v2279 = vld [vmem:[#allocation2 + $0x250] sm:$0xff]
        %v2280 = vld [vmem:[#allocation2 + $0x268] sm:$0xff]
        %v2281 = vld [vmem:[#allocation2 + $0x270] sm:$0xff]
        %v2282 = vmax.f32 %v2202, %v2242
        %v2283 = vmax.f32 %v2203, %v2243
        %v2284 = vmax.f32 %v2204, %v2244
        %v2285 = vmax.f32 %v2205, %v2245
        %v2286 = vmax.f32 %v2206, %v2246
        %v2287 = vmax.f32 %v2207, %v2247
        %v2288 = vmax.f32 %v2208, %v2248
        %v2289 = vmax.f32 %v2209, %v2249
        %v2290 = vmax.f32 %v2210, %v2250
        %v2291 = vmax.f32 %v2211, %v2251
        %v2292 = vmax.f32 %v2212, %v2252
        %v2293 = vmax.f32 %v2213, %v2253
        %v2294 = vmax.f32 %v2214, %v2254
        %v2295 = vmax.f32 %v2215, %v2255
        %v2296 = vmax.f32 %v2216, %v2256
        %v2297 = vmax.f32 %v2217, %v2257
        %v2298 = vmax.f32 %v2218, %v2258
        %v2299 = vmax.f32 %v2219, %v2259
        %v2300 = vmax.f32 %v2220, %v2260
        %v2301 = vmax.f32 %v2221, %v2261
        %v2302 = vmax.f32 %v2222, %v2262
        %v2303 = vmax.f32 %v2223, %v2263
        %v2304 = vmax.f32 %v2224, %v2264
        %v2305 = vmax.f32 %v2225, %v2265
        %v2306 = vmax.f32 %v2226, %v2266
        %v2307 = vmax.f32 %v2227, %v2267
        %v2308 = vmax.f32 %v2228, %v2268
        %v2309 = vmax.f32 %v2229, %v2269
        %v2310 = vmax.f32 %v2230, %v2270
        %v2311 = vmax.f32 %v2231, %v2271
        %v2312 = vmax.f32 %v2232, %v2272
        %v2313 = vmax.f32 %v2233, %v2273
        %v2314 = vmax.f32 %v2234, %v2274
        %v2315 = vmax.f32 %v2235, %v2275
        %v2316 = vmax.f32 %v2236, %v2276
        %v2317 = vmax.f32 %v2237, %v2277
        %v2318 = vmax.f32 %v2238, %v2278
        %v2319 = vmax.f32 %v2239, %v2279
        %v2320 = vmax.f32 %v2240, %v2280
        %v2321 = vmax.f32 %v2241, %v2281
        %v2322 = vld [vmem:[#allocation2 + $0x9] sm:$0xff]
        %v2323 = vld [vmem:[#allocation2 + $0x11] sm:$0xff]
        %v2324 = vld [vmem:[#allocation2 + $0x29] sm:$0xff]
        %v2325 = vld [vmem:[#allocation2 + $0x31] sm:$0xff]
        %v2326 = vld [vmem:[#allocation2 + $0x49] sm:$0xff]
        %v2327 = vld [vmem:[#allocation2 + $0x51] sm:$0xff]
        %v2328 = vld [vmem:[#allocation2 + $0x69] sm:$0xff]
        %v2329 = vld [vmem:[#allocation2 + $0x71] sm:$0xff]
        %v2330 = vld [vmem:[#allocation2 + $0x89] sm:$0xff]
        %v2331 = vld [vmem:[#allocation2 + $0x91] sm:$0xff]
        %v2332 = vld [vmem:[#allocation2 + $0xa9] sm:$0xff]
        %v2333 = vld [vmem:[#allocation2 + $0xb1] sm:$0xff]
        %v2334 = vld [vmem:[#allocation2 + $0xc9] sm:$0xff]
        %v2335 = vld [vmem:[#allocation2 + $0xd1] sm:$0xff]
        %v2336 = vld [vmem:[#allocation2 + $0xe9] sm:$0xff]
        %v2337 = vld [vmem:[#allocation2 + $0xf1] sm:$0xff]
        %v2338 = vld [vmem:[#allocation2 + $0x109] sm:$0xff]
        %v2339 = vld [vmem:[#allocation2 + $0x111] sm:$0xff]
        %v2340 = vld [vmem:[#allocation2 + $0x129] sm:$0xff]
        %v2341 = vld [vmem:[#allocation2 + $0x131] sm:$0xff]
        %v2342 = vld [vmem:[#allocation2 + $0x149] sm:$0xff]
        %v2343 = vld [vmem:[#allocation2 + $0x151] sm:$0xff]
        %v2344 = vld [vmem:[#allocation2 + $0x169] sm:$0xff]
        %v2345 = vld [vmem:[#allocation2 + $0x171] sm:$0xff]
        %v2346 = vld [vmem:[#allocation2 + $0x189] sm:$0xff]
        %v2347 = vld [vmem:[#allocation2 + $0x191] sm:$0xff]
        %v2348 = vld [vmem:[#allocation2 + $0x1a9] sm:$0xff]
        %v2349 = vld [vmem:[#allocation2 + $0x1b1] sm:$0xff]
        %v2350 = vld [vmem:[#allocation2 + $0x1c9] sm:$0xff]
        %v2351 = vld [vmem:[#allocation2 + $0x1d1] sm:$0xff]
        %v2352 = vld [vmem:[#allocation2 + $0x1e9] sm:$0xff]
        %v2353 = vld [vmem:[#allocation2 + $0x1f1] sm:$0xff]
        %v2354 = vld [vmem:[#allocation2 + $0x209] sm:$0xff]
        %v2355 = vld [vmem:[#allocation2 + $0x211] sm:$0xff]
        %v2356 = vld [vmem:[#allocation2 + $0x229] sm:$0xff]
        %v2357 = vld [vmem:[#allocation2 + $0x231] sm:$0xff]
        %v2358 = vld [vmem:[#allocation2 + $0x249] sm:$0xff]
        %v2359 = vld [vmem:[#allocation2 + $0x251] sm:$0xff]
        %v2360 = vld [vmem:[#allocation2 + $0x269] sm:$0xff]
        %v2361 = vld [vmem:[#allocation2 + $0x271] sm:$0xff]
        %v2362 = vmax.f32 %v2282, %v2322
        %v2363 = vmax.f32 %v2283, %v2323
        %v2364 = vmax.f32 %v2284, %v2324
        %v2365 = vmax.f32 %v2285, %v2325
        %v2366 = vmax.f32 %v2286, %v2326
        %v2367 = vmax.f32 %v2287, %v2327
        %v2368 = vmax.f32 %v2288, %v2328
        %v2369 = vmax.f32 %v2289, %v2329
        %v2370 = vmax.f32 %v2290, %v2330
        %v2371 = vmax.f32 %v2291, %v2331
        %v2372 = vmax.f32 %v2292, %v2332
        %v2373 = vmax.f32 %v2293, %v2333
        %v2374 = vmax.f32 %v2294, %v2334
        %v2375 = vmax.f32 %v2295, %v2335
        %v2376 = vmax.f32 %v2296, %v2336
        %v2377 = vmax.f32 %v2297, %v2337
        %v2378 = vmax.f32 %v2298, %v2338
        %v2379 = vmax.f32 %v2299, %v2339
        %v2380 = vmax.f32 %v2300, %v2340
        %v2381 = vmax.f32 %v2301, %v2341
        %v2382 = vmax.f32 %v2302, %v2342
        %v2383 = vmax.f32 %v2303, %v2343
        %v2384 = vmax.f32 %v2304, %v2344
        %v2385 = vmax.f32 %v2305, %v2345
        %v2386 = vmax.f32 %v2306, %v2346
        %v2387 = vmax.f32 %v2307, %v2347
        %v2388 = vmax.f32 %v2308, %v2348
        %v2389 = vmax.f32 %v2309, %v2349
        %v2390 = vmax.f32 %v2310, %v2350
        %v2391 = vmax.f32 %v2311, %v2351
        %v2392 = vmax.f32 %v2312, %v2352
        %v2393 = vmax.f32 %v2313, %v2353
        %v2394 = vmax.f32 %v2314, %v2354
        %v2395 = vmax.f32 %v2315, %v2355
        %v2396 = vmax.f32 %v2316, %v2356
        %v2397 = vmax.f32 %v2317, %v2357
        %v2398 = vmax.f32 %v2318, %v2358
        %v2399 = vmax.f32 %v2319, %v2359
        %v2400 = vmax.f32 %v2320, %v2360
        %v2401 = vmax.f32 %v2321, %v2361
        %v2402 = vld [vmem:[#allocation2 + $0xa] sm:$0xff]
        %v2403 = vld [vmem:[#allocation2 + $0x12] sm:$0xff]
        %v2404 = vld [vmem:[#allocation2 + $0x2a] sm:$0xff]
        %v2405 = vld [vmem:[#allocation2 + $0x32] sm:$0xff]
        %v2406 = vld [vmem:[#allocation2 + $0x4a] sm:$0xff]
        %v2407 = vld [vmem:[#allocation2 + $0x52] sm:$0xff]
        %v2408 = vld [vmem:[#allocation2 + $0x6a] sm:$0xff]
        %v2409 = vld [vmem:[#allocation2 + $0x72] sm:$0xff]
        %v2410 = vld [vmem:[#allocation2 + $0x8a] sm:$0xff]
        %v2411 = vld [vmem:[#allocation2 + $0x92] sm:$0xff]
        %v2412 = vld [vmem:[#allocation2 + $0xaa] sm:$0xff]
        %v2413 = vld [vmem:[#allocation2 + $0xb2] sm:$0xff]
        %v2414 = vld [vmem:[#allocation2 + $0xca] sm:$0xff]
        %v2415 = vld [vmem:[#allocation2 + $0xd2] sm:$0xff]
        %v2416 = vld [vmem:[#allocation2 + $0xea] sm:$0xff]
        %v2417 = vld [vmem:[#allocation2 + $0xf2] sm:$0xff]
        %v2418 = vld [vmem:[#allocation2 + $0x10a] sm:$0xff]
        %v2419 = vld [vmem:[#allocation2 + $0x112] sm:$0xff]
        %v2420 = vld [vmem:[#allocation2 + $0x12a] sm:$0xff]
        %v2421 = vld [vmem:[#allocation2 + $0x132] sm:$0xff]
        %v2422 = vld [vmem:[#allocation2 + $0x14a] sm:$0xff]
        %v2423 = vld [vmem:[#allocation2 + $0x152] sm:$0xff]
        %v2424 = vld [vmem:[#allocation2 + $0x16a] sm:$0xff]
        %v2425 = vld [vmem:[#allocation2 + $0x172] sm:$0xff]
        %v2426 = vld [vmem:[#allocation2 + $0x18a] sm:$0xff]
        %v2427 = vld [vmem:[#allocation2 + $0x192] sm:$0xff]
        %v2428 = vld [vmem:[#allocation2 + $0x1aa] sm:$0xff]
        %v2429 = vld [vmem:[#allocation2 + $0x1b2] sm:$0xff]
        %v2430 = vld [vmem:[#allocation2 + $0x1ca] sm:$0xff]
        %v2431 = vld [vmem:[#allocation2 + $0x1d2] sm:$0xff]
        %v2432 = vld [vmem:[#allocation2 + $0x1ea] sm:$0xff]
        %v2433 = vld [vmem:[#allocation2 + $0x1f2] sm:$0xff]
        %v2434 = vld [vmem:[#allocation2 + $0x20a] sm:$0xff]
        %v2435 = vld [vmem:[#allocation2 + $0x212] sm:$0xff]
        %v2436 = vld [vmem:[#allocation2 + $0x22a] sm:$0xff]
        %v2437 = vld [vmem:[#allocation2 + $0x232] sm:$0xff]
        %v2438 = vld [vmem:[#allocation2 + $0x24a] sm:$0xff]
        %v2439 = vld [vmem:[#allocation2 + $0x252] sm:$0xff]
        %v2440 = vld [vmem:[#allocation2 + $0x26a] sm:$0xff]
        %v2441 = vld [vmem:[#allocation2 + $0x272] sm:$0xff]
        %v2442 = vmax.f32 %v2362, %v2402
        %v2443 = vmax.f32 %v2363, %v2403
        %v2444 = vmax.f32 %v2364, %v2404
        %v2445 = vmax.f32 %v2365, %v2405
        %v2446 = vmax.f32 %v2366, %v2406
        %v2447 = vmax.f32 %v2367, %v2407
        %v2448 = vmax.f32 %v2368, %v2408
        %v2449 = vmax.f32 %v2369, %v2409
        %v2450 = vmax.f32 %v2370, %v2410
        %v2451 = vmax.f32 %v2371, %v2411
        %v2452 = vmax.f32 %v2372, %v2412
        %v2453 = vmax.f32 %v2373, %v2413
        %v2454 = vmax.f32 %v2374, %v2414
        %v2455 = vmax.f32 %v2375, %v2415
        %v2456 = vmax.f32 %v2376, %v2416
        %v2457 = vmax.f32 %v2377, %v2417
        %v2458 = vmax.f32 %v2378, %v2418
        %v2459 = vmax.f32 %v2379, %v2419
        %v2460 = vmax.f32 %v2380, %v2420
        %v2461 = vmax.f32 %v2381, %v2421
        %v2462 = vmax.f32 %v2382, %v2422
        %v2463 = vmax.f32 %v2383, %v2423
        %v2464 = vmax.f32 %v2384, %v2424
        %v2465 = vmax.f32 %v2385, %v2425
        %v2466 = vmax.f32 %v2386, %v2426
        %v2467 = vmax.f32 %v2387, %v2427
        %v2468 = vmax.f32 %v2388, %v2428
        %v2469 = vmax.f32 %v2389, %v2429
        %v2470 = vmax.f32 %v2390, %v2430
        %v2471 = vmax.f32 %v2391, %v2431
        %v2472 = vmax.f32 %v2392, %v2432
        %v2473 = vmax.f32 %v2393, %v2433
        %v2474 = vmax.f32 %v2394, %v2434
        %v2475 = vmax.f32 %v2395, %v2435
        %v2476 = vmax.f32 %v2396, %v2436
        %v2477 = vmax.f32 %v2397, %v2437
        %v2478 = vmax.f32 %v2398, %v2438
        %v2479 = vmax.f32 %v2399, %v2439
        %v2480 = vmax.f32 %v2400, %v2440
        %v2481 = vmax.f32 %v2401, %v2441
        %v2482 = vmax.f32 %v2442, %v2444
        %v2483 = vmax.f32 %v2443, %v2445
        %v2484 = vmax.f32 %v2444, %v2446
        %v2485 = vmax.f32 %v2445, %v2447
        %v2486 = vmax.f32 %v2446, %v2448
        %v2487 = vmax.f32 %v2447, %v2449
        %v2488 = vmax.f32 %v2448, %v2450
        %v2489 = vmax.f32 %v2449, %v2451
        %v2490 = vmax.f32 %v2450, %v2452
        %v2491 = vmax.f32 %v2451, %v2453
        %v2492 = vmax.f32 %v2452, %v2454
        %v2493 = vmax.f32 %v2453, %v2455
        %v2494 = vmax.f32 %v2454, %v2456
        %v2495 = vmax.f32 %v2455, %v2457
        %v2496 = vmax.f32 %v2456, %v2458
        %v2497 = vmax.f32 %v2457, %v2459
        %v2498 = vmax.f32 %v2458, %v2460
        %v2499 = vmax.f32 %v2459, %v2461
        %v2500 = vmax.f32 %v2460, %v2462
        %v2501 = vmax.f32 %v2461, %v2463
        %v2502 = vmax.f32 %v2462, %v2464
        %v2503 = vmax.f32 %v2463, %v2465
        %v2504 = vmax.f32 %v2464, %v2466
        %v2505 = vmax.f32 %v2465, %v2467
        %v2506 = vmax.f32 %v2466, %v2468
        %v2507 = vmax.f32 %v2467, %v2469
        %v2508 = vmax.f32 %v2468, %v2470
        %v2509 = vmax.f32 %v2469, %v2471
        %v2510 = vmax.f32 %v2470, %v2472
        %v2511 = vmax.f32 %v2471, %v2473
        %v2512 = vmax.f32 %v2472, %v2474
        %v2513 = vmax.f32 %v2473, %v2475
        %v2514 = vmax.f32 %v2482, %v2446
        %v2515 = vmax.f32 %v2483, %v2447
        %v2516 = vmax.f32 %v2484, %v2448
        %v2517 = vmax.f32 %v2485, %v2449
        %v2518 = vmax.f32 %v2486, %v2450
        %v2519 = vmax.f32 %v2487, %v2451
        %v2520 = vmax.f32 %v2488, %v2452
        %v2521 = vmax.f32 %v2489, %v2453
        %v2522 = vmax.f32 %v2490, %v2454
        %v2523 = vmax.f32 %v2491, %v2455
        %v2524 = vmax.f32 %v2492, %v2456
        %v2525 = vmax.f32 %v2493, %v2457
        %v2526 = vmax.f32 %v2494, %v2458
        %v2527 = vmax.f32 %v2495, %v2459
        %v2528 = vmax.f32 %v2496, %v2460
        %v2529 = vmax.f32 %v2497, %v2461
        %v2530 = vmax.f32 %v2498, %v2462
        %v2531 = vmax.f32 %v2499, %v2463
        %v2532 = vmax.f32 %v2500, %v2464
        %v2533 = vmax.f32 %v2501, %v2465
        %v2534 = vmax.f32 %v2502, %v2466
        %v2535 = vmax.f32 %v2503, %v2467
        %v2536 = vmax.f32 %v2504, %v2468
        %v2537 = vmax.f32 %v2505, %v2469
        %v2538 = vmax.f32 %v2506, %v2470
        %v2539 = vmax.f32 %v2507, %v2471
        %v2540 = vmax.f32 %v2508, %v2472
        %v2541 = vmax.f32 %v2509, %v2473
        %v2542 = vmax.f32 %v2510, %v2474
        %v2543 = vmax.f32 %v2511, %v2475
        %v2544 = vmax.f32 %v2512, %v2476
        %v2545 = vmax.f32 %v2513, %v2477
        %v2546 = vmax.f32 %v2514, %v2448
        %v2547 = vmax.f32 %v2515, %v2449
        %v2548 = vmax.f32 %v2516, %v2450
        %v2549 = vmax.f32 %v2517, %v2451
        %v2550 = vmax.f32 %v2518, %v2452
        %v2551 = vmax.f32 %v2519, %v2453
        %v2552 = vmax.f32 %v2520, %v2454
        %v2553 = vmax.f32 %v2521, %v2455
        %v2554 = vmax.f32 %v2522, %v2456
        %v2555 = vmax.f32 %v2523, %v2457
        %v2556 = vmax.f32 %v2524, %v2458
        %v2557 = vmax.f32 %v2525, %v2459
        %v2558 = vmax.f32 %v2526, %v2460
        %v2559 = vmax.f32 %v2527, %v2461
        %v2560 = vmax.f32 %v2528, %v2462
        %v2561 = vmax.f32 %v2529, %v2463
        %v2562 = vmax.f32 %v2530, %v2464
        %v2563 = vmax.f32 %v2531, %v2465
        %v2564 = vmax.f32 %v2532, %v2466
        %v2565 = vmax.f32 %v2533, %v2467
        %v2566 = vmax.f32 %v2534, %v2468
        %v2567 = vmax.f32 %v2535, %v2469
        %v2568 = vmax.f32 %v2536, %v2470
        %v2569 = vmax.f32 %v2537, %v2471
        %v2570 = vmax.f32 %v2538, %v2472
        %v2571 = vmax.f32 %v2539, %v2473
        %v2572 = vmax.f32 %v2540, %v2474
        %v2573 = vmax.f32 %v2541, %v2475
        %v2574 = vmax.f32 %v2542, %v2476
        %v2575 = vmax.f32 %v2543, %v2477
        %v2576 = vmax.f32 %v2544, %v2478
        %v2577 = vmax.f32 %v2545, %v2479
        %v2578 = vmax.f32 %v2546, %v2450
        %v2579 = vmax.f32 %v2547, %v2451
        %v2580 = vmax.f32 %v2548, %v2452
        %v2581 = vmax.f32 %v2549, %v2453
        %v2582 = vmax.f32 %v2550, %v2454
        %v2583 = vmax.f32 %v2551, %v2455
        %v2584 = vmax.f32 %v2552, %v2456
        %v2585 = vmax.f32 %v2553, %v2457
        %v2586 = vmax.f32 %v2554, %v2458
        %v2587 = vmax.f32 %v2555, %v2459
        %v2588 = vmax.f32 %v2556, %v2460
        %v2589 = vmax.f32 %v2557, %v2461
        %v2590 = vmax.f32 %v2558, %v2462
        %v2591 = vmax.f32 %v2559, %v2463
        %v2592 = vmax.f32 %v2560, %v2464
        %v2593 = vmax.f32 %v2561, %v2465
        %v2594 = vmax.f32 %v2562, %v2466
        %v2595 = vmax.f32 %v2563, %v2467
        %v2596 = vmax.f32 %v2564, %v2468
        %v2597 = vmax.f32 %v2565, %v2469
        %v2598 = vmax.f32 %v2566, %v2470
        %v2599 = vmax.f32 %v2567, %v2471
        %v2600 = vmax.f32 %v2568, %v2472
        %v2601 = vmax.f32 %v2569, %v2473
        %v2602 = vmax.f32 %v2570, %v2474
        %v2603 = vmax.f32 %v2571, %v2475
        %v2604 = vmax.f32 %v2572, %v2476
        %v2605 = vmax.f32 %v2573, %v2477
        %v2606 = vmax.f32 %v2574, %v2478
        %v2607 = vmax.f32 %v2575, %v2479
        %v2608 = vmax.f32 %v2576, %v2480
        %v2609 = vmax.f32 %v2577, %v2481
        %v2610 = vpack.c.bf16 %v2579, %v2578
        %v2611 = vpack.c.bf16 %v2581, %v2580
        %v2612 = vpack.c.bf16 %v2583, %v2582
        %v2613 = vpack.c.bf16 %v2585, %v2584
        %v2614 = vpack.c.bf16 %v2587, %v2586
        %v2615 = vpack.c.bf16 %v2589, %v2588
        %v2616 = vpack.c.bf16 %v2591, %v2590
        %v2617 = vpack.c.bf16 %v2593, %v2592
        %v2618 = vpack.c.bf16 %v2595, %v2594
        %v2619 = vpack.c.bf16 %v2597, %v2596
        %v2620 = vpack.c.bf16 %v2599, %v2598
        %v2621 = vpack.c.bf16 %v2601, %v2600
        %v2622 = vpack.c.bf16 %v2603, %v2602
        %v2623 = vpack.c.bf16 %v2605, %v2604
        %v2624 = vpack.c.bf16 %v2607, %v2606
        %v2625 = vpack.c.bf16 %v2609, %v2608
        %2626 = vst [vmem:[#allocation3 + $0x18] sm:$0xff] %v2610
        %2627 = vst [vmem:[#allocation3 + $0x38] sm:$0xff] %v2611
        %2628 = vst [vmem:[#allocation3 + $0x58] sm:$0xff] %v2612
        %2629 = vst [vmem:[#allocation3 + $0x78] sm:$0xff] %v2613
        %2630 = vst [vmem:[#allocation3 + $0x98] sm:$0xff] %v2614
        %2631 = vst [vmem:[#allocation3 + $0xb8] sm:$0xff] %v2615
        %2632 = vst [vmem:[#allocation3 + $0xd8] sm:$0xff] %v2616
        %2633 = vst [vmem:[#allocation3 + $0xf8] sm:$0xff] %v2617
        %2634 = vst [vmem:[#allocation3 + $0x118] sm:$0xff] %v2618
        %2635 = vst [vmem:[#allocation3 + $0x138] sm:$0xff] %v2619
        %2636 = vst [vmem:[#allocation3 + $0x158] sm:$0xff] %v2620
        %2637 = vst [vmem:[#allocation3 + $0x178] sm:$0xff] %v2621
        %2638 = vst [vmem:[#allocation3 + $0x198] sm:$0xff] %v2622
        %2639 = vst [vmem:[#allocation3 + $0x1b8] sm:$0xff] %v2623
        %2640 = vst [vmem:[#allocation3 + $0x1d8] sm:$0xff] %v2624
        %2641 = vst [vmem:[#allocation3 + $0x1f8] sm:$0xff] %v2625
        %v2642 = vld [vmem:[#allocation3] sm:$0xff]
        %v2643 = vld [vmem:[#allocation3 + $0x8] sm:$0xff]
        %v2644 = vld [vmem:[#allocation3 + $0x10] sm:$0xff]
        %v2645 = vld [vmem:[#allocation3 + $0x18] sm:$0xff]
        %v2646 = vld [vmem:[#allocation3 + $0x20] sm:$0xff]
        %v2647 = vld [vmem:[#allocation3 + $0x28] sm:$0xff]
        %v2648 = vld [vmem:[#allocation3 + $0x30] sm:$0xff]
        %v2649 = vld [vmem:[#allocation3 + $0x38] sm:$0xff]
        %v2650 = vld [vmem:[#allocation3 + $0x40] sm:$0xff]
        %v2651 = vld [vmem:[#allocation3 + $0x48] sm:$0xff]
        %v2652 = vld [vmem:[#allocation3 + $0x50] sm:$0xff]
        %v2653 = vld [vmem:[#allocation3 + $0x58] sm:$0xff]
        %v2654 = vld [vmem:[#allocation3 + $0x60] sm:$0xff]
        %v2655 = vld [vmem:[#allocation3 + $0x68] sm:$0xff]
        %v2656 = vld [vmem:[#allocation3 + $0x70] sm:$0xff]
        %v2657 = vld [vmem:[#allocation3 + $0x78] sm:$0xff]
        %v2658 = vld [vmem:[#allocation3 + $0x80] sm:$0xff]
        %v2659 = vld [vmem:[#allocation3 + $0x88] sm:$0xff]
        %v2660 = vld [vmem:[#allocation3 + $0x90] sm:$0xff]
        %v2661 = vld [vmem:[#allocation3 + $0x98] sm:$0xff]
        %v2662 = vld [vmem:[#allocation3 + $0xa0] sm:$0xff]
        %v2663 = vld [vmem:[#allocation3 + $0xa8] sm:$0xff]
        %v2664 = vld [vmem:[#allocation3 + $0xb0] sm:$0xff]
        %v2665 = vld [vmem:[#allocation3 + $0xb8] sm:$0xff]
        %v2666 = vld [vmem:[#allocation3 + $0xc0] sm:$0xff]
        %v2667 = vld [vmem:[#allocation3 + $0xc8] sm:$0xff]
        %v2668 = vld [vmem:[#allocation3 + $0xd0] sm:$0xff]
        %v2669 = vld [vmem:[#allocation3 + $0xd8] sm:$0xff]
        %v2670 = vld [vmem:[#allocation3 + $0xe0] sm:$0xff]
        %v2671 = vld [vmem:[#allocation3 + $0xe8] sm:$0xff]
        %v2672 = vld [vmem:[#allocation3 + $0xf0] sm:$0xff]
        %v2673 = vld [vmem:[#allocation3 + $0xf8] sm:$0xff]
        %v2674 = vld [vmem:[#allocation3 + $0x100] sm:$0xff]
        %v2675 = vld [vmem:[#allocation3 + $0x108] sm:$0xff]
        %v2676 = vld [vmem:[#allocation3 + $0x110] sm:$0xff]
        %v2677 = vld [vmem:[#allocation3 + $0x118] sm:$0xff]
        %v2678 = vld [vmem:[#allocation3 + $0x120] sm:$0xff]
        %v2679 = vld [vmem:[#allocation3 + $0x128] sm:$0xff]
        %v2680 = vld [vmem:[#allocation3 + $0x130] sm:$0xff]
        %v2681 = vld [vmem:[#allocation3 + $0x138] sm:$0xff]
        %v2682 = vld [vmem:[#allocation3 + $0x140] sm:$0xff]
        %v2683 = vld [vmem:[#allocation3 + $0x148] sm:$0xff]
        %v2684 = vld [vmem:[#allocation3 + $0x150] sm:$0xff]
        %v2685 = vld [vmem:[#allocation3 + $0x158] sm:$0xff]
        %v2686 = vld [vmem:[#allocation3 + $0x160] sm:$0xff]
        %v2687 = vld [vmem:[#allocation3 + $0x168] sm:$0xff]
        %v2688 = vld [vmem:[#allocation3 + $0x170] sm:$0xff]
        %v2689 = vld [vmem:[#allocation3 + $0x178] sm:$0xff]
        %v2690 = vld [vmem:[#allocation3 + $0x180] sm:$0xff]
        %v2691 = vld [vmem:[#allocation3 + $0x188] sm:$0xff]
        %v2692 = vld [vmem:[#allocation3 + $0x190] sm:$0xff]
        %v2693 = vld [vmem:[#allocation3 + $0x198] sm:$0xff]
        %v2694 = vld [vmem:[#allocation3 + $0x1a0] sm:$0xff]
        %v2695 = vld [vmem:[#allocation3 + $0x1a8] sm:$0xff]
        %v2696 = vld [vmem:[#allocation3 + $0x1b0] sm:$0xff]
        %v2697 = vld [vmem:[#allocation3 + $0x1b8] sm:$0xff]
        %v2698 = vld [vmem:[#allocation3 + $0x1c0] sm:$0xff]
        %v2699 = vld [vmem:[#allocation3 + $0x1c8] sm:$0xff]
        %v2700 = vld [vmem:[#allocation3 + $0x1d0] sm:$0xff]
        %v2701 = vld [vmem:[#allocation3 + $0x1d8] sm:$0xff]
        %v2702 = vld [vmem:[#allocation3 + $0x1e0] sm:$0xff]
        %v2703 = vld [vmem:[#allocation3 + $0x1e8] sm:$0xff]
        %v2704 = vld [vmem:[#allocation3 + $0x1f0] sm:$0xff]
        %v2705 = vld [vmem:[#allocation3 + $0x1f8] sm:$0xff]
        %v2706 = vld [vmem:[%s3] sm:$0xff]
        %v2707 = vld [vmem:[%s3 + $0x8] sm:$0xff]
        %v2708 = vld [vmem:[%s3 + $0x10] sm:$0xff]
        %v2709 = vld [vmem:[%s3 + $0x18] sm:$0xff]
        %v2710 = vld [vmem:[%s3 + $0x20] sm:$0xff]
        %v2711 = vld [vmem:[%s3 + $0x28] sm:$0xff]
        %v2712 = vld [vmem:[%s3 + $0x30] sm:$0xff]
        %v2713 = vld [vmem:[%s3 + $0x38] sm:$0xff]
        %v2714 = vld [vmem:[%s3 + $0x40] sm:$0xff]
        %v2715 = vld [vmem:[%s3 + $0x48] sm:$0xff]
        %v2716 = vld [vmem:[%s3 + $0x50] sm:$0xff]
        %v2717 = vld [vmem:[%s3 + $0x58] sm:$0xff]
        %v2718 = vld [vmem:[%s3 + $0x60] sm:$0xff]
        %v2719 = vld [vmem:[%s3 + $0x68] sm:$0xff]
        %v2720 = vld [vmem:[%s3 + $0x70] sm:$0xff]
        %v2721 = vld [vmem:[%s3 + $0x78] sm:$0xff]
        %v2722 = vld [vmem:[%s3 + $0x80] sm:$0xff]
        %v2723 = vld [vmem:[%s3 + $0x88] sm:$0xff]
        %v2724 = vld [vmem:[%s3 + $0x90] sm:$0xff]
        %v2725 = vld [vmem:[%s3 + $0x98] sm:$0xff]
        %v2726 = vld [vmem:[%s3 + $0xa0] sm:$0xff]
        %v2727 = vld [vmem:[%s3 + $0xa8] sm:$0xff]
        %v2728 = vld [vmem:[%s3 + $0xb0] sm:$0xff]
        %v2729 = vld [vmem:[%s3 + $0xb8] sm:$0xff]
        %v2730 = vld [vmem:[%s3 + $0xc0] sm:$0xff]
        %v2731 = vld [vmem:[%s3 + $0xc8] sm:$0xff]
        %v2732 = vld [vmem:[%s3 + $0xd0] sm:$0xff]
        %v2733 = vld [vmem:[%s3 + $0xd8] sm:$0xff]
        %v2734 = vld [vmem:[%s3 + $0xe0] sm:$0xff]
        %v2735 = vld [vmem:[%s3 + $0xe8] sm:$0xff]
        %v2736 = vld [vmem:[%s3 + $0xf0] sm:$0xff]
        %v2737 = vld [vmem:[%s3 + $0xf8] sm:$0xff]
        %v2738 = vld [vmem:[%s3 + $0x100] sm:$0xff]
        %v2739 = vld [vmem:[%s3 + $0x108] sm:$0xff]
        %v2740 = vld [vmem:[%s3 + $0x110] sm:$0xff]
        %v2741 = vld [vmem:[%s3 + $0x118] sm:$0xff]
        %v2742 = vld [vmem:[%s3 + $0x120] sm:$0xff]
        %v2743 = vld [vmem:[%s3 + $0x128] sm:$0xff]
        %v2744 = vld [vmem:[%s3 + $0x130] sm:$0xff]
        %v2745 = vld [vmem:[%s3 + $0x138] sm:$0xff]
        %v2746 = vld [vmem:[%s3 + $0x140] sm:$0xff]
        %v2747 = vld [vmem:[%s3 + $0x148] sm:$0xff]
        %v2748 = vld [vmem:[%s3 + $0x150] sm:$0xff]
        %v2749 = vld [vmem:[%s3 + $0x158] sm:$0xff]
        %v2750 = vld [vmem:[%s3 + $0x160] sm:$0xff]
        %v2751 = vld [vmem:[%s3 + $0x168] sm:$0xff]
        %v2752 = vld [vmem:[%s3 + $0x170] sm:$0xff]
        %v2753 = vld [vmem:[%s3 + $0x178] sm:$0xff]
        %v2754 = vld [vmem:[%s3 + $0x180] sm:$0xff]
        %v2755 = vld [vmem:[%s3 + $0x188] sm:$0xff]
        %v2756 = vld [vmem:[%s3 + $0x190] sm:$0xff]
        %v2757 = vld [vmem:[%s3 + $0x198] sm:$0xff]
        %v2758 = vld [vmem:[%s3 + $0x1a0] sm:$0xff]
        %v2759 = vld [vmem:[%s3 + $0x1a8] sm:$0xff]
        %v2760 = vld [vmem:[%s3 + $0x1b0] sm:$0xff]
        %v2761 = vld [vmem:[%s3 + $0x1b8] sm:$0xff]
        %v2762 = vld [vmem:[%s3 + $0x1c0] sm:$0xff]
        %v2763 = vld [vmem:[%s3 + $0x1c8] sm:$0xff]
        %v2764 = vld [vmem:[%s3 + $0x1d0] sm:$0xff]
        %v2765 = vld [vmem:[%s3 + $0x1d8] sm:$0xff]
        %v2766 = vld [vmem:[%s3 + $0x1e0] sm:$0xff]
        %v2767 = vld [vmem:[%s3 + $0x1e8] sm:$0xff]
        %v2768 = vld [vmem:[%s3 + $0x1f0] sm:$0xff]
        %v2769 = vld [vmem:[%s3 + $0x1f8] sm:$0xff]
        %v2770 = vld [vmem:[%s4] sm:$0x3]
        %v2772 = vlaneseq
        %v2773 = vshrl.u32 %v2772, 7
        %v2774 = vsub.s32 0, %v2773
        %v2775 = vrot.slane %v2770, %v2774
        %v2776 = vlaneseq
        %v2777 = vshrl.u32 %v2776, 7
        %v2778 = vsub.s32 1, %v2777
        %v2779 = vrot.slane %v2770, %v2778
        %v2846 = vunpack.c.l.b16 %v2706
        %v2847 = vunpack.c.h.b16 %v2706
        %v2848 = vunpack.c.l.b16 %v2707
        %v2849 = vunpack.c.h.b16 %v2707
        %v2850 = vunpack.c.l.b16 %v2708
        %v2851 = vunpack.c.h.b16 %v2708
        %v2852 = vunpack.c.l.b16 %v2709
        %v2853 = vunpack.c.h.b16 %v2709
        %v2854 = vunpack.c.l.b16 %v2710
        %v2855 = vunpack.c.h.b16 %v2710
        %v2856 = vunpack.c.l.b16 %v2711
        %v2857 = vunpack.c.h.b16 %v2711
        %v2858 = vunpack.c.l.b16 %v2712
        %v2859 = vunpack.c.h.b16 %v2712
        %v2860 = vunpack.c.l.b16 %v2713
        %v2861 = vunpack.c.h.b16 %v2713
        %v2862 = vunpack.c.l.b16 %v2714
        %v2863 = vunpack.c.h.b16 %v2714
        %v2864 = vunpack.c.l.b16 %v2715
        %v2865 = vunpack.c.h.b16 %v2715
        %v2866 = vunpack.c.l.b16 %v2716
        %v2867 = vunpack.c.h.b16 %v2716
        %v2868 = vunpack.c.l.b16 %v2717
        %v2869 = vunpack.c.h.b16 %v2717
        %v2870 = vunpack.c.l.b16 %v2718
        %v2871 = vunpack.c.h.b16 %v2718
        %v2872 = vunpack.c.l.b16 %v2719
        %v2873 = vunpack.c.h.b16 %v2719
        %v2874 = vunpack.c.l.b16 %v2720
        %v2875 = vunpack.c.h.b16 %v2720
        %v2876 = vunpack.c.l.b16 %v2721
        %v2877 = vunpack.c.h.b16 %v2721
        %v2878 = vunpack.c.l.b16 %v2722
        %v2879 = vunpack.c.h.b16 %v2722
        %v2880 = vunpack.c.l.b16 %v2723
        %v2881 = vunpack.c.h.b16 %v2723
        %v2882 = vunpack.c.l.b16 %v2724
        %v2883 = vunpack.c.h.b16 %v2724
        %v2884 = vunpack.c.l.b16 %v2725
        %v2885 = vunpack.c.h.b16 %v2725
        %v2886 = vunpack.c.l.b16 %v2726
        %v2887 = vunpack.c.h.b16 %v2726
        %v2888 = vunpack.c.l.b16 %v2727
        %v2889 = vunpack.c.h.b16 %v2727
        %v2890 = vunpack.c.l.b16 %v2728
        %v2891 = vunpack.c.h.b16 %v2728
        %v2892 = vunpack.c.l.b16 %v2729
        %v2893 = vunpack.c.h.b16 %v2729
        %v2894 = vunpack.c.l.b16 %v2730
        %v2895 = vunpack.c.h.b16 %v2730
        %v2896 = vunpack.c.l.b16 %v2731
        %v2897 = vunpack.c.h.b16 %v2731
        %v2898 = vunpack.c.l.b16 %v2732
        %v2899 = vunpack.c.h.b16 %v2732
        %v2900 = vunpack.c.l.b16 %v2733
        %v2901 = vunpack.c.h.b16 %v2733
        %v2902 = vunpack.c.l.b16 %v2734
        %v2903 = vunpack.c.h.b16 %v2734
        %v2904 = vunpack.c.l.b16 %v2735
        %v2905 = vunpack.c.h.b16 %v2735
        %v2906 = vunpack.c.l.b16 %v2736
        %v2907 = vunpack.c.h.b16 %v2736
        %v2908 = vunpack.c.l.b16 %v2737
        %v2909 = vunpack.c.h.b16 %v2737
        %v2910 = vunpack.c.l.b16 %v2738
        %v2911 = vunpack.c.h.b16 %v2738
        %v2912 = vunpack.c.l.b16 %v2739
        %v2913 = vunpack.c.h.b16 %v2739
        %v2914 = vunpack.c.l.b16 %v2740
        %v2915 = vunpack.c.h.b16 %v2740
        %v2916 = vunpack.c.l.b16 %v2741
        %v2917 = vunpack.c.h.b16 %v2741
        %v2918 = vunpack.c.l.b16 %v2742
        %v2919 = vunpack.c.h.b16 %v2742
        %v2920 = vunpack.c.l.b16 %v2743
        %v2921 = vunpack.c.h.b16 %v2743
        %v2922 = vunpack.c.l.b16 %v2744
        %v2923 = vunpack.c.h.b16 %v2744
        %v2924 = vunpack.c.l.b16 %v2745
        %v2925 = vunpack.c.h.b16 %v2745
        %v2926 = vunpack.c.l.b16 %v2746
        %v2927 = vunpack.c.h.b16 %v2746
        %v2928 = vunpack.c.l.b16 %v2747
        %v2929 = vunpack.c.h.b16 %v2747
        %v2930 = vunpack.c.l.b16 %v2748
        %v2931 = vunpack.c.h.b16 %v2748
        %v2932 = vunpack.c.l.b16 %v2749
        %v2933 = vunpack.c.h.b16 %v2749
        %v2934 = vunpack.c.l.b16 %v2750
        %v2935 = vunpack.c.h.b16 %v2750
        %v2936 = vunpack.c.l.b16 %v2751
        %v2937 = vunpack.c.h.b16 %v2751
        %v2938 = vunpack.c.l.b16 %v2752
        %v2939 = vunpack.c.h.b16 %v2752
        %v2940 = vunpack.c.l.b16 %v2753
        %v2941 = vunpack.c.h.b16 %v2753
        %v2942 = vunpack.c.l.b16 %v2754
        %v2943 = vunpack.c.h.b16 %v2754
        %v2944 = vunpack.c.l.b16 %v2755
        %v2945 = vunpack.c.h.b16 %v2755
        %v2946 = vunpack.c.l.b16 %v2756
        %v2947 = vunpack.c.h.b16 %v2756
        %v2948 = vunpack.c.l.b16 %v2757
        %v2949 = vunpack.c.h.b16 %v2757
        %v2950 = vunpack.c.l.b16 %v2758
        %v2951 = vunpack.c.h.b16 %v2758
        %v2952 = vunpack.c.l.b16 %v2759
        %v2953 = vunpack.c.h.b16 %v2759
        %v2954 = vunpack.c.l.b16 %v2760
        %v2955 = vunpack.c.h.b16 %v2760
        %v2956 = vunpack.c.l.b16 %v2761
        %v2957 = vunpack.c.h.b16 %v2761
        %v2958 = vunpack.c.l.b16 %v2762
        %v2959 = vunpack.c.h.b16 %v2762
        %v2960 = vunpack.c.l.b16 %v2763
        %v2961 = vunpack.c.h.b16 %v2763
        %v2962 = vunpack.c.l.b16 %v2764
        %v2963 = vunpack.c.h.b16 %v2764
        %v2964 = vunpack.c.l.b16 %v2765
        %v2965 = vunpack.c.h.b16 %v2765
        %v2966 = vunpack.c.l.b16 %v2766
        %v2967 = vunpack.c.h.b16 %v2766
        %v2968 = vunpack.c.l.b16 %v2767
        %v2969 = vunpack.c.h.b16 %v2767
        %v2970 = vunpack.c.l.b16 %v2768
        %v2971 = vunpack.c.h.b16 %v2768
        %v2972 = vunpack.c.l.b16 %v2769
        %v2973 = vunpack.c.h.b16 %v2769
        %v2974 = vpack.c.b16 %v2848, %v2846
        %v2975 = vpack.c.b16 %v2849, %v2847
        %v2976 = vpack.c.b16 %v2852, %v2850
        %v2977 = vpack.c.b16 %v2853, %v2851
        %v2978 = vpack.c.b16 %v2856, %v2854
        %v2979 = vpack.c.b16 %v2857, %v2855
        %v2980 = vpack.c.b16 %v2860, %v2858
        %v2981 = vpack.c.b16 %v2861, %v2859
        %v2982 = vpack.c.b16 %v2864, %v2862
        %v2983 = vpack.c.b16 %v2865, %v2863
        %v2984 = vpack.c.b16 %v2868, %v2866
        %v2985 = vpack.c.b16 %v2869, %v2867
        %v2986 = vpack.c.b16 %v2872, %v2870
        %v2987 = vpack.c.b16 %v2873, %v2871
        %v2988 = vpack.c.b16 %v2876, %v2874
        %v2989 = vpack.c.b16 %v2877, %v2875
        %v2990 = vpack.c.b16 %v2880, %v2878
        %v2991 = vpack.c.b16 %v2881, %v2879
        %v2992 = vpack.c.b16 %v2884, %v2882
        %v2993 = vpack.c.b16 %v2885, %v2883
        %v2994 = vpack.c.b16 %v2888, %v2886
        %v2995 = vpack.c.b16 %v2889, %v2887
        %v2996 = vpack.c.b16 %v2892, %v2890
        %v2997 = vpack.c.b16 %v2893, %v2891
        %v2998 = vpack.c.b16 %v2896, %v2894
        %v2999 = vpack.c.b16 %v2897, %v2895
        %v3000 = vpack.c.b16 %v2900, %v2898
        %v3001 = vpack.c.b16 %v2901, %v2899
        %v3002 = vpack.c.b16 %v2904, %v2902
        %v3003 = vpack.c.b16 %v2905, %v2903
        %v3004 = vpack.c.b16 %v2908, %v2906
        %v3005 = vpack.c.b16 %v2909, %v2907
        %v3006 = vpack.c.b16 %v2912, %v2910
        %v3007 = vpack.c.b16 %v2913, %v2911
        %v3008 = vpack.c.b16 %v2916, %v2914
        %v3009 = vpack.c.b16 %v2917, %v2915
        %v3010 = vpack.c.b16 %v2920, %v2918
        %v3011 = vpack.c.b16 %v2921, %v2919
        %v3012 = vpack.c.b16 %v2924, %v2922
        %v3013 = vpack.c.b16 %v2925, %v2923
        %v3014 = vpack.c.b16 %v2928, %v2926
        %v3015 = vpack.c.b16 %v2929, %v2927
        %v3016 = vpack.c.b16 %v2932, %v2930
        %v3017 = vpack.c.b16 %v2933, %v2931
        %v3018 = vpack.c.b16 %v2936, %v2934
        %v3019 = vpack.c.b16 %v2937, %v2935
        %v3020 = vpack.c.b16 %v2940, %v2938
        %v3021 = vpack.c.b16 %v2941, %v2939
        %v3022 = vpack.c.b16 %v2944, %v2942
        %v3023 = vpack.c.b16 %v2945, %v2943
        %v3024 = vpack.c.b16 %v2948, %v2946
        %v3025 = vpack.c.b16 %v2949, %v2947
        %v3026 = vpack.c.b16 %v2952, %v2950
        %v3027 = vpack.c.b16 %v2953, %v2951
        %v3028 = vpack.c.b16 %v2956, %v2954
        %v3029 = vpack.c.b16 %v2957, %v2955
        %v3030 = vpack.c.b16 %v2960, %v2958
        %v3031 = vpack.c.b16 %v2961, %v2959
        %v3032 = vpack.c.b16 %v2964, %v2962
        %v3033 = vpack.c.b16 %v2965, %v2963
        %v3034 = vpack.c.b16 %v2968, %v2966
        %v3035 = vpack.c.b16 %v2969, %v2967
        %v3036 = vpack.c.b16 %v2972, %v2970
        %v3037 = vpack.c.b16 %v2973, %v2971
        %3102 = vmatprep.subr.bf16.mxu0 %v2975
        %3103 = vmatpush1.bf16.msra.mxu0 %v2974
        %3104 = vmatprep.subr.bf16.mxu0 %v2977
        %3105 = vmatpush1.bf16.msra.mxu0 %v2976
        %3106 = vmatprep.subr.bf16.mxu0 %v2979
        %3107 = vmatpush1.bf16.msra.mxu0 %v2978
        %3108 = vmatprep.subr.bf16.mxu0 %v2981
        %3109 = vmatpush1.bf16.msra.mxu0 %v2980
        %3110 = vmatprep.subr.bf16.mxu0 %v2983
        %3111 = vmatpush1.bf16.msra.mxu0 %v2982
        %3112 = vmatprep.subr.bf16.mxu0 %v2985
        %3113 = vmatpush1.bf16.msra.mxu0 %v2984
        %3114 = vmatprep.subr.bf16.mxu0 %v2987
        %3115 = vmatpush1.bf16.msra.mxu0 %v2986
        %3116 = vmatprep.subr.bf16.mxu0 %v2989
        %3117 = vmatpush1.bf16.msra.mxu0 %v2988
        %3118 = vmatprep.subr.bf16.mxu0 %v2991
        %3119 = vmatpush1.bf16.msra.mxu0 %v2990
        %3120 = vmatprep.subr.bf16.mxu0 %v2993
        %3121 = vmatpush1.bf16.msra.mxu0 %v2992
        %3122 = vmatprep.subr.bf16.mxu0 %v2995
        %3123 = vmatpush1.bf16.msra.mxu0 %v2994
        %3124 = vmatprep.subr.bf16.mxu0 %v2997
        %3125 = vmatpush1.bf16.msra.mxu0 %v2996
        %3126 = vmatprep.subr.bf16.mxu0 %v2999
        %3127 = vmatpush1.bf16.msra.mxu0 %v2998
        %3128 = vmatprep.subr.bf16.mxu0 %v3001
        %3129 = vmatpush1.bf16.msra.mxu0 %v3000
        %3130 = vmatprep.subr.bf16.mxu0 %v3003
        %3131 = vmatpush1.bf16.msra.mxu0 %v3002
        %3132 = vmatprep.subr.bf16.mxu0 %v3005
        %3133 = vmatpush1.bf16.msra.mxu0 %v3004
        %3134 = vmatprep.mubr.bf16.mxu0 %v2643
        %3135 = vmatmul.mubr.bf16.gmra.mrb[0].mxu0 %v2642
        %v3136 = vpop.f32.mrb[0].mxu0
        %v3137 = vadd.f32 %v2775, %v3136
        %v3138 = vpop.f32.mrb[0].mxu0
        %v3139 = vadd.f32 %v2779, %v3138
        %v3140 = vpop.f32.mrb[0].mxu0
        %v3141 = vadd.f32 %v2775, %v3140
        %v3142 = vpop.f32.mrb[0].mxu0
        %v3143 = vadd.f32 %v2779, %v3142
        %3144 = vmatprep.mubr.bf16.mxu0 %v2647
        %3145 = vmatmul.mubr.bf16.gmra.mrb[0].mxu0 %v2646
        %v3146 = vpop.f32.mrb[0].mxu0
        %v3147 = vadd.f32 %v2775, %v3146
        %v3148 = vpop.f32.mrb[0].mxu0
        %v3149 = vadd.f32 %v2779, %v3148
        %v3150 = vpop.f32.mrb[0].mxu0
        %v3151 = vadd.f32 %v2775, %v3150
        %v3152 = vpop.f32.mrb[0].mxu0
        %v3153 = vadd.f32 %v2779, %v3152
        %3154 = vmatprep.mubr.bf16.mxu0 %v2651
        %3155 = vmatmul.mubr.bf16.gmra.mrb[0].mxu0 %v2650
        %v3156 = vpop.f32.mrb[0].mxu0
        %v3157 = vadd.f32 %v2775, %v3156
        %v3158 = vpop.f32.mrb[0].mxu0
        %v3159 = vadd.f32 %v2779, %v3158
        %v3160 = vpop.f32.mrb[0].mxu0
        %v3161 = vadd.f32 %v2775, %v3160
        %v3162 = vpop.f32.mrb[0].mxu0
        %v3163 = vadd.f32 %v2779, %v3162
        %3164 = vmatprep.mubr.bf16.mxu0 %v2655
        %3165 = vmatmul.mubr.bf16.gmra.mrb[0].mxu0 %v2654
        %v3166 = vpop.f32.mrb[0].mxu0
        %v3167 = vadd.f32 %v2775, %v3166
        %v3168 = vpop.f32.mrb[0].mxu0
        %v3169 = vadd.f32 %v2779, %v3168
        %v3170 = vpop.f32.mrb[0].mxu0
        %v3171 = vadd.f32 %v2775, %v3170
        %v3172 = vpop.f32.mrb[0].mxu0
        %v3173 = vadd.f32 %v2779, %v3172
        %3174 = vmatprep.mubr.bf16.mxu0 %v2659
        %3175 = vmatmul.mubr.bf16.gmra.mrb[0].mxu0 %v2658
        %v3176 = vpop.f32.mrb[0].mxu0
        %v3177 = vadd.f32 %v2775, %v3176
        %v3178 = vpop.f32.mrb[0].mxu0
        %v3179 = vadd.f32 %v2779, %v3178
        %v3180 = vpop.f32.mrb[0].mxu0
        %v3181 = vadd.f32 %v2775, %v3180
        %v3182 = vpop.f32.mrb[0].mxu0
        %v3183 = vadd.f32 %v2779, %v3182
        %3184 = vmatprep.mubr.bf16.mxu0 %v2663
        %3185 = vmatmul.mubr.bf16.gmra.mrb[0].mxu0 %v2662
        %v3186 = vpop.f32.mrb[0].mxu0
        %v3187 = vadd.f32 %v2775, %v3186
        %v3188 = vpop.f32.mrb[0].mxu0
        %v3189 = vadd.f32 %v2779, %v3188
        %v3190 = vpop.f32.mrb[0].mxu0
        %v3191 = vadd.f32 %v2775, %v3190
        %v3192 = vpop.f32.mrb[0].mxu0
        %v3193 = vadd.f32 %v2779, %v3192
        %3194 = vmatprep.mubr.bf16.mxu0 %v2667
        %3195 = vmatmul.mubr.bf16.gmra.mrb[0].mxu0 %v2666
        %v3196 = vpop.f32.mrb[0].mxu0
        %v3197 = vadd.f32 %v2775, %v3196
        %v3198 = vpop.f32.mrb[0].mxu0
        %v3199 = vadd.f32 %v2779, %v3198
        %v3200 = vpop.f32.mrb[0].mxu0
        %v3201 = vadd.f32 %v2775, %v3200
        %v3202 = vpop.f32.mrb[0].mxu0
        %v3203 = vadd.f32 %v2779, %v3202
        %3204 = vmatprep.mubr.bf16.mxu0 %v2671
        %3205 = vmatmul.mubr.bf16.gmra.mrb[0].mxu0 %v2670
        %v3206 = vpop.f32.mrb[0].mxu0
        %v3207 = vadd.f32 %v2775, %v3206
        %v3208 = vpop.f32.mrb[0].mxu0
        %v3209 = vadd.f32 %v2779, %v3208
        %v3210 = vpop.f32.mrb[0].mxu0
        %v3211 = vadd.f32 %v2775, %v3210
        %v3212 = vpop.f32.mrb[0].mxu0
        %v3213 = vadd.f32 %v2779, %v3212
        %3214 = vmatprep.mubr.bf16.mxu0 %v2675
        %3215 = vmatmul.mubr.bf16.gmra.mrb[0].mxu0 %v2674
        %v3216 = vpop.f32.mrb[0].mxu0
        %v3217 = vadd.f32 %v2775, %v3216
        %v3218 = vpop.f32.mrb[0].mxu0
        %v3219 = vadd.f32 %v2779, %v3218
        %v3220 = vpop.f32.mrb[0].mxu0
        %v3221 = vadd.f32 %v2775, %v3220
        %v3222 = vpop.f32.mrb[0].mxu0
        %v3223 = vadd.f32 %v2779, %v3222
        %3224 = vmatprep.mubr.bf16.mxu0 %v2679
        %3225 = vmatmul.mubr.bf16.gmra.mrb[0].mxu0 %v2678
        %v3226 = vpop.f32.mrb[0].mxu0
        %v3227 = vadd.f32 %v2775, %v3226
        %v3228 = vpop.f32.mrb[0].mxu0
        %v3229 = vadd.f32 %v2779, %v3228
        %v3230 = vpop.f32.mrb[0].mxu0
        %v3231 = vadd.f32 %v2775, %v3230
        %v3232 = vpop.f32.mrb[0].mxu0
        %v3233 = vadd.f32 %v2779, %v3232
        %3234 = vmatprep.mubr.bf16.mxu0 %v2683
        %3235 = vmatmul.mubr.bf16.gmra.mrb[0].mxu0 %v2682
        %v3236 = vpop.f32.mrb[0].mxu0
        %v3237 = vadd.f32 %v2775, %v3236
        %v3238 = vpop.f32.mrb[0].mxu0
        %v3239 = vadd.f32 %v2779, %v3238
        %v3240 = vpop.f32.mrb[0].mxu0
        %v3241 = vadd.f32 %v2775, %v3240
        %v3242 = vpop.f32.mrb[0].mxu0
        %v3243 = vadd.f32 %v2779, %v3242
        %3244 = vmatprep.mubr.bf16.mxu0 %v2687
        %3245 = vmatmul.mubr.bf16.gmra.mrb[0].mxu0 %v2686
        %v3246 = vpop.f32.mrb[0].mxu0
        %v3247 = vadd.f32 %v2775, %v3246
        %v3248 = vpop.f32.mrb[0].mxu0
        %v3249 = vadd.f32 %v2779, %v3248
        %v3250 = vpop.f32.mrb[0].mxu0
        %v3251 = vadd.f32 %v2775, %v3250
        %v3252 = vpop.f32.mrb[0].mxu0
        %v3253 = vadd.f32 %v2779, %v3252
        %3254 = vmatprep.mubr.bf16.mxu0 %v2691
        %3255 = vmatmul.mubr.bf16.gmra.mrb[0].mxu0 %v2690
        %v3256 = vpop.f32.mrb[0].mxu0
        %v3257 = vadd.f32 %v2775, %v3256
        %v3258 = vpop.f32.mrb[0].mxu0
        %v3259 = vadd.f32 %v2779, %v3258
        %v3260 = vpop.f32.mrb[0].mxu0
        %v3261 = vadd.f32 %v2775, %v3260
        %v3262 = vpop.f32.mrb[0].mxu0
        %v3263 = vadd.f32 %v2779, %v3262
        %3264 = vmatprep.mubr.bf16.mxu0 %v2695
        %3265 = vmatmul.mubr.bf16.gmra.mrb[0].mxu0 %v2694
        %v3266 = vpop.f32.mrb[0].mxu0
        %v3267 = vadd.f32 %v2775, %v3266
        %v3268 = vpop.f32.mrb[0].mxu0
        %v3269 = vadd.f32 %v2779, %v3268
        %v3270 = vpop.f32.mrb[0].mxu0
        %v3271 = vadd.f32 %v2775, %v3270
        %v3272 = vpop.f32.mrb[0].mxu0
        %v3273 = vadd.f32 %v2779, %v3272
        %3274 = vmatprep.mubr.bf16.mxu0 %v2699
        %3275 = vmatmul.mubr.bf16.gmra.mrb[0].mxu0 %v2698
        %v3276 = vpop.f32.mrb[0].mxu0
        %v3277 = vadd.f32 %v2775, %v3276
        %v3278 = vpop.f32.mrb[0].mxu0
        %v3279 = vadd.f32 %v2779, %v3278
        %v3280 = vpop.f32.mrb[0].mxu0
        %v3281 = vadd.f32 %v2775, %v3280
        %v3282 = vpop.f32.mrb[0].mxu0
        %v3283 = vadd.f32 %v2779, %v3282
        %3284 = vmatprep.mubr.bf16.mxu0 %v2703
        %3285 = vmatmul.mubr.bf16.gmra.mrb[0].mxu0 %v2702
        %v3286 = vpop.f32.mrb[0].mxu0
        %v3287 = vadd.f32 %v2775, %v3286
        %v3288 = vpop.f32.mrb[0].mxu0
        %v3289 = vadd.f32 %v2779, %v3288
        %v3290 = vpop.f32.mrb[0].mxu0
        %v3291 = vadd.f32 %v2775, %v3290
        %v3292 = vpop.f32.mrb[0].mxu0
        %v3293 = vadd.f32 %v2779, %v3292
        %3294 = vdwg.mxu0
        %3295 = vmatprep.subr.bf16.mxu0 %v3007
        %3296 = vmatpush1.bf16.msra.mxu0 %v3006
        %3297 = vmatprep.subr.bf16.mxu0 %v3009
        %3298 = vmatpush1.bf16.msra.mxu0 %v3008
        %3299 = vmatprep.subr.bf16.mxu0 %v3011
        %3300 = vmatpush1.bf16.msra.mxu0 %v3010
        %3301 = vmatprep.subr.bf16.mxu0 %v3013
        %3302 = vmatpush1.bf16.msra.mxu0 %v3012
        %3303 = vmatprep.subr.bf16.mxu0 %v3015
        %3304 = vmatpush1.bf16.msra.mxu0 %v3014
        %3305 = vmatprep.subr.bf16.mxu0 %v3017
        %3306 = vmatpush1.bf16.msra.mxu0 %v3016
        %3307 = vmatprep.subr.bf16.mxu0 %v3019
        %3308 = vmatpush1.bf16.msra.mxu0 %v3018
        %3309 = vmatprep.subr.bf16.mxu0 %v3021
        %3310 = vmatpush1.bf16.msra.mxu0 %v3020
        %3311 = vmatprep.subr.bf16.mxu0 %v3023
        %3312 = vmatpush1.bf16.msra.mxu0 %v3022
        %3313 = vmatprep.subr.bf16.mxu0 %v3025
        %3314 = vmatpush1.bf16.msra.mxu0 %v3024
        %3315 = vmatprep.subr.bf16.mxu0 %v3027
        %3316 = vmatpush1.bf16.msra.mxu0 %v3026
        %3317 = vmatprep.subr.bf16.mxu0 %v3029
        %3318 = vmatpush1.bf16.msra.mxu0 %v3028
        %3319 = vmatprep.subr.bf16.mxu0 %v3031
        %3320 = vmatpush1.bf16.msra.mxu0 %v3030
        %3321 = vmatprep.subr.bf16.mxu0 %v3033
        %3322 = vmatpush1.bf16.msra.mxu0 %v3032
        %3323 = vmatprep.subr.bf16.mxu0 %v3035
        %3324 = vmatpush1.bf16.msra.mxu0 %v3034
        %3325 = vmatprep.subr.bf16.mxu0 %v3037
        %3326 = vmatpush1.bf16.msra.mxu0 %v3036
        %3327 = vmatprep.mubr.bf16.mxu0 %v2645
        %3328 = vmatmul.mubr.bf16.gmra.mrb[0].mxu0 %v2644
        %v3329 = vpop.f32.mrb[0].mxu0
        %v3330 = vadd.f32 %v3137, %v3329
        %v3331 = vpop.f32.mrb[0].mxu0
        %v3332 = vadd.f32 %v3139, %v3331
        %v3333 = vpop.f32.mrb[0].mxu0
        %v3334 = vadd.f32 %v3141, %v3333
        %v3335 = vpop.f32.mrb[0].mxu0
        %v3336 = vadd.f32 %v3143, %v3335
        %3337 = vmatprep.mubr.bf16.mxu0 %v2649
        %3338 = vmatmul.mubr.bf16.gmra.mrb[0].mxu0 %v2648
        %v3339 = vpop.f32.mrb[0].mxu0
        %v3340 = vadd.f32 %v3147, %v3339
        %v3341 = vpop.f32.mrb[0].mxu0
        %v3342 = vadd.f32 %v3149, %v3341
        %v3343 = vpop.f32.mrb[0].mxu0
        %v3344 = vadd.f32 %v3151, %v3343
        %v3345 = vpop.f32.mrb[0].mxu0
        %v3346 = vadd.f32 %v3153, %v3345
        %3347 = vmatprep.mubr.bf16.mxu0 %v2653
        %3348 = vmatmul.mubr.bf16.gmra.mrb[0].mxu0 %v2652
        %v3349 = vpop.f32.mrb[0].mxu0
        %v3350 = vadd.f32 %v3157, %v3349
        %v3351 = vpop.f32.mrb[0].mxu0
        %v3352 = vadd.f32 %v3159, %v3351
        %v3353 = vpop.f32.mrb[0].mxu0
        %v3354 = vadd.f32 %v3161, %v3353
        %v3355 = vpop.f32.mrb[0].mxu0
        %v3356 = vadd.f32 %v3163, %v3355
        %3357 = vmatprep.mubr.bf16.mxu0 %v2657
        %3358 = vmatmul.mubr.bf16.gmra.mrb[0].mxu0 %v2656
        %v3359 = vpop.f32.mrb[0].mxu0
        %v3360 = vadd.f32 %v3167, %v3359
        %v3361 = vpop.f32.mrb[0].mxu0
        %v3362 = vadd.f32 %v3169, %v3361
        %v3363 = vpop.f32.mrb[0].mxu0
        %v3364 = vadd.f32 %v3171, %v3363
        %v3365 = vpop.f32.mrb[0].mxu0
        %v3366 = vadd.f32 %v3173, %v3365
        %3367 = vmatprep.mubr.bf16.mxu0 %v2661
        %3368 = vmatmul.mubr.bf16.gmra.mrb[0].mxu0 %v2660
        %v3369 = vpop.f32.mrb[0].mxu0
        %v3370 = vadd.f32 %v3177, %v3369
        %v3371 = vpop.f32.mrb[0].mxu0
        %v3372 = vadd.f32 %v3179, %v3371
        %v3373 = vpop.f32.mrb[0].mxu0
        %v3374 = vadd.f32 %v3181, %v3373
        %v3375 = vpop.f32.mrb[0].mxu0
        %v3376 = vadd.f32 %v3183, %v3375
        %3377 = vmatprep.mubr.bf16.mxu0 %v2665
        %3378 = vmatmul.mubr.bf16.gmra.mrb[0].mxu0 %v2664
        %v3379 = vpop.f32.mrb[0].mxu0
        %v3380 = vadd.f32 %v3187, %v3379
        %v3381 = vpop.f32.mrb[0].mxu0
        %v3382 = vadd.f32 %v3189, %v3381
        %v3383 = vpop.f32.mrb[0].mxu0
        %v3384 = vadd.f32 %v3191, %v3383
        %v3385 = vpop.f32.mrb[0].mxu0
        %v3386 = vadd.f32 %v3193, %v3385
        %3387 = vmatprep.mubr.bf16.mxu0 %v2669
        %3388 = vmatmul.mubr.bf16.gmra.mrb[0].mxu0 %v2668
        %v3389 = vpop.f32.mrb[0].mxu0
        %v3390 = vadd.f32 %v3197, %v3389
        %v3391 = vpop.f32.mrb[0].mxu0
        %v3392 = vadd.f32 %v3199, %v3391
        %v3393 = vpop.f32.mrb[0].mxu0
        %v3394 = vadd.f32 %v3201, %v3393
        %v3395 = vpop.f32.mrb[0].mxu0
        %v3396 = vadd.f32 %v3203, %v3395
        %3397 = vmatprep.mubr.bf16.mxu0 %v2673
        %3398 = vmatmul.mubr.bf16.gmra.mrb[0].mxu0 %v2672
        %v3399 = vpop.f32.mrb[0].mxu0
        %v3400 = vadd.f32 %v3207, %v3399
        %v3401 = vpop.f32.mrb[0].mxu0
        %v3402 = vadd.f32 %v3209, %v3401
        %v3403 = vpop.f32.mrb[0].mxu0
        %v3404 = vadd.f32 %v3211, %v3403
        %v3405 = vpop.f32.mrb[0].mxu0
        %v3406 = vadd.f32 %v3213, %v3405
        %3407 = vmatprep.mubr.bf16.mxu0 %v2677
        %3408 = vmatmul.mubr.bf16.gmra.mrb[0].mxu0 %v2676
        %v3409 = vpop.f32.mrb[0].mxu0
        %v3410 = vadd.f32 %v3217, %v3409
        %v3411 = vpop.f32.mrb[0].mxu0
        %v3412 = vadd.f32 %v3219, %v3411
        %v3413 = vpop.f32.mrb[0].mxu0
        %v3414 = vadd.f32 %v3221, %v3413
        %v3415 = vpop.f32.mrb[0].mxu0
        %v3416 = vadd.f32 %v3223, %v3415
        %3417 = vmatprep.mubr.bf16.mxu0 %v2681
        %3418 = vmatmul.mubr.bf16.gmra.mrb[0].mxu0 %v2680
        %v3419 = vpop.f32.mrb[0].mxu0
        %v3420 = vadd.f32 %v3227, %v3419
        %v3421 = vpop.f32.mrb[0].mxu0
        %v3422 = vadd.f32 %v3229, %v3421
        %v3423 = vpop.f32.mrb[0].mxu0
        %v3424 = vadd.f32 %v3231, %v3423
        %v3425 = vpop.f32.mrb[0].mxu0
        %v3426 = vadd.f32 %v3233, %v3425
        %3427 = vmatprep.mubr.bf16.mxu0 %v2685
        %3428 = vmatmul.mubr.bf16.gmra.mrb[0].mxu0 %v2684
        %v3429 = vpop.f32.mrb[0].mxu0
        %v3430 = vadd.f32 %v3237, %v3429
        %v3431 = vpop.f32.mrb[0].mxu0
        %v3432 = vadd.f32 %v3239, %v3431
        %v3433 = vpop.f32.mrb[0].mxu0
        %v3434 = vadd.f32 %v3241, %v3433
        %v3435 = vpop.f32.mrb[0].mxu0
        %v3436 = vadd.f32 %v3243, %v3435
        %3437 = vmatprep.mubr.bf16.mxu0 %v2689
        %3438 = vmatmul.mubr.bf16.gmra.mrb[0].mxu0 %v2688
        %v3439 = vpop.f32.mrb[0].mxu0
        %v3440 = vadd.f32 %v3247, %v3439
        %v3441 = vpop.f32.mrb[0].mxu0
        %v3442 = vadd.f32 %v3249, %v3441
        %v3443 = vpop.f32.mrb[0].mxu0
        %v3444 = vadd.f32 %v3251, %v3443
        %v3445 = vpop.f32.mrb[0].mxu0
        %v3446 = vadd.f32 %v3253, %v3445
        %3447 = vmatprep.mubr.bf16.mxu0 %v2693
        %3448 = vmatmul.mubr.bf16.gmra.mrb[0].mxu0 %v2692
        %v3449 = vpop.f32.mrb[0].mxu0
        %v3450 = vadd.f32 %v3257, %v3449
        %v3451 = vpop.f32.mrb[0].mxu0
        %v3452 = vadd.f32 %v3259, %v3451
        %v3453 = vpop.f32.mrb[0].mxu0
        %v3454 = vadd.f32 %v3261, %v3453
        %v3455 = vpop.f32.mrb[0].mxu0
        %v3456 = vadd.f32 %v3263, %v3455
        %3457 = vmatprep.mubr.bf16.mxu0 %v2697
        %3458 = vmatmul.mubr.bf16.gmra.mrb[0].mxu0 %v2696
        %v3459 = vpop.f32.mrb[0].mxu0
        %v3460 = vadd.f32 %v3267, %v3459
        %v3461 = vpop.f32.mrb[0].mxu0
        %v3462 = vadd.f32 %v3269, %v3461
        %v3463 = vpop.f32.mrb[0].mxu0
        %v3464 = vadd.f32 %v3271, %v3463
        %v3465 = vpop.f32.mrb[0].mxu0
        %v3466 = vadd.f32 %v3273, %v3465
        %3467 = vmatprep.mubr.bf16.mxu0 %v2701
        %3468 = vmatmul.mubr.bf16.gmra.mrb[0].mxu0 %v2700
        %v3469 = vpop.f32.mrb[0].mxu0
        %v3470 = vadd.f32 %v3277, %v3469
        %v3471 = vpop.f32.mrb[0].mxu0
        %v3472 = vadd.f32 %v3279, %v3471
        %v3473 = vpop.f32.mrb[0].mxu0
        %v3474 = vadd.f32 %v3281, %v3473
        %v3475 = vpop.f32.mrb[0].mxu0
        %v3476 = vadd.f32 %v3283, %v3475
        %3477 = vmatprep.mubr.bf16.mxu0 %v2705
        %3478 = vmatmul.mubr.bf16.gmra.mrb[0].mxu0 %v2704
        %v3479 = vpop.f32.mrb[0].mxu0
        %v3480 = vadd.f32 %v3287, %v3479
        %v3481 = vpop.f32.mrb[0].mxu0
        %v3482 = vadd.f32 %v3289, %v3481
        %v3483 = vpop.f32.mrb[0].mxu0
        %v3484 = vadd.f32 %v3291, %v3483
        %v3485 = vpop.f32.mrb[0].mxu0
        %v3486 = vadd.f32 %v3293, %v3485
        %3487 = vdwg.mxu0
        %v3488 = vsub.f32 0.0, %v3330
        %v3489 = vsub.f32 0.0, %v3332
        %v3490 = vsub.f32 0.0, %v3334
        %v3491 = vsub.f32 0.0, %v3336
        %v3492 = vsub.f32 0.0, %v3340
        %v3493 = vsub.f32 0.0, %v3342
        %v3494 = vsub.f32 0.0, %v3344
        %v3495 = vsub.f32 0.0, %v3346
        %v3496 = vsub.f32 0.0, %v3350
        %v3497 = vsub.f32 0.0, %v3352
        %v3498 = vsub.f32 0.0, %v3354
        %v3499 = vsub.f32 0.0, %v3356
        %v3500 = vsub.f32 0.0, %v3360
        %v3501 = vsub.f32 0.0, %v3362
        %v3502 = vsub.f32 0.0, %v3364
        %v3503 = vsub.f32 0.0, %v3366
        %v3504 = vsub.f32 0.0, %v3370
        %v3505 = vsub.f32 0.0, %v3372
        %v3506 = vsub.f32 0.0, %v3374
        %v3507 = vsub.f32 0.0, %v3376
        %v3508 = vsub.f32 0.0, %v3380
        %v3509 = vsub.f32 0.0, %v3382
        %v3510 = vsub.f32 0.0, %v3384
        %v3511 = vsub.f32 0.0, %v3386
        %v3512 = vsub.f32 0.0, %v3390
        %v3513 = vsub.f32 0.0, %v3392
        %v3514 = vsub.f32 0.0, %v3394
        %v3515 = vsub.f32 0.0, %v3396
        %v3516 = vsub.f32 0.0, %v3400
        %v3517 = vsub.f32 0.0, %v3402
        %v3518 = vsub.f32 0.0, %v3404
        %v3519 = vsub.f32 0.0, %v3406
        %v3520 = vsub.f32 0.0, %v3410
        %v3521 = vsub.f32 0.0, %v3412
        %v3522 = vsub.f32 0.0, %v3414
        %v3523 = vsub.f32 0.0, %v3416
        %v3524 = vsub.f32 0.0, %v3420
        %v3525 = vsub.f32 0.0, %v3422
        %v3526 = vsub.f32 0.0, %v3424
        %v3527 = vsub.f32 0.0, %v3426
        %v3528 = vsub.f32 0.0, %v3430
        %v3529 = vsub.f32 0.0, %v3432
        %v3530 = vsub.f32 0.0, %v3434
        %v3531 = vsub.f32 0.0, %v3436
        %v3532 = vsub.f32 0.0, %v3440
        %v3533 = vsub.f32 0.0, %v3442
        %v3534 = vsub.f32 0.0, %v3444
        %v3535 = vsub.f32 0.0, %v3446
        %v3536 = vsub.f32 0.0, %v3450
        %v3537 = vsub.f32 0.0, %v3452
        %v3538 = vsub.f32 0.0, %v3454
        %v3539 = vsub.f32 0.0, %v3456
        %v3540 = vsub.f32 0.0, %v3460
        %v3541 = vsub.f32 0.0, %v3462
        %v3542 = vsub.f32 0.0, %v3464
        %v3543 = vsub.f32 0.0, %v3466
        %v3544 = vsub.f32 0.0, %v3470
        %v3545 = vsub.f32 0.0, %v3472
        %v3546 = vsub.f32 0.0, %v3474
        %v3547 = vsub.f32 0.0, %v3476
        %v3548 = vsub.f32 0.0, %v3480
        %v3549 = vsub.f32 0.0, %v3482
        %v3550 = vsub.f32 0.0, %v3484
        %v3551 = vsub.f32 0.0, %v3486
        %v3552 = vmul.f32 %v3488, 1.442695
        %v3553 = vpow.pop %v3552
        %v3554 = vmul.f32 %v3489, 1.442695
        %v3555 = vpow.pop %v3554
        %v3556 = vmul.f32 %v3490, 1.442695
        %v3557 = vpow.pop %v3556
        %v3558 = vmul.f32 %v3491, 1.442695
        %v3559 = vpow.pop %v3558
        %v3560 = vmul.f32 %v3492, 1.442695
        %v3561 = vpow.pop %v3560
        %v3562 = vmul.f32 %v3493, 1.442695
        %v3563 = vpow.pop %v3562
        %v3564 = vmul.f32 %v3494, 1.442695
        %v3565 = vpow.pop %v3564
        %v3566 = vmul.f32 %v3495, 1.442695
        %v3567 = vpow.pop %v3566
        %v3568 = vmul.f32 %v3496, 1.442695
        %v3569 = vpow.pop %v3568
        %v3570 = vmul.f32 %v3497, 1.442695
        %v3571 = vpow.pop %v3570
        %v3572 = vmul.f32 %v3498, 1.442695
        %v3573 = vpow.pop %v3572
        %v3574 = vmul.f32 %v3499, 1.442695
        %v3575 = vpow.pop %v3574
        %v3576 = vmul.f32 %v3500, 1.442695
        %v3577 = vpow.pop %v3576
        %v3578 = vmul.f32 %v3501, 1.442695
        %v3579 = vpow.pop %v3578
        %v3580 = vmul.f32 %v3502, 1.442695
        %v3581 = vpow.pop %v3580
        %v3582 = vmul.f32 %v3503, 1.442695
        %v3583 = vpow.pop %v3582
        %v3584 = vmul.f32 %v3504, 1.442695
        %v3585 = vpow.pop %v3584
        %v3586 = vmul.f32 %v3505, 1.442695
        %v3587 = vpow.pop %v3586
        %v3588 = vmul.f32 %v3506, 1.442695
        %v3589 = vpow.pop %v3588
        %v3590 = vmul.f32 %v3507, 1.442695
        %v3591 = vpow.pop %v3590
        %v3592 = vmul.f32 %v3508, 1.442695
        %v3593 = vpow.pop %v3592
        %v3594 = vmul.f32 %v3509, 1.442695
        %v3595 = vpow.pop %v3594
        %v3596 = vmul.f32 %v3510, 1.442695
        %v3597 = vpow.pop %v3596
        %v3598 = vmul.f32 %v3511, 1.442695
        %v3599 = vpow.pop %v3598
        %v3600 = vmul.f32 %v3512, 1.442695
        %v3601 = vpow.pop %v3600
        %v3602 = vmul.f32 %v3513, 1.442695
        %v3603 = vpow.pop %v3602
        %v3604 = vmul.f32 %v3514, 1.442695
        %v3605 = vpow.pop %v3604
        %v3606 = vmul.f32 %v3515, 1.442695
        %v3607 = vpow.pop %v3606
        %v3608 = vmul.f32 %v3516, 1.442695
        %v3609 = vpow.pop %v3608
        %v3610 = vmul.f32 %v3517, 1.442695
        %v3611 = vpow.pop %v3610
        %v3612 = vmul.f32 %v3518, 1.442695
        %v3613 = vpow.pop %v3612
        %v3614 = vmul.f32 %v3519, 1.442695
        %v3615 = vpow.pop %v3614
        %v3616 = vmul.f32 %v3520, 1.442695
        %v3617 = vpow.pop %v3616
        %v3618 = vmul.f32 %v3521, 1.442695
        %v3619 = vpow.pop %v3618
        %v3620 = vmul.f32 %v3522, 1.442695
        %v3621 = vpow.pop %v3620
        %v3622 = vmul.f32 %v3523, 1.442695
        %v3623 = vpow.pop %v3622
        %v3624 = vmul.f32 %v3524, 1.442695
        %v3625 = vpow.pop %v3624
        %v3626 = vmul.f32 %v3525, 1.442695
        %v3627 = vpow.pop %v3626
        %v3628 = vmul.f32 %v3526, 1.442695
        %v3629 = vpow.pop %v3628
        %v3630 = vmul.f32 %v3527, 1.442695
        %v3631 = vpow.pop %v3630
        %v3632 = vmul.f32 %v3528, 1.442695
        %v3633 = vpow.pop %v3632
        %v3634 = vmul.f32 %v3529, 1.442695
        %v3635 = vpow.pop %v3634
        %v3636 = vmul.f32 %v3530, 1.442695
        %v3637 = vpow.pop %v3636
        %v3638 = vmul.f32 %v3531, 1.442695
        %v3639 = vpow.pop %v3638
        %v3640 = vmul.f32 %v3532, 1.442695
        %v3641 = vpow.pop %v3640
        %v3642 = vmul.f32 %v3533, 1.442695
        %v3643 = vpow.pop %v3642
        %v3644 = vmul.f32 %v3534, 1.442695
        %v3645 = vpow.pop %v3644
        %v3646 = vmul.f32 %v3535, 1.442695
        %v3647 = vpow.pop %v3646
        %v3648 = vmul.f32 %v3536, 1.442695
        %v3649 = vpow.pop %v3648
        %v3650 = vmul.f32 %v3537, 1.442695
        %v3651 = vpow.pop %v3650
        %v3652 = vmul.f32 %v3538, 1.442695
        %v3653 = vpow.pop %v3652
        %v3654 = vmul.f32 %v3539, 1.442695
        %v3655 = vpow.pop %v3654
        %v3656 = vmul.f32 %v3540, 1.442695
        %v3657 = vpow.pop %v3656
        %v3658 = vmul.f32 %v3541, 1.442695
        %v3659 = vpow.pop %v3658
        %v3660 = vmul.f32 %v3542, 1.442695
        %v3661 = vpow.pop %v3660
        %v3662 = vmul.f32 %v3543, 1.442695
        %v3663 = vpow.pop %v3662
        %v3664 = vmul.f32 %v3544, 1.442695
        %v3665 = vpow.pop %v3664
        %v3666 = vmul.f32 %v3545, 1.442695
        %v3667 = vpow.pop %v3666
        %v3668 = vmul.f32 %v3546, 1.442695
        %v3669 = vpow.pop %v3668
        %v3670 = vmul.f32 %v3547, 1.442695
        %v3671 = vpow.pop %v3670
        %v3672 = vmul.f32 %v3548, 1.442695
        %v3673 = vpow.pop %v3672
        %v3674 = vmul.f32 %v3549, 1.442695
        %v3675 = vpow.pop %v3674
        %v3676 = vmul.f32 %v3550, 1.442695
        %v3677 = vpow.pop %v3676
        %v3678 = vmul.f32 %v3551, 1.442695
        %v3679 = vpow.pop %v3678
        %v3680 = vadd.f32 %v3553, 1.0
        %v3681 = vadd.f32 %v3555, 1.0
        %v3682 = vadd.f32 %v3557, 1.0
        %v3683 = vadd.f32 %v3559, 1.0
        %v3684 = vadd.f32 %v3561, 1.0
        %v3685 = vadd.f32 %v3563, 1.0
        %v3686 = vadd.f32 %v3565, 1.0
        %v3687 = vadd.f32 %v3567, 1.0
        %v3688 = vadd.f32 %v3569, 1.0
        %v3689 = vadd.f32 %v3571, 1.0
        %v3690 = vadd.f32 %v3573, 1.0
        %v3691 = vadd.f32 %v3575, 1.0
        %v3692 = vadd.f32 %v3577, 1.0
        %v3693 = vadd.f32 %v3579, 1.0
        %v3694 = vadd.f32 %v3581, 1.0
        %v3695 = vadd.f32 %v3583, 1.0
        %v3696 = vadd.f32 %v3585, 1.0
        %v3697 = vadd.f32 %v3587, 1.0
        %v3698 = vadd.f32 %v3589, 1.0
        %v3699 = vadd.f32 %v3591, 1.0
        %v3700 = vadd.f32 %v3593, 1.0
        %v3701 = vadd.f32 %v3595, 1.0
        %v3702 = vadd.f32 %v3597, 1.0
        %v3703 = vadd.f32 %v3599, 1.0
        %v3704 = vadd.f32 %v3601, 1.0
        %v3705 = vadd.f32 %v3603, 1.0
        %v3706 = vadd.f32 %v3605, 1.0
        %v3707 = vadd.f32 %v3607, 1.0
        %v3708 = vadd.f32 %v3609, 1.0
        %v3709 = vadd.f32 %v3611, 1.0
        %v3710 = vadd.f32 %v3613, 1.0
        %v3711 = vadd.f32 %v3615, 1.0
        %v3712 = vadd.f32 %v3617, 1.0
        %v3713 = vadd.f32 %v3619, 1.0
        %v3714 = vadd.f32 %v3621, 1.0
        %v3715 = vadd.f32 %v3623, 1.0
        %v3716 = vadd.f32 %v3625, 1.0
        %v3717 = vadd.f32 %v3627, 1.0
        %v3718 = vadd.f32 %v3629, 1.0
        %v3719 = vadd.f32 %v3631, 1.0
        %v3720 = vadd.f32 %v3633, 1.0
        %v3721 = vadd.f32 %v3635, 1.0
        %v3722 = vadd.f32 %v3637, 1.0
        %v3723 = vadd.f32 %v3639, 1.0
        %v3724 = vadd.f32 %v3641, 1.0
        %v3725 = vadd.f32 %v3643, 1.0
        %v3726 = vadd.f32 %v3645, 1.0
        %v3727 = vadd.f32 %v3647, 1.0
        %v3728 = vadd.f32 %v3649, 1.0
        %v3729 = vadd.f32 %v3651, 1.0
        %v3730 = vadd.f32 %v3653, 1.0
        %v3731 = vadd.f32 %v3655, 1.0
        %v3732 = vadd.f32 %v3657, 1.0
        %v3733 = vadd.f32 %v3659, 1.0
        %v3734 = vadd.f32 %v3661, 1.0
        %v3735 = vadd.f32 %v3663, 1.0
        %v3736 = vadd.f32 %v3665, 1.0
        %v3737 = vadd.f32 %v3667, 1.0
        %v3738 = vadd.f32 %v3669, 1.0
        %v3739 = vadd.f32 %v3671, 1.0
        %v3740 = vadd.f32 %v3673, 1.0
        %v3741 = vadd.f32 %v3675, 1.0
        %v3742 = vadd.f32 %v3677, 1.0
        %v3743 = vadd.f32 %v3679, 1.0
        %v3744 = vrcp.pop %v3680
        %v3745 = vrcp.pop %v3681
        %v3746 = vrcp.pop %v3682
        %v3747 = vrcp.pop %v3683
        %v3748 = vrcp.pop %v3684
        %v3749 = vrcp.pop %v3685
        %v3750 = vrcp.pop %v3686
        %v3751 = vrcp.pop %v3687
        %v3752 = vrcp.pop %v3688
        %v3753 = vrcp.pop %v3689
        %v3754 = vrcp.pop %v3690
        %v3755 = vrcp.pop %v3691
        %v3756 = vrcp.pop %v3692
        %v3757 = vrcp.pop %v3693
        %v3758 = vrcp.pop %v3694
        %v3759 = vrcp.pop %v3695
        %v3760 = vrcp.pop %v3696
        %v3761 = vrcp.pop %v3697
        %v3762 = vrcp.pop %v3698
        %v3763 = vrcp.pop %v3699
        %v3764 = vrcp.pop %v3700
        %v3765 = vrcp.pop %v3701
        %v3766 = vrcp.pop %v3702
        %v3767 = vrcp.pop %v3703
        %v3768 = vrcp.pop %v3704
        %v3769 = vrcp.pop %v3705
        %v3770 = vrcp.pop %v3706
        %v3771 = vrcp.pop %v3707
        %v3772 = vrcp.pop %v3708
        %v3773 = vrcp.pop %v3709
        %v3774 = vrcp.pop %v3710
        %v3775 = vrcp.pop %v3711
        %v3776 = vrcp.pop %v3712
        %v3777 = vrcp.pop %v3713
        %v3778 = vrcp.pop %v3714
        %v3779 = vrcp.pop %v3715
        %v3780 = vrcp.pop %v3716
        %v3781 = vrcp.pop %v3717
        %v3782 = vrcp.pop %v3718
        %v3783 = vrcp.pop %v3719
        %v3784 = vrcp.pop %v3720
        %v3785 = vrcp.pop %v3721
        %v3786 = vrcp.pop %v3722
        %v3787 = vrcp.pop %v3723
        %v3788 = vrcp.pop %v3724
        %v3789 = vrcp.pop %v3725
        %v3790 = vrcp.pop %v3726
        %v3791 = vrcp.pop %v3727
        %v3792 = vrcp.pop %v3728
        %v3793 = vrcp.pop %v3729
        %v3794 = vrcp.pop %v3730
        %v3795 = vrcp.pop %v3731
        %v3796 = vrcp.pop %v3732
        %v3797 = vrcp.pop %v3733
        %v3798 = vrcp.pop %v3734
        %v3799 = vrcp.pop %v3735
        %v3800 = vrcp.pop %v3736
        %v3801 = vrcp.pop %v3737
        %v3802 = vrcp.pop %v3738
        %v3803 = vrcp.pop %v3739
        %v3804 = vrcp.pop %v3740
        %v3805 = vrcp.pop %v3741
        %v3806 = vrcp.pop %v3742
        %v3807 = vrcp.pop %v3743
        %v3808 = vmul.f32 %v3330, %v3744
        %v3809 = vmul.f32 %v3332, %v3745
        %v3810 = vmul.f32 %v3334, %v3746
        %v3811 = vmul.f32 %v3336, %v3747
        %v3812 = vmul.f32 %v3340, %v3748
        %v3813 = vmul.f32 %v3342, %v3749
        %v3814 = vmul.f32 %v3344, %v3750
        %v3815 = vmul.f32 %v3346, %v3751
        %v3816 = vmul.f32 %v3350, %v3752
        %v3817 = vmul.f32 %v3352, %v3753
        %v3818 = vmul.f32 %v3354, %v3754
        %v3819 = vmul.f32 %v3356, %v3755
        %v3820 = vmul.f32 %v3360, %v3756
        %v3821 = vmul.f32 %v3362, %v3757
        %v3822 = vmul.f32 %v3364, %v3758
        %v3823 = vmul.f32 %v3366, %v3759
        %v3824 = vmul.f32 %v3370, %v3760
        %v3825 = vmul.f32 %v3372, %v3761
        %v3826 = vmul.f32 %v3374, %v3762
        %v3827 = vmul.f32 %v3376, %v3763
        %v3828 = vmul.f32 %v3380, %v3764
        %v3829 = vmul.f32 %v3382, %v3765
        %v3830 = vmul.f32 %v3384, %v3766
        %v3831 = vmul.f32 %v3386, %v3767
        %v3832 = vmul.f32 %v3390, %v3768
        %v3833 = vmul.f32 %v3392, %v3769
        %v3834 = vmul.f32 %v3394, %v3770
        %v3835 = vmul.f32 %v3396, %v3771
        %v3836 = vmul.f32 %v3400, %v3772
        %v3837 = vmul.f32 %v3402, %v3773
        %v3838 = vmul.f32 %v3404, %v3774
        %v3839 = vmul.f32 %v3406, %v3775
        %v3840 = vmul.f32 %v3410, %v3776
        %v3841 = vmul.f32 %v3412, %v3777
        %v3842 = vmul.f32 %v3414, %v3778
        %v3843 = vmul.f32 %v3416, %v3779
        %v3844 = vmul.f32 %v3420, %v3780
        %v3845 = vmul.f32 %v3422, %v3781
        %v3846 = vmul.f32 %v3424, %v3782
        %v3847 = vmul.f32 %v3426, %v3783
        %v3848 = vmul.f32 %v3430, %v3784
        %v3849 = vmul.f32 %v3432, %v3785
        %v3850 = vmul.f32 %v3434, %v3786
        %v3851 = vmul.f32 %v3436, %v3787
        %v3852 = vmul.f32 %v3440, %v3788
        %v3853 = vmul.f32 %v3442, %v3789
        %v3854 = vmul.f32 %v3444, %v3790
        %v3855 = vmul.f32 %v3446, %v3791
        %v3856 = vmul.f32 %v3450, %v3792
        %v3857 = vmul.f32 %v3452, %v3793
        %v3858 = vmul.f32 %v3454, %v3794
        %v3859 = vmul.f32 %v3456, %v3795
        %v3860 = vmul.f32 %v3460, %v3796
        %v3861 = vmul.f32 %v3462, %v3797
        %v3862 = vmul.f32 %v3464, %v3798
        %v3863 = vmul.f32 %v3466, %v3799
        %v3864 = vmul.f32 %v3470, %v3800
        %v3865 = vmul.f32 %v3472, %v3801
        %v3866 = vmul.f32 %v3474, %v3802
        %v3867 = vmul.f32 %v3476, %v3803
        %v3868 = vmul.f32 %v3480, %v3804
        %v3869 = vmul.f32 %v3482, %v3805
        %v3870 = vmul.f32 %v3484, %v3806
        %v3871 = vmul.f32 %v3486, %v3807
        %3872 = vst [vmem:[%s217] sm:$0xff] %v3808
        %3873 = vst [vmem:[%s217 + $0x8] sm:$0xff] %v3809
        %3874 = vst [vmem:[%s217 + $0x10] sm:$0xff] %v3810
        %3875 = vst [vmem:[%s217 + $0x18] sm:$0xff] %v3811
        %3876 = vst [vmem:[%s217 + $0x20] sm:$0xff] %v3812
        %3877 = vst [vmem:[%s217 + $0x28] sm:$0xff] %v3813
        %3878 = vst [vmem:[%s217 + $0x30] sm:$0xff] %v3814
        %3879 = vst [vmem:[%s217 + $0x38] sm:$0xff] %v3815
        %3880 = vst [vmem:[%s217 + $0x40] sm:$0xff] %v3816
        %3881 = vst [vmem:[%s217 + $0x48] sm:$0xff] %v3817
        %3882 = vst [vmem:[%s217 + $0x50] sm:$0xff] %v3818
        %3883 = vst [vmem:[%s217 + $0x58] sm:$0xff] %v3819
        %3884 = vst [vmem:[%s217 + $0x60] sm:$0xff] %v3820
        %3885 = vst [vmem:[%s217 + $0x68] sm:$0xff] %v3821
        %3886 = vst [vmem:[%s217 + $0x70] sm:$0xff] %v3822
        %3887 = vst [vmem:[%s217 + $0x78] sm:$0xff] %v3823
        %3888 = vst [vmem:[%s217 + $0x80] sm:$0xff] %v3824
        %3889 = vst [vmem:[%s217 + $0x88] sm:$0xff] %v3825
        %3890 = vst [vmem:[%s217 + $0x90] sm:$0xff] %v3826
        %3891 = vst [vmem:[%s217 + $0x98] sm:$0xff] %v3827
        %3892 = vst [vmem:[%s217 + $0xa0] sm:$0xff] %v3828
        %3893 = vst [vmem:[%s217 + $0xa8] sm:$0xff] %v3829
        %3894 = vst [vmem:[%s217 + $0xb0] sm:$0xff] %v3830
        %3895 = vst [vmem:[%s217 + $0xb8] sm:$0xff] %v3831
        %3896 = vst [vmem:[%s217 + $0xc0] sm:$0xff] %v3832
        %3897 = vst [vmem:[%s217 + $0xc8] sm:$0xff] %v3833
        %3898 = vst [vmem:[%s217 + $0xd0] sm:$0xff] %v3834
        %3899 = vst [vmem:[%s217 + $0xd8] sm:$0xff] %v3835
        %3900 = vst [vmem:[%s217 + $0xe0] sm:$0xff] %v3836
        %3901 = vst [vmem:[%s217 + $0xe8] sm:$0xff] %v3837
        %3902 = vst [vmem:[%s217 + $0xf0] sm:$0xff] %v3838
        %3903 = vst [vmem:[%s217 + $0xf8] sm:$0xff] %v3839
        %3904 = vst [vmem:[%s217 + $0x100] sm:$0xff] %v3840
        %3905 = vst [vmem:[%s217 + $0x108] sm:$0xff] %v3841
        %3906 = vst [vmem:[%s217 + $0x110] sm:$0xff] %v3842
        %3907 = vst [vmem:[%s217 + $0x118] sm:$0xff] %v3843
        %3908 = vst [vmem:[%s217 + $0x120] sm:$0xff] %v3844
        %3909 = vst [vmem:[%s217 + $0x128] sm:$0xff] %v3845
        %3910 = vst [vmem:[%s217 + $0x130] sm:$0xff] %v3846
        %3911 = vst [vmem:[%s217 + $0x138] sm:$0xff] %v3847
        %3912 = vst [vmem:[%s217 + $0x140] sm:$0xff] %v3848
        %3913 = vst [vmem:[%s217 + $0x148] sm:$0xff] %v3849
        %3914 = vst [vmem:[%s217 + $0x150] sm:$0xff] %v3850
        %3915 = vst [vmem:[%s217 + $0x158] sm:$0xff] %v3851
        %3916 = vst [vmem:[%s217 + $0x160] sm:$0xff] %v3852
        %3917 = vst [vmem:[%s217 + $0x168] sm:$0xff] %v3853
        %3918 = vst [vmem:[%s217 + $0x170] sm:$0xff] %v3854
        %3919 = vst [vmem:[%s217 + $0x178] sm:$0xff] %v3855
        %3920 = vst [vmem:[%s217 + $0x180] sm:$0xff] %v3856
        %3921 = vst [vmem:[%s217 + $0x188] sm:$0xff] %v3857
        %3922 = vst [vmem:[%s217 + $0x190] sm:$0xff] %v3858
        %3923 = vst [vmem:[%s217 + $0x198] sm:$0xff] %v3859
        %3924 = vst [vmem:[%s217 + $0x1a0] sm:$0xff] %v3860
        %3925 = vst [vmem:[%s217 + $0x1a8] sm:$0xff] %v3861
        %3926 = vst [vmem:[%s217 + $0x1b0] sm:$0xff] %v3862
        %3927 = vst [vmem:[%s217 + $0x1b8] sm:$0xff] %v3863
        %3928 = vst [vmem:[%s217 + $0x1c0] sm:$0xff] %v3864
        %3929 = vst [vmem:[%s217 + $0x1c8] sm:$0xff] %v3865
        %3930 = vst [vmem:[%s217 + $0x1d0] sm:$0xff] %v3866
        %3931 = vst [vmem:[%s217 + $0x1d8] sm:$0xff] %v3867
        %3932 = vst [vmem:[%s217 + $0x1e0] sm:$0xff] %v3868
        %3933 = vst [vmem:[%s217 + $0x1e8] sm:$0xff] %v3869
        %3934 = vst [vmem:[%s217 + $0x1f0] sm:$0xff] %v3870
        %3935 = vst [vmem:[%s217 + $0x1f8] sm:$0xff] %v3871
        %s3936 = sand.u32 %s137, 1
        %s3937 = scalar_lea.sflag [#allocation5], %s3936
        %s3938 = sand.u32 %s137, 1
        %s3939 = smul.addr %s3938, 512
        %s3940 = scalar_lea.vmem [#allocation4], %s3939
        // Predicated region
        $region41: #{spp_forward.1} parent=39 // pred_check
          %p3941 = pneg %p147
        $region42: #{spp_forward.1} parent=39 // pred_check_branch
          %3943 = sbr.rel (%p3941) target = $region44
        $region43: #{spp_forward.1} parent=39 // pred_region
          %s3945 = ssub.s32 8192, 8192
          %3946 = vsyncadd %s3937, %s3945
          %s3947 = smul.addr %s19, 64
          %s3948 = smul.addr %s3947, 128
          %s3949 = scalar_lea.hbm %s5, %s3948
          %s3950 = sshll.u32 %s3940, 4
          %s3951 = int_to_ptr.vmem [resolvable:$true] %s3950
          %3956 = dma.vmem_to_hbm [thread:$0]  %s3951, 8192, %s3949, %s3937, 256, 256, 16
        $region44: #{spp_forward.1} parent=39 // pred_fallthru
          _
      $region40: #{spp_forward.1} parent=5 // pred_fallthru
        _
      %p3957 = scmp.le.s32.totalorder 2, %s14
      // Predicated region
      $region45: #{spp_forward.1} parent=5 // pred_check
        %p3958 = pneg %p3957
      $region46: #{spp_forward.1} parent=5 // pred_check_branch
        %3960 = sbr.rel (%p3958) target = $region48
      $region47: #{spp_forward.1} parent=5 // pred_region
        %s3961 = ssub.s32 %s14, 2
        // Predicated region
        $region49: #{spp_forward.1} parent=47 // pred_check
          %p3962 = pneg %p153
        $region50: #{spp_forward.1} parent=47 // pred_check_branch
          %3964 = sbr.rel (%p3962) target = $region52
        $region51: #{spp_forward.1} parent=47 // pred_region
          %s3965 = sand.u32 %s138, 1
          %s3966 = scalar_lea.sflag [#allocation5], %s3965
          %s3967 = sand.u32 %s138, 1
          %s3968 = smul.addr %s3967, 512
          %s3969 = scalar_lea.vmem [#allocation4], %s3968
          %3970 = dma.done %s3966, 8192
        $region52: #{spp_forward.1} parent=47 // pred_fallthru
          _
      $region48: #{spp_forward.1} parent=5 // pred_fallthru
        _
    $region6: #{spp_forward.1} parent=1 // loop_footer
      %s18 = sadd.s32 1, %s14
    $region7: #{spp_forward.1} parent=1 // loop_footer_branch
      %13 = sbr.rel target = $region3
    $region8: #{spp_forward.1} parent=1 // loop_exit
      _
    %3971 = vsyncpa [#allocation5], 1
    %s3972 = scalar_lea.sflag [#allocation5], 1
    %3973 = vsyncpa %s3972, 1

</llo_original>
